<compile_context>
chip_gen: v7x
topology: tpu7x:2x2x1
jax: 0.10.0
libtpu: 0.0.40
codegen_flags: <defaults>
</compile_context>

<pallas_src>
import functools

import jax
import jax.numpy as jnp
from jax.experimental import pallas as pl
from jax.experimental.pallas import tpu as pltpu


def _round_up(a, b):
    return -(-a // b) * b


def _vmem_budget_bytes():
    """~80% of physical VMEM (v5e/v6e: ~102 MiB, v7x: ~51 MiB); safe fallback."""
    try:
        info = pltpu.get_tpu_info()
        for name in ("vmem_capacity_bytes", "vmem_size_bytes", "vmem_bytes"):
            cap = getattr(info, name, None)
            if cap:
                budget = int(cap * 0.8)
                return min(max(budget, 32 * 1024 * 1024), 112 * 1024 * 1024)
    except Exception:
        pass
    return 64 * 1024 * 1024


def _compute_and_store(read_band, read_window, w_ref, bias, o_ref, *,
                       sub_tiles, ksize, stride, d, Wo, C_in):
    """Shared per-tile compute.

    For each (r0, rows) sub-tile of the output row tile:
      * stride==1: read one halo'd row band once, slice all k*k tap windows
        from that value (hoisted W-axis slicing).
      * stride>1 : read each tap window with a strided ref read.
    Then accumulate k*k small MXU GEMMs into a register-resident f32
    accumulator, add the folded BN bias, apply SiLU and store once.
    """
    for (r0, rows) in sub_tiles:
        sub_m = rows * Wo
        if stride == 1:
            band_rows = rows + (ksize - 1) * d
            band = read_band(r0, band_rows)            # (band_rows, Wband, C_in)
            wins = [band[kh * d:kh * d + rows, kw * d:kw * d + Wo, :]
                    for kh in range(ksize) for kw in range(ksize)]
        else:
            wins = [read_window(r0, rows, kh, kw)
                    for kh in range(ksize) for kw in range(ksize)]

        acc = None
        for t, win in enumerate(wins):
            a = win.reshape(sub_m, C_in)               # (sub_m, C_in) bf16
            p = jnp.dot(a, w_ref[t], preferred_element_type=jnp.float32)
            acc = p if acc is None else acc + p        # stays in vregs

        y = acc + bias                                 # folded BN bias
        o_ref[0, pl.ds(r0 * Wo, sub_m), :] = (y * jax.nn.sigmoid(y)).astype(o_ref.dtype)


def _conv_kernel_resident(x_ref, w_ref, bias_ref, o_ref, *,
                          sub_tiles, ksize, stride, d, th, Wo, C_in):
    """Whole padded image is VMEM-resident (small / moderate images)."""
    i = pl.program_id(1)
    row0 = i * (th * stride)                           # first padded input row
    bias = bias_ref[...]                               # (1, Cp) f32

    def read_band(r0, band_rows):
        return x_ref[0, pl.ds(row0 + r0 * stride, band_rows), :, :]

    def read_window(r0, rows, kh, kw):
        return x_ref[0,
                     pl.ds(row0 + r0 * stride + kh * d, rows, stride),
                     pl.ds(kw * d, Wo, stride), :]

    _compute_and_store(read_band, read_window, w_ref, bias, o_ref,
                       sub_tiles=sub_tiles, ksize=ksize, stride=stride,
                       d=d, Wo=Wo, C_in=C_in)


def _conv_kernel_banded(x_hbm, w_ref, bias_ref, o_ref, band_ref, *,
                        sub_tiles, ksize, stride, d, th, Wo, C_in,
                        tile_band_rows):
    """Large-image path: input stays in HBM; copy one halo'd row band/tile."""
    n = pl.program_id(0)
    i = pl.program_id(1)
    row0 = i * (th * stride)
    # Single-buffered band copy: bounds VMEM use (critical on v7x's 64 MiB/TC).
    pltpu.sync_copy(x_hbm.at[n, pl.ds(row0, tile_band_rows)], band_ref)
    bias = bias_ref[...]

    def read_band(r0, band_rows):
        return band_ref[pl.ds(r0 * stride, band_rows), :, :]

    def read_window(r0, rows, kh, kw):
        return band_ref[pl.ds(r0 * stride + kh * d, rows, stride),
                        pl.ds(kw * d, Wo, stride), :]

    _compute_and_store(read_band, read_window, w_ref, bias, o_ref,
                       sub_tiles=sub_tiles, ksize=ksize, stride=stride,
                       d=d, Wo=Wo, C_in=C_in)


def base_conv_forward(x_nchw, weight, gamma, beta, running_mean, running_var,
                      *, ksize, stride=1, dilation=False, eps=1e-5,
                      out_dtype=jnp.float32, force_banded=False):
    """Pallas BaseConv.forward: Conv2d(pad=(k-1)//2) -> BN(eval) -> SiLU.

    x_nchw : (N, C_in, H, W) float32
    weight : (C_out, C_in, ksize, ksize) float32
    Returns (N, C_out, Ho, Wo) in out_dtype (NCHW, like the PyTorch module).
    """
    N, C_in, H, W = (int(s) for s in x_nchw.shape)
    C_out = int(weight.shape[0])
    pad = (ksize - 1) // 2
    d = pad + 1 if dilation else 1

    Ho = (H + 2 * pad - d * (ksize - 1) - 1) // stride + 1
    Wo = (W + 2 * pad - d * (ksize - 1) - 1) // stride + 1

    # ---- output-channel padding: lane-dense only when C_out is large -------
    Cp = _round_up(C_out, 128) if C_out >= 96 else _round_up(C_out, 8)
    out_itemsize = jnp.dtype(out_dtype).itemsize

    # ---- M tiling: vreg-sized sub-tiles, grid row tile of n_sub sub-tiles ---
    sub_m_target = int(max(64, min(512, (32 * 1024) // max(Cp, 64))))
    sub_h = max(1, min(Ho, sub_m_target // max(1, Wo)))
    n_sub = max(1, min(-(-Ho // sub_h), max(1, 2048 // (sub_h * Wo))))
    th = sub_h * n_sub
    n_row_tiles = -(-Ho // th)
    if n_row_tiles > 1:
        while (th * Wo) % 8 != 0:      # block sublane alignment when tiled
            th += 1
        n_row_tiles = -(-Ho // th)
    Ho_pad = n_row_tiles * th
    tmw = th * Wo
    M_pad = Ho_pad * Wo

    sub_tiles, r = [], 0
    while r < th:
        rows = min(sub_h, th - r)
        sub_tiles.append((r, rows))
        r += rows
    sub_tiles = tuple(sub_tiles)

    # ---- pad input (NHWC, bf16) so every tile's taps are in-bounds ----------
    Hp_needed = (Ho_pad - 1) * stride + d * (ksize - 1) + 1
    bottom = max(0, Hp_needed - H - pad)
    x_nhwc = jnp.transpose(x_nchw, (0, 2, 3, 1)).astype(jnp.bfloat16)
    xp = jnp.pad(x_nhwc, ((0, 0), (pad, bottom), (pad, pad), (0, 0)))
    Hp, Wp = int(xp.shape[1]), int(xp.shape[2])

    # ---- fold BN (running stats) into the conv weights ----------------------
    inv_std = jax.lax.rsqrt(running_var.astype(jnp.float32) + eps)
    scale = gamma.astype(jnp.float32) * inv_std                     # (C_out,)
    bias = beta.astype(jnp.float32) - running_mean.astype(jnp.float32) * scale

    taps = ksize * ksize
    # (C_out, C_in, kh, kw) -> (kh*kw, C_in, C_out), BN-scaled
    w = jnp.transpose(weight.astype(jnp.float32), (2, 3, 1, 0))
    w = w.reshape(taps, C_in, C_out) * scale[None, None, :]
    if Cp != C_out:
        w = jnp.pad(w, ((0, 0), (0, 0), (0, Cp - C_out)))
        bias = jnp.pad(bias, (0, Cp - C_out))
    w = w.astype(jnp.bfloat16)
    bias2 = bias.reshape(1, Cp).astype(jnp.float32)

    # ---- VMEM budget & input-residency decision -----------------------------
    vmem_budget = _vmem_budget_bytes()
    resident_bytes = (2 * Hp * Wp * C_in * 2        # image, double-buffered
                      + 2 * taps * C_in * Cp * 2    # weights
                      + 2 * Cp * 4                  # bias
                      + 2 * tmw * Cp * out_itemsize)  # output blocks
    use_resident = (not force_banded) and (resident_bytes <= vmem_budget // 2)

    cost = pl.CostEstimate(
        flops=2 * N * Ho * Wo * taps * C_in * C_out,
        transcendentals=N * Ho * Wo * C_out,
        bytes_accessed=(xp.size * 2 + w.size * 2 + bias2.size * 4
                        + N * M_pad * Cp * out_itemsize),
    )

    common = dict(sub_tiles=sub_tiles, ksize=ksize, stride=stride, d=d,
                  th=th, Wo=Wo, C_in=C_in)
    w_spec = pl.BlockSpec((taps, C_in, Cp), lambda n, i: (0, 0, 0))
    b_spec = pl.BlockSpec((1, Cp), lambda n, i: (0, 0))
    out_spec = pl.BlockSpec((1, tmw, Cp), lambda n, i: (n, i, 0))

    if use_resident:
        kernel = functools.partial(_conv_kernel_resident, **common)
        grid_spec = pltpu.PrefetchScalarGridSpec(
            num_scalar_prefetch=0,
            grid=(N, n_row_tiles),
            in_specs=[pl.BlockSpec((1, Hp, Wp, C_in), lambda n, i: (n, 0, 0, 0)),
                      w_spec, b_spec],
            out_specs=out_spec,
        )
    else:
        tile_band_rows = (th - 1) * stride + (ksize - 1) * d + 1
        kernel = functools.partial(_conv_kernel_banded,
                                   tile_band_rows=tile_band_rows, **common)
        grid_spec = pltpu.PrefetchScalarGridSpec(
            num_scalar_prefetch=0,
            grid=(N, n_row_tiles),
            in_specs=[pl.BlockSpec(memory_space=pl.ANY),   # input stays in HBM
                      w_spec, b_spec],
            out_specs=out_spec,
            scratch_shapes=[pltpu.VMEM((tile_band_rows, Wp, C_in), jnp.bfloat16)],
        )

    out = pl.pallas_call(
        kernel,
        out_shape=jax.ShapeDtypeStruct((N, M_pad, Cp), out_dtype),
        grid_spec=grid_spec,
        compiler_params=pltpu.CompilerParams(
            dimension_semantics=("parallel", "parallel"),
            vmem_limit_bytes=vmem_budget,
        ),
        cost_estimate=cost,
    )(xp, w, bias2)

    out = out[:, :Ho * Wo, :C_out].reshape(N, Ho, Wo, C_out)
    # TODO(synk): emit NHWC / bf16 directly when the consuming op allows it to
    #             save the transpose + dtype-widening HBM passes.
    return jnp.transpose(out, (0, 3, 1, 2))  # back to NCHW


def _reference(x_nchw, weight, gamma, beta, running_mean, running_var,
               *, ksize, stride=1, dilation=False, eps=1e-5):
    pad = (ksize - 1) // 2
    d = pad + 1 if dilation else 1
    y = jax.lax.conv_general_dilated(
        x_nchw, weight,
        window_strides=(stride, stride),
        padding=[(pad, pad), (pad, pad)],
        rhs_dilation=(d, d),
        dimension_numbers=("NCHW", "OIHW", "NCHW"),
    )
    inv_std = 1.0 / jnp.sqrt(running_var + eps)
    scale = (gamma * inv_std).reshape(1, -1, 1, 1)
    bias = (beta - running_mean * gamma * inv_std).reshape(1, -1, 1, 1)
    y = y * scale + bias
    return y * jax.nn.sigmoid(y)


if __name__ == "__main__":
    key = jax.random.PRNGKey(0)
    k_x, k_w, k_g, k_b, k_m, k_v = jax.random.split(key, 6)

    # BaseConv(in_channels=4, out_channels=8, ksize=3, stride=1)
    N, C_in, H, W = 2, 4, 16, 16
    C_out, ksize, stride = 8, 3, 1

    x = jax.random.normal(k_x, (N, C_in, H, W), dtype=jnp.float32)
    weight = 0.1 * jax.random.normal(k_w, (C_out, C_in, ksize, ksize), jnp.float32)
    gamma = 1.0 + 0.1 * jax.random.normal(k_g, (C_out,), jnp.float32)
    beta = 0.1 * jax.random.normal(k_b, (C_out,), jnp.float32)
    running_mean = 0.1 * jax.random.normal(k_m, (C_out,), jnp.float32)
    running_var = jnp.abs(jax.random.normal(k_v, (C_out,), jnp.float32)) + 0.5

    ref = jax.block_until_ready(_reference(
        x, weight, gamma, beta, running_mean, running_var,
        ksize=ksize, stride=stride, dilation=False))

    # Exercise both paths: VMEM-resident image and HBM-resident + banded DMA.
    for banded in (False, True):
        out = base_conv_forward(
            x, weight, gamma, beta, running_mean, running_var,
            ksize=ksize, stride=stride, dilation=False, force_banded=banded)
        out = jax.block_until_ready(out)
        assert out.shape == (N, C_out, H, W), out.shape
        # bf16 MXU operands -> bf16-appropriate tolerances.
        if not jnp.allclose(out, ref, atol=3e-2, rtol=3e-2):
            max_err = float(jnp.max(jnp.abs(out - ref)))
            raise AssertionError(
                f"Pallas BaseConv mismatch (banded={banded}, max err {max_err})")

    print("KERNEL_OK")
</pallas_src>

<mosaic_0001>
module attributes {stable_mosaic.version = 11 : i64} {
  func.func @_conv_kernel_resident(%arg0: i32, %arg1: i32, %arg2: memref<1x18x18x4xbf16, #tpu.memory_space<vmem>>, %arg3: memref<9x4x8xbf16, #tpu.memory_space<vmem>>, %arg4: memref<1x8xf32, #tpu.memory_space<vmem>>, %arg5: memref<1x256x8xf32, #tpu.memory_space<vmem>>) attributes {dimension_semantics = [#tpu.dimension_semantics<parallel>, #tpu.dimension_semantics<parallel>], iteration_bounds = array<i64: 2, 1>, scalar_prefetch = 0 : i64, scratch_operands = 0 : i64, tpu.core_type = #tpu.core_type<tc>, window_params = [{transform_indices = @transform_0, window_bounds = array<i64: 1, 18, 18, 4>}, {pipeline_mode = #tpu.pipeline_mode<synchronous>, transform_indices = @transform_1, window_bounds = array<i64: 9, 4, 8>}, {pipeline_mode = #tpu.pipeline_mode<synchronous>, transform_indices = @transform_2, window_bounds = array<i64: 1, 8>}, {transform_indices = @transform_3, window_bounds = array<i64: 1, 256, 8>}]} {
    %c16_i32 = arith.constant 16 : i32
    %0 = arith.muli %arg1, %c16_i32 : i32
    %c0 = arith.constant 0 : index
    %c0_0 = arith.constant 0 : index
    %1 = vector.load %arg4[%c0, %c0_0] : memref<1x8xf32, #tpu.memory_space<vmem>>, vector<1x8xf32>
    %c0_i32 = arith.constant 0 : i32
    %2 = arith.addi %0, %c0_i32 : i32
    %c0_1 = arith.constant 0 : index
    %3 = arith.index_cast %2 : i32 to index
    %c0_2 = arith.constant 0 : index
    %c0_3 = arith.constant 0 : index
    %4 = vector.load %arg2[%c0_1, %3, %c0_2, %c0_3] : memref<1x18x18x4xbf16, #tpu.memory_space<vmem>>, vector<1x18x18x4xbf16>
    %5 = vector.shape_cast %4 : vector<1x18x18x4xbf16> to vector<18x18x4xbf16>
    %6 = vector.extract_strided_slice %5 {offsets = [0, 0, 0], sizes = [16, 16, 4], strides = [1, 1, 1]} : vector<18x18x4xbf16> to vector<16x16x4xbf16>
    %7 = vector.extract_strided_slice %5 {offsets = [0, 1, 0], sizes = [16, 16, 4], strides = [1, 1, 1]} : vector<18x18x4xbf16> to vector<16x16x4xbf16>
    %8 = vector.extract_strided_slice %5 {offsets = [0, 2, 0], sizes = [16, 16, 4], strides = [1, 1, 1]} : vector<18x18x4xbf16> to vector<16x16x4xbf16>
    %9 = vector.extract_strided_slice %5 {offsets = [1, 0, 0], sizes = [16, 16, 4], strides = [1, 1, 1]} : vector<18x18x4xbf16> to vector<16x16x4xbf16>
    %10 = vector.extract_strided_slice %5 {offsets = [1, 1, 0], sizes = [16, 16, 4], strides = [1, 1, 1]} : vector<18x18x4xbf16> to vector<16x16x4xbf16>
    %11 = vector.extract_strided_slice %5 {offsets = [1, 2, 0], sizes = [16, 16, 4], strides = [1, 1, 1]} : vector<18x18x4xbf16> to vector<16x16x4xbf16>
    %12 = vector.extract_strided_slice %5 {offsets = [2, 0, 0], sizes = [16, 16, 4], strides = [1, 1, 1]} : vector<18x18x4xbf16> to vector<16x16x4xbf16>
    %13 = vector.extract_strided_slice %5 {offsets = [2, 1, 0], sizes = [16, 16, 4], strides = [1, 1, 1]} : vector<18x18x4xbf16> to vector<16x16x4xbf16>
    %14 = vector.extract_strided_slice %5 {offsets = [2, 2, 0], sizes = [16, 16, 4], strides = [1, 1, 1]} : vector<18x18x4xbf16> to vector<16x16x4xbf16>
    %15 = vector.shape_cast %6 : vector<16x16x4xbf16> to vector<256x4xbf16>
    %c0_4 = arith.constant 0 : index
    %c0_5 = arith.constant 0 : index
    %c0_6 = arith.constant 0 : index
    %16 = vector.load %arg3[%c0_4, %c0_5, %c0_6] : memref<9x4x8xbf16, #tpu.memory_space<vmem>>, vector<1x4x8xbf16>
    %17 = vector.shape_cast %16 : vector<1x4x8xbf16> to vector<4x8xbf16>
    %cst = arith.constant dense<0.000000e+00> : vector<256x8xf32>
    %18 = tpu.matmul %15, %17, %cst {dimension_numbers = #tpu.dot_dimension_numbers<[1], [0], [0], [1], [0, 0, 1, 1], [], []>} : vector<256x4xbf16>, vector<4x8xbf16>, vector<256x8xf32> -> vector<256x8xf32>
    %19 = vector.shape_cast %7 : vector<16x16x4xbf16> to vector<256x4xbf16>
    %c1 = arith.constant 1 : index
    %c0_7 = arith.constant 0 : index
    %c0_8 = arith.constant 0 : index
    %20 = vector.load %arg3[%c1, %c0_7, %c0_8] : memref<9x4x8xbf16, #tpu.memory_space<vmem>>, vector<1x4x8xbf16>
    %21 = vector.shape_cast %20 : vector<1x4x8xbf16> to vector<4x8xbf16>
    %cst_9 = arith.constant dense<0.000000e+00> : vector<256x8xf32>
    %22 = tpu.matmul %19, %21, %cst_9 {dimension_numbers = #tpu.dot_dimension_numbers<[1], [0], [0], [1], [0, 0, 1, 1], [], []>} : vector<256x4xbf16>, vector<4x8xbf16>, vector<256x8xf32> -> vector<256x8xf32>
    %23 = arith.addf %18, %22 : vector<256x8xf32>
    %24 = vector.shape_cast %8 : vector<16x16x4xbf16> to vector<256x4xbf16>
    %c2 = arith.constant 2 : index
    %c0_10 = arith.constant 0 : index
    %c0_11 = arith.constant 0 : index
    %25 = vector.load %arg3[%c2, %c0_10, %c0_11] : memref<9x4x8xbf16, #tpu.memory_space<vmem>>, vector<1x4x8xbf16>
    %26 = vector.shape_cast %25 : vector<1x4x8xbf16> to vector<4x8xbf16>
    %cst_12 = arith.constant dense<0.000000e+00> : vector<256x8xf32>
    %27 = tpu.matmul %24, %26, %cst_12 {dimension_numbers = #tpu.dot_dimension_numbers<[1], [0], [0], [1], [0, 0, 1, 1], [], []>} : vector<256x4xbf16>, vector<4x8xbf16>, vector<256x8xf32> -> vector<256x8xf32>
    %28 = arith.addf %23, %27 : vector<256x8xf32>
    %29 = vector.shape_cast %9 : vector<16x16x4xbf16> to vector<256x4xbf16>
    %c3 = arith.constant 3 : index
    %c0_13 = arith.constant 0 : index
    %c0_14 = arith.constant 0 : index
    %30 = vector.load %arg3[%c3, %c0_13, %c0_14] : memref<9x4x8xbf16, #tpu.memory_space<vmem>>, vector<1x4x8xbf16>
    %31 = vector.shape_cast %30 : vector<1x4x8xbf16> to vector<4x8xbf16>
    %cst_15 = arith.constant dense<0.000000e+00> : vector<256x8xf32>
    %32 = tpu.matmul %29, %31, %cst_15 {dimension_numbers = #tpu.dot_dimension_numbers<[1], [0], [0], [1], [0, 0, 1, 1], [], []>} : vector<256x4xbf16>, vector<4x8xbf16>, vector<256x8xf32> -> vector<256x8xf32>
    %33 = arith.addf %28, %32 : vector<256x8xf32>
    %34 = vector.shape_cast %10 : vector<16x16x4xbf16> to vector<256x4xbf16>
    %c4 = arith.constant 4 : index
    %c0_16 = arith.constant 0 : index
    %c0_17 = arith.constant 0 : index
    %35 = vector.load %arg3[%c4, %c0_16, %c0_17] : memref<9x4x8xbf16, #tpu.memory_space<vmem>>, vector<1x4x8xbf16>
    %36 = vector.shape_cast %35 : vector<1x4x8xbf16> to vector<4x8xbf16>
    %cst_18 = arith.constant dense<0.000000e+00> : vector<256x8xf32>
    %37 = tpu.matmul %34, %36, %cst_18 {dimension_numbers = #tpu.dot_dimension_numbers<[1], [0], [0], [1], [0, 0, 1, 1], [], []>} : vector<256x4xbf16>, vector<4x8xbf16>, vector<256x8xf32> -> vector<256x8xf32>
    %38 = arith.addf %33, %37 : vector<256x8xf32>
    %39 = vector.shape_cast %11 : vector<16x16x4xbf16> to vector<256x4xbf16>
    %c5 = arith.constant 5 : index
    %c0_19 = arith.constant 0 : index
    %c0_20 = arith.constant 0 : index
    %40 = vector.load %arg3[%c5, %c0_19, %c0_20] : memref<9x4x8xbf16, #tpu.memory_space<vmem>>, vector<1x4x8xbf16>
    %41 = vector.shape_cast %40 : vector<1x4x8xbf16> to vector<4x8xbf16>
    %cst_21 = arith.constant dense<0.000000e+00> : vector<256x8xf32>
    %42 = tpu.matmul %39, %41, %cst_21 {dimension_numbers = #tpu.dot_dimension_numbers<[1], [0], [0], [1], [0, 0, 1, 1], [], []>} : vector<256x4xbf16>, vector<4x8xbf16>, vector<256x8xf32> -> vector<256x8xf32>
    %43 = arith.addf %38, %42 : vector<256x8xf32>
    %44 = vector.shape_cast %12 : vector<16x16x4xbf16> to vector<256x4xbf16>
    %c6 = arith.constant 6 : index
    %c0_22 = arith.constant 0 : index
    %c0_23 = arith.constant 0 : index
    %45 = vector.load %arg3[%c6, %c0_22, %c0_23] : memref<9x4x8xbf16, #tpu.memory_space<vmem>>, vector<1x4x8xbf16>
    %46 = vector.shape_cast %45 : vector<1x4x8xbf16> to vector<4x8xbf16>
    %cst_24 = arith.constant dense<0.000000e+00> : vector<256x8xf32>
    %47 = tpu.matmul %44, %46, %cst_24 {dimension_numbers = #tpu.dot_dimension_numbers<[1], [0], [0], [1], [0, 0, 1, 1], [], []>} : vector<256x4xbf16>, vector<4x8xbf16>, vector<256x8xf32> -> vector<256x8xf32>
    %48 = arith.addf %43, %47 : vector<256x8xf32>
    %49 = vector.shape_cast %13 : vector<16x16x4xbf16> to vector<256x4xbf16>
    %c7 = arith.constant 7 : index
    %c0_25 = arith.constant 0 : index
    %c0_26 = arith.constant 0 : index
    %50 = vector.load %arg3[%c7, %c0_25, %c0_26] : memref<9x4x8xbf16, #tpu.memory_space<vmem>>, vector<1x4x8xbf16>
    %51 = vector.shape_cast %50 : vector<1x4x8xbf16> to vector<4x8xbf16>
    %cst_27 = arith.constant dense<0.000000e+00> : vector<256x8xf32>
    %52 = tpu.matmul %49, %51, %cst_27 {dimension_numbers = #tpu.dot_dimension_numbers<[1], [0], [0], [1], [0, 0, 1, 1], [], []>} : vector<256x4xbf16>, vector<4x8xbf16>, vector<256x8xf32> -> vector<256x8xf32>
    %53 = arith.addf %48, %52 : vector<256x8xf32>
    %54 = vector.shape_cast %14 : vector<16x16x4xbf16> to vector<256x4xbf16>
    %c8 = arith.constant 8 : index
    %c0_28 = arith.constant 0 : index
    %c0_29 = arith.constant 0 : index
    %55 = vector.load %arg3[%c8, %c0_28, %c0_29] : memref<9x4x8xbf16, #tpu.memory_space<vmem>>, vector<1x4x8xbf16>
    %56 = vector.shape_cast %55 : vector<1x4x8xbf16> to vector<4x8xbf16>
    %cst_30 = arith.constant dense<0.000000e+00> : vector<256x8xf32>
    %57 = tpu.matmul %54, %56, %cst_30 {dimension_numbers = #tpu.dot_dimension_numbers<[1], [0], [0], [1], [0, 0, 1, 1], [], []>} : vector<256x4xbf16>, vector<4x8xbf16>, vector<256x8xf32> -> vector<256x8xf32>
    %58 = arith.addf %53, %57 : vector<256x8xf32>
    %59 = vector.broadcast %1 : vector<1x8xf32> to vector<256x8xf32>
    %60 = arith.addf %58, %59 : vector<256x8xf32>
    %61 = arith.negf %60 : vector<256x8xf32>
    %62 = math.exp %61 : vector<256x8xf32>
    %cst_31 = arith.constant 1.000000e+00 : f32
    %63 = vector.broadcast %cst_31 : f32 to vector<256x8xf32>
    %64 = arith.addf %63, %62 : vector<256x8xf32>
    %65 = arith.divf %63, %64 : vector<256x8xf32>
    %66 = arith.mulf %60, %65 : vector<256x8xf32>
    %c0_32 = arith.constant 0 : index
    %c0_33 = arith.constant 0 : index
    %c0_34 = arith.constant 0 : index
    %67 = vector.load %arg5[%c0_32, %c0_33, %c0_34] : memref<1x256x8xf32, #tpu.memory_space<vmem>>, vector<1x256x8xf32>
    %68 = vector.shape_cast %67 : vector<1x256x8xf32> to vector<256x8xf32>
    %69 = vector.shape_cast %66 : vector<256x8xf32> to vector<1x256x8xf32>
    tpu.vector_store %arg5[%c0_32, %c0_33, %c0_34], %69 {strides = array<i32>} : memref<1x256x8xf32, #tpu.memory_space<vmem>>, vector<1x256x8xf32>,
    return
  }
  func.func @transform_0(%arg0: i32, %arg1: i32) -> (i32, i32, i32, i32) {
    %c0_i32 = arith.constant 0 : i32
    %c0_i32_0 = arith.constant 0 : i32
    %c0_i32_1 = arith.constant 0 : i32
    %c0_i32_2 = arith.constant 0 : i32
    return %arg0, %c0_i32, %c0_i32_0, %c0_i32_1 : i32, i32, i32, i32
  }
  func.func @transform_1(%arg0: i32, %arg1: i32) -> (i32, i32, i32) {
    %c0_i32 = arith.constant 0 : i32
    %c0_i32_0 = arith.constant 0 : i32
    %c0_i32_1 = arith.constant 0 : i32
    %c0_i32_2 = arith.constant 0 : i32
    return %c0_i32, %c0_i32_0, %c0_i32_1 : i32, i32, i32
  }
  func.func @transform_2(%arg0: i32, %arg1: i32) -> (i32, i32) {
    %c0_i32 = arith.constant 0 : i32
    %c0_i32_0 = arith.constant 0 : i32
    %c0_i32_1 = arith.constant 0 : i32
    return %c0_i32, %c0_i32_0 : i32, i32
  }
  func.func @transform_3(%arg0: i32, %arg1: i32) -> (i32, i32, i32) {
    %c0_i32 = arith.constant 0 : i32
    %c0_i32_0 = arith.constant 0 : i32
    return %arg0, %arg1, %c0_i32 : i32, i32, i32
  }
}

</mosaic_0001>

<llo_original>
// kernel: tpu_custom_call.1
$region0: #{tpu_custom_call.1}
  #allocation0 [shape = 'u32[]', space=smem, size = 0x4, offset = 0x4, fixed_abs, tag = 'smem constant byte address 0x4 - core index']
  #allocation1 [shape = 'u32[144,128]{1,0:T(1,128)}', space=vmem, size = 0x12000, scoped, tag = 'internal scratch']
  %s0 = inlined_call_operand.hbm [shape: bf16[2,18,18,4], index: 0, kind: input, shape index: {}]
  %s1 = inlined_call_operand.hbm [shape: bf16[9,4,8], index: 1, kind: input, shape index: {}]
  %s2 = inlined_call_operand.hbm [shape: f32[1,8], index: 2, kind: input, shape index: {}]
  %s3 = inlined_call_operand.hbm [shape: f32[2,256,8], index: 3, kind: output, shape index: {}]
  %s4 = sld [smem:[#allocation0]]
  $region57: #{tpu_custom_call.1} parent=0
    _
  %s6 = ssub.s32 1, %s4
  %s7 = scalar_select 0, %s6, %s4
  $region1: #{tpu_custom_call.1} parent=0
    #allocation2 [shape = 'u8[221184]{0}', space=vmem, size = 0x36000, scoped, tag = 'input window, operand 0']
    #allocation3 [shape = 's32[2]{0}', space=sflag, size = 0x8, scoped, tag = 'scoped memory for tpu_custom_call.1']
    #allocation4 [shape = 's32[2]{0}', space=sflag, size = 0x8, scoped, tag = 'scoped memory for tpu_custom_call.1']
    #allocation5 [shape = 'u8[9216]{0}', space=vmem, size = 0x2400, scoped, tag = 'input window, operand 1, single buffered']
    #allocation6 [shape = 's32[1]{0}', space=sflag, size = 0x4, scoped, tag = 'scoped memory for tpu_custom_call.1']
    #allocation7 [shape = 'u8[512]{0}', space=vmem, size = 0x400, scoped, tag = 'input window, operand 2, single buffered']
    #allocation8 [shape = 'u8[262144]{0}', space=vmem, size = 0x40000, scoped, tag = 'output window, operand 0']
    %8 = vsyncpa [#allocation3], 0
    %s9 = scalar_lea.sflag [#allocation3], 1
    %10 = vsyncpa %s9, 0
    %11 = vsyncpa [#allocation6], 0
    %12 = vsyncpa [#allocation4], 0
    %s13 = scalar_lea.sflag [#allocation4], 1
    %14 = vsyncpa %s13, 0
    loop: start=0, step=1, limit=4
    $region2: #{tpu_custom_call.1} parent=1 // loop_pre_header
      _
    $region3: #{tpu_custom_call.1} parent=1 // loop_header
      %s16 = sphi 0, %s20
      %p17 = scmp.ge.s32.totalorder %s16, 4
      %s23 = sphi 0, %s35
      %s24 = sphi 0, %s31
      %s25 = sphi 0, %s23
      %s26 = sphi 0, %s24
      %s27 = sphi 0, %s25
      %s28 = sphi 0, %s26
      %s38 = sphi 0, %s40
      %s41 = sphi 0, %s38
      %s42 = sphi 0, %s41
      %s58 = sphi 0, %s42
      %s62 = sphi 0, %s62
      %s64 = sphi 0, %s62
      %s65 = sphi 0, %s64
      %s79 = sphi 0, %s65
      %s83 = sphi 0, %s83
      %s85 = sphi 0, %s83
      %s86 = sphi 0, %s85
      %s100 = sphi 0, %s86
      %s108 = sphi 0, %s110
      %s111 = sphi 0, %s108
      %s112 = sphi 0, %s111
      %s128 = sphi 0, %s112
    $region4: #{tpu_custom_call.1} parent=1 // loop_header_branch
      %19 = sbr.rel (%p17) target = $region8
    $region5: #{tpu_custom_call.1} parent=1 // loop_body
      %s21 = ssub.s32 %s16, 1
      %s22 = ssub.s32 %s16, 2
      %s29 = sadd.s32 1, %s24
      %p30 = scmp.ge.s32.totalorder %s29, 1
      %s31 = scalar_select %p30, 0, %s29
      %s32 = sadd.s32 1, %s23
      %s33 = scalar_select %p30, %s32, %s23
      %p34 = scmp.ge.s32.totalorder %s33, 2
      %s35 = scalar_select %p34, 0, %s33
      %s36 = ssub.s32 %s23, %s35
      %p37 = scmp.eq.s32.totalorder %s36, 0
      %s39 = sadd.s32 %s38, 1
      %s40 = scalar_select %p37, %s38, %s39
      %p43 = pneg %p37
      %p44 = scmp.eq.s32.totalorder %s16, 1
      %p45 = por %p43, %p44
      %p46 = scmp.ne.s32.totalorder %s38, %s41
      %p47 = scmp.eq.s32.totalorder %s16, 0
      %p48 = por %p46, %p47
      %p49 = scmp.ne.s32.totalorder %s38, %s41
      %p50 = scmp.eq.s32.totalorder %s21, 1
      %p51 = por %p49, %p50
      %p52 = scmp.ne.s32.totalorder %s41, %s42
      %p53 = scmp.eq.s32.totalorder %s21, 0
      %p54 = por %p52, %p53
      %p55 = scmp.ne.s32.totalorder %s41, %s42
      %p56 = scmp.eq.s32.totalorder %s22, 1
      %p57 = por %p55, %p56
      %p59 = scmp.ne.s32.totalorder %s42, %s58
      %p60 = scmp.eq.s32.totalorder %s22, 0
      %p61 = por %p59, %p60
      %s63 = sadd.s32 %s62, 1
      %p66 = scmp.eq.s32.totalorder %s16, 1
      %p67 = scmp.ne.s32.totalorder %s62, %s64
      %p68 = scmp.eq.s32.totalorder %s16, 0
      %p69 = por %p67, %p68
      %p70 = scmp.ne.s32.totalorder %s62, %s64
      %p71 = scmp.eq.s32.totalorder %s21, 1
      %p72 = por %p70, %p71
      %p73 = scmp.ne.s32.totalorder %s64, %s65
      %p74 = scmp.eq.s32.totalorder %s21, 0
      %p75 = por %p73, %p74
      %p76 = scmp.ne.s32.totalorder %s64, %s65
      %p77 = scmp.eq.s32.totalorder %s22, 1
      %p78 = por %p76, %p77
      %p80 = scmp.ne.s32.totalorder %s65, %s79
      %p81 = scmp.eq.s32.totalorder %s22, 0
      %p82 = por %p80, %p81
      %s84 = sadd.s32 %s83, 1
      %p87 = scmp.eq.s32.totalorder %s16, 1
      %p88 = scmp.ne.s32.totalorder %s83, %s85
      %p89 = scmp.eq.s32.totalorder %s16, 0
      %p90 = por %p88, %p89
      %p91 = scmp.ne.s32.totalorder %s83, %s85
      %p92 = scmp.eq.s32.totalorder %s21, 1
      %p93 = por %p91, %p92
      %p94 = scmp.ne.s32.totalorder %s85, %s86
      %p95 = scmp.eq.s32.totalorder %s21, 0
      %p96 = por %p94, %p95
      %p97 = scmp.ne.s32.totalorder %s85, %s86
      %p98 = scmp.eq.s32.totalorder %s22, 1
      %p99 = por %p97, %p98
      %p101 = scmp.ne.s32.totalorder %s86, %s100
      %p102 = scmp.eq.s32.totalorder %s22, 0
      %p103 = por %p101, %p102
      %s104 = ssub.s32 %s23, %s35
      %s105 = ssub.s32 %s24, %s31
      %s106 = sor.u32 %s104, %s105
      %p107 = scmp.eq.s32.totalorder %s106, 0
      %s109 = sadd.s32 %s108, 1
      %s110 = scalar_select %p107, %s108, %s109
      %p113 = pneg %p107
      %p114 = scmp.eq.s32.totalorder %s16, 1
      %p115 = por %p113, %p114
      %p116 = scmp.ne.s32.totalorder %s108, %s111
      %p117 = scmp.eq.s32.totalorder %s16, 0
      %p118 = por %p116, %p117
      %p119 = scmp.ne.s32.totalorder %s108, %s111
      %p120 = scmp.eq.s32.totalorder %s21, 1
      %p121 = por %p119, %p120
      %p122 = scmp.ne.s32.totalorder %s111, %s112
      %p123 = scmp.eq.s32.totalorder %s21, 0
      %p124 = por %p122, %p123
      %p125 = scmp.ne.s32.totalorder %s111, %s112
      %p126 = scmp.eq.s32.totalorder %s22, 1
      %p127 = por %p125, %p126
      %p129 = scmp.ne.s32.totalorder %s112, %s128
      %p130 = scmp.eq.s32.totalorder %s22, 0
      %p131 = por %p129, %p130
      %p132 = scmp.le.s32.totalorder 1, %s16
      %p133 = scmp.lt.s32.totalorder %s16, 3
      %p134 = pnand %p132, %p133
      %p135 = pneg %p134
      // Predicated region
      $region9: #{tpu_custom_call.1} parent=5 // pred_check
        _
      $region10: #{tpu_custom_call.1} parent=5 // pred_check_branch
        %137 = sbr.rel (%p134) target = $region12
      $region11: #{tpu_custom_call.1} parent=5 // pred_region
        %s138 = ssub.s32 %s16, 1
        // Predicated region
        $region13: #{tpu_custom_call.1} parent=11 // pred_check
          %p139 = pneg %p75
        $region14: #{tpu_custom_call.1} parent=11 // pred_check_branch
          %141 = sbr.rel (%p139) target = $region16
        $region15: #{tpu_custom_call.1} parent=11 // pred_region
          %s143 = ssub.s32 288, 288
          %144 = vsyncadd [#allocation6], %s143
          %s145 = sshll.u32 [#allocation5], 4
          %s146 = int_to_ptr.vmem [resolvable:$true] %s145
          %151 = dma.hbm_to_vmem [thread:$0]  %s1, 288, %s146, [#allocation6], 32, 32, 2
        $region16: #{tpu_custom_call.1} parent=11 // pred_fallthru
          _
        // Predicated region
        $region17: #{tpu_custom_call.1} parent=11 // pred_check
          %p152 = pneg %p96
        $region18: #{tpu_custom_call.1} parent=11 // pred_check_branch
          %154 = sbr.rel (%p152) target = $region20
        $region19: #{tpu_custom_call.1} parent=11 // pred_region
          %s156 = ssub.s32 16, 16
          %157 = vsyncadd [#allocation6], %s156
          %s159 = sshll.u32 [#allocation7], 4
          %s160 = int_to_ptr.vmem [resolvable:$true] %s159
          %162 = dma.hbm_to_vmem [thread:$0]  %s2, 16, %s160, [#allocation6]
        $region20: #{tpu_custom_call.1} parent=11 // pred_fallthru
          _
      $region12: #{tpu_custom_call.1} parent=5 // pred_fallthru
        _
      %p163 = scmp.lt.s32.totalorder %s16, 2
      // Predicated region
      $region21: #{tpu_custom_call.1} parent=5 // pred_check
        %p164 = pneg %p163
      $region22: #{tpu_custom_call.1} parent=5 // pred_check_branch
        %166 = sbr.rel (%p164) target = $region24
      $region23: #{tpu_custom_call.1} parent=5 // pred_region
        // Predicated region
        $region25: #{tpu_custom_call.1} parent=23 // pred_check
          %p167 = pneg %p48
        $region26: #{tpu_custom_call.1} parent=23 // pred_check_branch
          %169 = sbr.rel (%p167) target = $region28
        $region27: #{tpu_custom_call.1} parent=23 // pred_region
          %s170 = sand.u32 %s38, 1
          %s171 = scalar_lea.sflag [#allocation3], %s170
          %s172 = sand.u32 %s38, 1
          %s173 = smul.addr %s172, 216
          %s174 = scalar_lea.vmem [#allocation2], %s173
          %s176 = ssub.s32 3456, 3456
          %177 = vsyncadd %s171, %s176
          %s178 = smul.addr %s23, 54
          %s179 = smul.addr %s178, 64
          %s180 = scalar_lea.hbm %s0, %s179
          %s181 = sshll.u32 %s174, 4
          %s182 = int_to_ptr.vmem [resolvable:$true] %s181
          %187 = dma.hbm_to_vmem [thread:$0]  %s180, 3456, %s182, %s171, 64, 64, 4
        $region28: #{tpu_custom_call.1} parent=23 // pred_fallthru
          _
      $region24: #{tpu_custom_call.1} parent=5 // pred_fallthru
        _
      %p188 = scmp.le.s32.totalorder 1, %s16
      %p189 = scmp.lt.s32.totalorder %s16, 3
      %p190 = pnand %p188, %p189
      %p191 = pneg %p190
      // Predicated region
      $region29: #{tpu_custom_call.1} parent=5 // pred_check
        _
      $region30: #{tpu_custom_call.1} parent=5 // pred_check_branch
        %193 = sbr.rel (%p190) target = $region32
      $region31: #{tpu_custom_call.1} parent=5 // pred_region
        %s194 = ssub.s32 %s16, 1
        %s195 = sand.u32 %s41, 1
        %s196 = scalar_lea.sflag [#allocation3], %s195
        %s197 = sand.u32 %s41, 1
        %s198 = smul.addr %s197, 216
        %s199 = scalar_lea.vmem [#allocation2], %s198
        // Predicated region
        $region33: #{tpu_custom_call.1} parent=31 // pred_check
          %p200 = pneg %p54
        $region34: #{tpu_custom_call.1} parent=31 // pred_check_branch
          %202 = sbr.rel (%p200) target = $region36
        $region35: #{tpu_custom_call.1} parent=31 // pred_region
          %203 = dma.done %s196, 3456
        $region36: #{tpu_custom_call.1} parent=31 // pred_fallthru
          _
        // Predicated region
        $region37: #{tpu_custom_call.1} parent=31 // pred_check
          %p204 = pneg %p75
        $region38: #{tpu_custom_call.1} parent=31 // pred_check_branch
          %206 = sbr.rel (%p204) target = $region40
        $region39: #{tpu_custom_call.1} parent=31 // pred_region
          %207 = dma.done [#allocation6], 288
        $region40: #{tpu_custom_call.1} parent=31 // pred_fallthru
          _
        // Predicated region
        $region41: #{tpu_custom_call.1} parent=31 // pred_check
          %p208 = pneg %p96
        $region42: #{tpu_custom_call.1} parent=31 // pred_check_branch
          %210 = sbr.rel (%p208) target = $region44
        $region43: #{tpu_custom_call.1} parent=31 // pred_region
          %211 = dma.done [#allocation6], 16
        $region44: #{tpu_custom_call.1} parent=31 // pred_fallthru
          _
        %s212 = sand.u32 %s41, 1
        %s213 = scalar_lea.sflag [#allocation3], %s212
        %s214 = sand.u32 %s41, 1
        %s215 = smul.addr %s214, 216
        %s216 = scalar_lea.vmem [#allocation2], %s215
        %p217 = pneg %p54
        %p218 = pneg %p51
        %p219 = pneg %p75
        %p220 = pneg %p72
        %p221 = pneg %p96
        %p222 = pneg %p93
        %p223 = pneg %p124
        %p224 = pneg %p121
        %s225 = sand.u32 %s111, 1
        %s226 = scalar_lea.sflag [#allocation4], %s225
        %s227 = sand.u32 %s111, 1
        %s228 = smul.addr %s227, 256
        %s229 = scalar_lea.vmem [#allocation8], %s228
        %s230 = smul.u32 32, %s26
        %s232 = smul.u32 %s26, 16
        %v233 = vld [vmem:[#allocation7] sm:$0x1]
        %s234 = smul.u32 %s232, 3
        %s235 = smul.addr %s234, 4
        %s236 = scalar_lea.vmem %s199, %s235 [#allocation2]
        %v237 = vld [vmem:[%s236] sm:$0xf]
        %v238 = vld [vmem:[%s236 + $0x4] sm:$0xf]
        %v239 = vld [vmem:[%s236 + $0x8] sm:$0x1]
        %v240 = vld [vmem:[%s236 + $0xc] sm:$0xf]
        %v241 = vld [vmem:[%s236 + $0x10] sm:$0xf]
        %v242 = vld [vmem:[%s236 + $0x14] sm:$0x1]
        %v243 = vld [vmem:[%s236 + $0x18] sm:$0xf]
        %v244 = vld [vmem:[%s236 + $0x1c] sm:$0xf]
        %v245 = vld [vmem:[%s236 + $0x20] sm:$0x1]
        %v246 = vld [vmem:[%s236 + $0x24] sm:$0xf]
        %v247 = vld [vmem:[%s236 + $0x28] sm:$0xf]
        %v248 = vld [vmem:[%s236 + $0x2c] sm:$0x1]
        %v249 = vld [vmem:[%s236 + $0x30] sm:$0xf]
        %v250 = vld [vmem:[%s236 + $0x34] sm:$0xf]
        %v251 = vld [vmem:[%s236 + $0x38] sm:$0x1]
        %v252 = vld [vmem:[%s236 + $0x3c] sm:$0xf]
        %v253 = vld [vmem:[%s236 + $0x40] sm:$0xf]
        %v254 = vld [vmem:[%s236 + $0x44] sm:$0x1]
        %v255 = vld [vmem:[%s236 + $0x48] sm:$0xf]
        %v256 = vld [vmem:[%s236 + $0x4c] sm:$0xf]
        %v257 = vld [vmem:[%s236 + $0x50] sm:$0x1]
        %v258 = vld [vmem:[%s236 + $0x54] sm:$0xf]
        %v259 = vld [vmem:[%s236 + $0x58] sm:$0xf]
        %v260 = vld [vmem:[%s236 + $0x5c] sm:$0x1]
        %v261 = vld [vmem:[%s236 + $0x60] sm:$0xf]
        %v262 = vld [vmem:[%s236 + $0x64] sm:$0xf]
        %v263 = vld [vmem:[%s236 + $0x68] sm:$0x1]
        %v264 = vld [vmem:[%s236 + $0x6c] sm:$0xf]
        %v265 = vld [vmem:[%s236 + $0x70] sm:$0xf]
        %v266 = vld [vmem:[%s236 + $0x74] sm:$0x1]
        %v267 = vld [vmem:[%s236 + $0x78] sm:$0xf]
        %v268 = vld [vmem:[%s236 + $0x7c] sm:$0xf]
        %v269 = vld [vmem:[%s236 + $0x80] sm:$0x1]
        %v270 = vld [vmem:[%s236 + $0x84] sm:$0xf]
        %v271 = vld [vmem:[%s236 + $0x88] sm:$0xf]
        %v272 = vld [vmem:[%s236 + $0x8c] sm:$0x1]
        %v273 = vld [vmem:[%s236 + $0x90] sm:$0xf]
        %v274 = vld [vmem:[%s236 + $0x94] sm:$0xf]
        %v275 = vld [vmem:[%s236 + $0x98] sm:$0x1]
        %v276 = vld [vmem:[%s236 + $0x9c] sm:$0xf]
        %v277 = vld [vmem:[%s236 + $0xa0] sm:$0xf]
        %v278 = vld [vmem:[%s236 + $0xa4] sm:$0x1]
        %v279 = vld [vmem:[%s236 + $0xa8] sm:$0xf]
        %v280 = vld [vmem:[%s236 + $0xac] sm:$0xf]
        %v281 = vld [vmem:[%s236 + $0xb0] sm:$0x1]
        %v282 = vld [vmem:[%s236 + $0xb4] sm:$0xf]
        %v283 = vld [vmem:[%s236 + $0xb8] sm:$0xf]
        %v284 = vld [vmem:[%s236 + $0xbc] sm:$0x1]
        %v285 = vld [vmem:[%s236 + $0xc0] sm:$0xf]
        %v286 = vld [vmem:[%s236 + $0xc4] sm:$0xf]
        %v287 = vld [vmem:[%s236 + $0xc8] sm:$0x1]
        %v288 = vld [vmem:[%s236 + $0xcc] sm:$0xf]
        %v289 = vld [vmem:[%s236 + $0xd0] sm:$0xf]
        %v290 = vld [vmem:[%s236 + $0xd4] sm:$0x1]
        %v291 = vld [vmem:[#allocation5] sm:$0x3]
        %vm292 = vsmask.f32 3328
        %vm293 = vsmask.f32 7440
        %vm294 = vmor %vm292, %vm293
        %v296 = vshrl.u32 %v237, 16
        %v298 = vrot.slane %v296, 4
        %v299 = vshll.u32 %v237, 16
        %v301 = vrot.slane %v299, 5
        %v302 = vor.u32 %v298, %v301
        %v303 = vrot.slane %v302, 4
        %v305 = vshll.u32 %v238, 16
        %v307 = vrot.slane %v305, 5
        %v308 = vsel %vm294, %v303, %v307
        %v309 = vshrl.u32 %v238, 16
        %v311 = vrot.slane %v309, 4
        %v312 = vor.u32 %v311, %v307
        %v313 = vrot.slane %v312, 4
        %v315 = vshll.u32 %v239, 16
        %v317 = vrot.slane %v315, 5
        %v318 = vsel %vm294, %v313, %v317
        %v320 = vshrl.u32 %v240, 16
        %v322 = vrot.slane %v320, 4
        %v323 = vshll.u32 %v240, 16
        %v325 = vrot.slane %v323, 5
        %v326 = vor.u32 %v322, %v325
        %v327 = vrot.slane %v326, 4
        %v329 = vshll.u32 %v241, 16
        %v331 = vrot.slane %v329, 5
        %v332 = vsel %vm294, %v327, %v331
        %v333 = vshrl.u32 %v241, 16
        %v335 = vrot.slane %v333, 4
        %v336 = vor.u32 %v335, %v331
        %v337 = vrot.slane %v336, 4
        %v339 = vshll.u32 %v242, 16
        %v341 = vrot.slane %v339, 5
        %v342 = vsel %vm294, %v337, %v341
        %v344 = vshrl.u32 %v243, 16
        %v346 = vrot.slane %v344, 4
        %v347 = vshll.u32 %v243, 16
        %v349 = vrot.slane %v347, 5
        %v350 = vor.u32 %v346, %v349
        %v351 = vrot.slane %v350, 4
        %v353 = vshll.u32 %v244, 16
        %v355 = vrot.slane %v353, 5
        %v356 = vsel %vm294, %v351, %v355
        %v357 = vshrl.u32 %v244, 16
        %v359 = vrot.slane %v357, 4
        %v360 = vor.u32 %v359, %v355
        %v361 = vrot.slane %v360, 4
        %v363 = vshll.u32 %v245, 16
        %v365 = vrot.slane %v363, 5
        %v366 = vsel %vm294, %v361, %v365
        %v368 = vshrl.u32 %v246, 16
        %v370 = vrot.slane %v368, 4
        %v371 = vshll.u32 %v246, 16
        %v373 = vrot.slane %v371, 5
        %v374 = vor.u32 %v370, %v373
        %v375 = vrot.slane %v374, 4
        %v377 = vshll.u32 %v247, 16
        %v379 = vrot.slane %v377, 5
        %v380 = vsel %vm294, %v375, %v379
        %v381 = vshrl.u32 %v247, 16
        %v383 = vrot.slane %v381, 4
        %v384 = vor.u32 %v383, %v379
        %v385 = vrot.slane %v384, 4
        %v387 = vshll.u32 %v248, 16
        %v389 = vrot.slane %v387, 5
        %v390 = vsel %vm294, %v385, %v389
        %v392 = vshrl.u32 %v249, 16
        %v394 = vrot.slane %v392, 4
        %v395 = vshll.u32 %v249, 16
        %v397 = vrot.slane %v395, 5
        %v398 = vor.u32 %v394, %v397
        %v399 = vrot.slane %v398, 4
        %v401 = vshll.u32 %v250, 16
        %v403 = vrot.slane %v401, 5
        %v404 = vsel %vm294, %v399, %v403
        %v405 = vshrl.u32 %v250, 16
        %v407 = vrot.slane %v405, 4
        %v408 = vor.u32 %v407, %v403
        %v409 = vrot.slane %v408, 4
        %v411 = vshll.u32 %v251, 16
        %v413 = vrot.slane %v411, 5
        %v414 = vsel %vm294, %v409, %v413
        %v416 = vshrl.u32 %v252, 16
        %v418 = vrot.slane %v416, 4
        %v419 = vshll.u32 %v252, 16
        %v421 = vrot.slane %v419, 5
        %v422 = vor.u32 %v418, %v421
        %v423 = vrot.slane %v422, 4
        %v425 = vshll.u32 %v253, 16
        %v427 = vrot.slane %v425, 5
        %v428 = vsel %vm294, %v423, %v427
        %v429 = vshrl.u32 %v253, 16
        %v431 = vrot.slane %v429, 4
        %v432 = vor.u32 %v431, %v427
        %v433 = vrot.slane %v432, 4
        %v435 = vshll.u32 %v254, 16
        %v437 = vrot.slane %v435, 5
        %v438 = vsel %vm294, %v433, %v437
        %v440 = vshrl.u32 %v255, 16
        %v442 = vrot.slane %v440, 4
        %v443 = vshll.u32 %v255, 16
        %v445 = vrot.slane %v443, 5
        %v446 = vor.u32 %v442, %v445
        %v447 = vrot.slane %v446, 4
        %v449 = vshll.u32 %v256, 16
        %v451 = vrot.slane %v449, 5
        %v452 = vsel %vm294, %v447, %v451
        %v453 = vshrl.u32 %v256, 16
        %v455 = vrot.slane %v453, 4
        %v456 = vor.u32 %v455, %v451
        %v457 = vrot.slane %v456, 4
        %v459 = vshll.u32 %v257, 16
        %v461 = vrot.slane %v459, 5
        %v462 = vsel %vm294, %v457, %v461
        %v464 = vshrl.u32 %v258, 16
        %v466 = vrot.slane %v464, 4
        %v467 = vshll.u32 %v258, 16
        %v469 = vrot.slane %v467, 5
        %v470 = vor.u32 %v466, %v469
        %v471 = vrot.slane %v470, 4
        %v473 = vshll.u32 %v259, 16
        %v475 = vrot.slane %v473, 5
        %v476 = vsel %vm294, %v471, %v475
        %v477 = vshrl.u32 %v259, 16
        %v479 = vrot.slane %v477, 4
        %v480 = vor.u32 %v479, %v475
        %v481 = vrot.slane %v480, 4
        %v483 = vshll.u32 %v260, 16
        %v485 = vrot.slane %v483, 5
        %v486 = vsel %vm294, %v481, %v485
        %v488 = vshrl.u32 %v261, 16
        %v490 = vrot.slane %v488, 4
        %v491 = vshll.u32 %v261, 16
        %v493 = vrot.slane %v491, 5
        %v494 = vor.u32 %v490, %v493
        %v495 = vrot.slane %v494, 4
        %v497 = vshll.u32 %v262, 16
        %v499 = vrot.slane %v497, 5
        %v500 = vsel %vm294, %v495, %v499
        %v501 = vshrl.u32 %v262, 16
        %v503 = vrot.slane %v501, 4
        %v504 = vor.u32 %v503, %v499
        %v505 = vrot.slane %v504, 4
        %v507 = vshll.u32 %v263, 16
        %v509 = vrot.slane %v507, 5
        %v510 = vsel %vm294, %v505, %v509
        %v512 = vshrl.u32 %v264, 16
        %v514 = vrot.slane %v512, 4
        %v515 = vshll.u32 %v264, 16
        %v517 = vrot.slane %v515, 5
        %v518 = vor.u32 %v514, %v517
        %v519 = vrot.slane %v518, 4
        %v521 = vshll.u32 %v265, 16
        %v523 = vrot.slane %v521, 5
        %v524 = vsel %vm294, %v519, %v523
        %v525 = vshrl.u32 %v265, 16
        %v527 = vrot.slane %v525, 4
        %v528 = vor.u32 %v527, %v523
        %v529 = vrot.slane %v528, 4
        %v531 = vshll.u32 %v266, 16
        %v533 = vrot.slane %v531, 5
        %v534 = vsel %vm294, %v529, %v533
        %v536 = vshrl.u32 %v267, 16
        %v538 = vrot.slane %v536, 4
        %v539 = vshll.u32 %v267, 16
        %v541 = vrot.slane %v539, 5
        %v542 = vor.u32 %v538, %v541
        %v543 = vrot.slane %v542, 4
        %v545 = vshll.u32 %v268, 16
        %v547 = vrot.slane %v545, 5
        %v548 = vsel %vm294, %v543, %v547
        %v549 = vshrl.u32 %v268, 16
        %v551 = vrot.slane %v549, 4
        %v552 = vor.u32 %v551, %v547
        %v553 = vrot.slane %v552, 4
        %v555 = vshll.u32 %v269, 16
        %v557 = vrot.slane %v555, 5
        %v558 = vsel %vm294, %v553, %v557
        %v560 = vshrl.u32 %v270, 16
        %v562 = vrot.slane %v560, 4
        %v563 = vshll.u32 %v270, 16
        %v565 = vrot.slane %v563, 5
        %v566 = vor.u32 %v562, %v565
        %v567 = vrot.slane %v566, 4
        %v569 = vshll.u32 %v271, 16
        %v571 = vrot.slane %v569, 5
        %v572 = vsel %vm294, %v567, %v571
        %v573 = vshrl.u32 %v271, 16
        %v575 = vrot.slane %v573, 4
        %v576 = vor.u32 %v575, %v571
        %v577 = vrot.slane %v576, 4
        %v579 = vshll.u32 %v272, 16
        %v581 = vrot.slane %v579, 5
        %v582 = vsel %vm294, %v577, %v581
        %v584 = vshrl.u32 %v273, 16
        %v586 = vrot.slane %v584, 4
        %v587 = vshll.u32 %v273, 16
        %v589 = vrot.slane %v587, 5
        %v590 = vor.u32 %v586, %v589
        %v591 = vrot.slane %v590, 4
        %v593 = vshll.u32 %v274, 16
        %v595 = vrot.slane %v593, 5
        %v596 = vsel %vm294, %v591, %v595
        %v597 = vshrl.u32 %v274, 16
        %v599 = vrot.slane %v597, 4
        %v600 = vor.u32 %v599, %v595
        %v601 = vrot.slane %v600, 4
        %v603 = vshll.u32 %v275, 16
        %v605 = vrot.slane %v603, 5
        %v606 = vsel %vm294, %v601, %v605
        %v608 = vshrl.u32 %v276, 16
        %v610 = vrot.slane %v608, 4
        %v611 = vshll.u32 %v276, 16
        %v613 = vrot.slane %v611, 5
        %v614 = vor.u32 %v610, %v613
        %v615 = vrot.slane %v614, 4
        %v617 = vshll.u32 %v277, 16
        %v619 = vrot.slane %v617, 5
        %v620 = vsel %vm294, %v615, %v619
        %v621 = vshrl.u32 %v277, 16
        %v623 = vrot.slane %v621, 4
        %v624 = vor.u32 %v623, %v619
        %v625 = vrot.slane %v624, 4
        %v627 = vshll.u32 %v278, 16
        %v629 = vrot.slane %v627, 5
        %v630 = vsel %vm294, %v625, %v629
        %v632 = vshrl.u32 %v279, 16
        %v634 = vrot.slane %v632, 4
        %v635 = vshll.u32 %v279, 16
        %v637 = vrot.slane %v635, 5
        %v638 = vor.u32 %v634, %v637
        %v639 = vrot.slane %v638, 4
        %v641 = vshll.u32 %v280, 16
        %v643 = vrot.slane %v641, 5
        %v644 = vsel %vm294, %v639, %v643
        %v645 = vshrl.u32 %v280, 16
        %v647 = vrot.slane %v645, 4
        %v648 = vor.u32 %v647, %v643
        %v649 = vrot.slane %v648, 4
        %v651 = vshll.u32 %v281, 16
        %v653 = vrot.slane %v651, 5
        %v654 = vsel %vm294, %v649, %v653
        %v656 = vshrl.u32 %v282, 16
        %v658 = vrot.slane %v656, 4
        %v659 = vshll.u32 %v282, 16
        %v661 = vrot.slane %v659, 5
        %v662 = vor.u32 %v658, %v661
        %v663 = vrot.slane %v662, 4
        %v665 = vshll.u32 %v283, 16
        %v667 = vrot.slane %v665, 5
        %v668 = vsel %vm294, %v663, %v667
        %v669 = vshrl.u32 %v283, 16
        %v671 = vrot.slane %v669, 4
        %v672 = vor.u32 %v671, %v667
        %v673 = vrot.slane %v672, 4
        %v675 = vshll.u32 %v284, 16
        %v677 = vrot.slane %v675, 5
        %v678 = vsel %vm294, %v673, %v677
        %s679 = scalar_lea.vmem [#allocation5], 2
        %v680 = vld [vmem:[%s679] sm:$0x3]
        %v681 = vunpack.c.l.b16 %v308
        %v682 = vunpack.c.l.b16 %v318
        %v683 = vunpack.c.l.b16 %v332
        %v684 = vunpack.c.l.b16 %v342
        %v685 = vunpack.c.l.b16 %v356
        %v686 = vunpack.c.l.b16 %v366
        %v687 = vunpack.c.l.b16 %v380
        %v688 = vunpack.c.l.b16 %v390
        %v689 = vunpack.c.l.b16 %v404
        %v690 = vunpack.c.l.b16 %v414
        %v691 = vunpack.c.l.b16 %v428
        %v692 = vunpack.c.l.b16 %v438
        %v693 = vunpack.c.l.b16 %v452
        %v694 = vunpack.c.l.b16 %v462
        %v695 = vunpack.c.l.b16 %v476
        %v696 = vunpack.c.l.b16 %v486
        %v697 = vunpack.c.l.b16 %v500
        %v698 = vunpack.c.l.b16 %v510
        %v699 = vunpack.c.l.b16 %v524
        %v700 = vunpack.c.l.b16 %v534
        %v701 = vunpack.c.l.b16 %v548
        %v702 = vunpack.c.l.b16 %v558
        %v703 = vunpack.c.l.b16 %v572
        %v704 = vunpack.c.l.b16 %v582
        %v705 = vunpack.c.l.b16 %v596
        %v706 = vunpack.c.l.b16 %v606
        %v707 = vunpack.c.l.b16 %v620
        %v708 = vunpack.c.l.b16 %v630
        %v709 = vunpack.c.l.b16 %v644
        %v710 = vunpack.c.l.b16 %v654
        %v711 = vunpack.c.l.b16 %v668
        %v712 = vunpack.c.l.b16 %v678
        %v713 = vpack.c.b16 %v682, %v681
        %v714 = vpack.c.b16 %v684, %v683
        %v715 = vpack.c.b16 %v686, %v685
        %v716 = vpack.c.b16 %v688, %v687
        %v717 = vpack.c.b16 %v690, %v689
        %v718 = vpack.c.b16 %v692, %v691
        %v719 = vpack.c.b16 %v694, %v693
        %v720 = vpack.c.b16 %v696, %v695
        %v721 = vpack.c.b16 %v698, %v697
        %v722 = vpack.c.b16 %v700, %v699
        %v723 = vpack.c.b16 %v702, %v701
        %v724 = vpack.c.b16 %v704, %v703
        %v725 = vpack.c.b16 %v706, %v705
        %v726 = vpack.c.b16 %v708, %v707
        %v727 = vpack.c.b16 %v710, %v709
        %v728 = vpack.c.b16 %v712, %v711
        %vm729 = vcmask 31744
        %v731 = vsel %vm729, %v713, 0
        %v734 = vsel %vm729, %v714, 0
        %v737 = vsel %vm729, %v715, 0
        %v740 = vsel %vm729, %v716, 0
        %v743 = vsel %vm729, %v717, 0
        %v746 = vsel %vm729, %v718, 0
        %v749 = vsel %vm729, %v719, 0
        %v752 = vsel %vm729, %v720, 0
        %v755 = vsel %vm729, %v721, 0
        %v758 = vsel %vm729, %v722, 0
        %v761 = vsel %vm729, %v723, 0
        %v764 = vsel %vm729, %v724, 0
        %v767 = vsel %vm729, %v725, 0
        %v770 = vsel %vm729, %v726, 0
        %v773 = vsel %vm729, %v727, 0
        %v776 = vsel %vm729, %v728, 0
        %vm778 = vcmask 1041408
        %v780 = vsel %vm778, %v680, 0
        %782 = vmatprep.subr.bf16.mxu0 0
        %783 = vmatpush1.bf16.msra.mxu0 %v780
        %784 = vmatprep.subr.bf16.mxu0 0
        %785 = vmatpush1.bf16.msra.mxu0 0
        %786 = vmatprep.subr.bf16.mxu0 0
        %787 = vmatpush1.bf16.msra.mxu0 0
        %788 = vmatprep.subr.bf16.mxu0 0
        %789 = vmatpush1.bf16.msra.mxu0 0
        %790 = vmatprep.subr.bf16.mxu0 0
        %791 = vmatpush1.bf16.msra.mxu0 0
        %792 = vmatprep.subr.bf16.mxu0 0
        %793 = vmatpush1.bf16.msra.mxu0 0
        %794 = vmatprep.subr.bf16.mxu0 0
        %795 = vmatpush1.bf16.msra.mxu0 0
        %796 = vmatprep.subr.bf16.mxu0 0
        %797 = vmatpush1.bf16.msra.mxu0 0
        %798 = vmatprep.subr.bf16.mxu0 0
        %799 = vmatpush1.bf16.msra.mxu0 0
        %800 = vmatprep.subr.bf16.mxu0 0
        %801 = vmatpush1.bf16.msra.mxu0 0
        %802 = vmatprep.subr.bf16.mxu0 0
        %803 = vmatpush1.bf16.msra.mxu0 0
        %804 = vmatprep.subr.bf16.mxu0 0
        %805 = vmatpush1.bf16.msra.mxu0 0
        %806 = vmatprep.subr.bf16.mxu0 0
        %807 = vmatpush1.bf16.msra.mxu0 0
        %808 = vmatprep.subr.bf16.mxu0 0
        %809 = vmatpush1.bf16.msra.mxu0 0
        %810 = vmatprep.subr.bf16.mxu0 0
        %811 = vmatpush1.bf16.msra.mxu0 0
        %812 = vmatprep.subr.bf16.mxu0 0
        %813 = vmatpush1.bf16.msra.mxu0 0
        %814 = vmatprep.mubr.bf16.mxu0 0
        %815 = vmatmul.mubr.bf16.gmra.mrb[0].mxu0 %v731
        %v816 = vpop.f32.mrb[0].mxu0
        %v817 = vadd.f32 0.0, %v816
        %v818 = vpop.f32.mrb[0].mxu0
        %v819 = vpop.f32.mrb[0].mxu0
        %v820 = vadd.f32 0.0, %v819
        %v821 = vpop.f32.mrb[0].mxu0
        %822 = vmatprep.mubr.bf16.mxu0 0
        %823 = vmatmul.mubr.bf16.gmra.mrb[0].mxu0 %v734
        %v824 = vpop.f32.mrb[0].mxu0
        %v825 = vadd.f32 0.0, %v824
        %v826 = vpop.f32.mrb[0].mxu0
        %v827 = vpop.f32.mrb[0].mxu0
        %v828 = vadd.f32 0.0, %v827
        %v829 = vpop.f32.mrb[0].mxu0
        %830 = vmatprep.mubr.bf16.mxu0 0
        %831 = vmatmul.mubr.bf16.gmra.mrb[0].mxu0 %v737
        %v832 = vpop.f32.mrb[0].mxu0
        %v833 = vadd.f32 0.0, %v832
        %v834 = vpop.f32.mrb[0].mxu0
        %v835 = vpop.f32.mrb[0].mxu0
        %v836 = vadd.f32 0.0, %v835
        %v837 = vpop.f32.mrb[0].mxu0
        %838 = vmatprep.mubr.bf16.mxu0 0
        %839 = vmatmul.mubr.bf16.gmra.mrb[0].mxu0 %v740
        %v840 = vpop.f32.mrb[0].mxu0
        %v841 = vadd.f32 0.0, %v840
        %v842 = vpop.f32.mrb[0].mxu0
        %v843 = vpop.f32.mrb[0].mxu0
        %v844 = vadd.f32 0.0, %v843
        %v845 = vpop.f32.mrb[0].mxu0
        %846 = vmatprep.mubr.bf16.mxu0 0
        %847 = vmatmul.mubr.bf16.gmra.mrb[0].mxu0 %v743
        %v848 = vpop.f32.mrb[0].mxu0
        %v849 = vadd.f32 0.0, %v848
        %v850 = vpop.f32.mrb[0].mxu0
        %v851 = vpop.f32.mrb[0].mxu0
        %v852 = vadd.f32 0.0, %v851
        %v853 = vpop.f32.mrb[0].mxu0
        %854 = vmatprep.mubr.bf16.mxu0 0
        %855 = vmatmul.mubr.bf16.gmra.mrb[0].mxu0 %v746
        %v856 = vpop.f32.mrb[0].mxu0
        %v857 = vadd.f32 0.0, %v856
        %v858 = vpop.f32.mrb[0].mxu0
        %v859 = vpop.f32.mrb[0].mxu0
        %v860 = vadd.f32 0.0, %v859
        %v861 = vpop.f32.mrb[0].mxu0
        %862 = vmatprep.mubr.bf16.mxu0 0
        %863 = vmatmul.mubr.bf16.gmra.mrb[0].mxu0 %v749
        %v864 = vpop.f32.mrb[0].mxu0
        %v865 = vadd.f32 0.0, %v864
        %v866 = vpop.f32.mrb[0].mxu0
        %v867 = vpop.f32.mrb[0].mxu0
        %v868 = vadd.f32 0.0, %v867
        %v869 = vpop.f32.mrb[0].mxu0
        %870 = vmatprep.mubr.bf16.mxu0 0
        %871 = vmatmul.mubr.bf16.gmra.mrb[0].mxu0 %v752
        %v872 = vpop.f32.mrb[0].mxu0
        %v873 = vadd.f32 0.0, %v872
        %v874 = vpop.f32.mrb[0].mxu0
        %v875 = vpop.f32.mrb[0].mxu0
        %v876 = vadd.f32 0.0, %v875
        %v877 = vpop.f32.mrb[0].mxu0
        %878 = vmatprep.mubr.bf16.mxu0 0
        %879 = vmatmul.mubr.bf16.gmra.mrb[0].mxu0 %v755
        %v880 = vpop.f32.mrb[0].mxu0
        %v881 = vadd.f32 0.0, %v880
        %v882 = vpop.f32.mrb[0].mxu0
        %v883 = vpop.f32.mrb[0].mxu0
        %v884 = vadd.f32 0.0, %v883
        %v885 = vpop.f32.mrb[0].mxu0
        %886 = vmatprep.mubr.bf16.mxu0 0
        %887 = vmatmul.mubr.bf16.gmra.mrb[0].mxu0 %v758
        %v888 = vpop.f32.mrb[0].mxu0
        %v889 = vadd.f32 0.0, %v888
        %v890 = vpop.f32.mrb[0].mxu0
        %v891 = vpop.f32.mrb[0].mxu0
        %v892 = vadd.f32 0.0, %v891
        %v893 = vpop.f32.mrb[0].mxu0
        %894 = vmatprep.mubr.bf16.mxu0 0
        %895 = vmatmul.mubr.bf16.gmra.mrb[0].mxu0 %v761
        %v896 = vpop.f32.mrb[0].mxu0
        %v897 = vadd.f32 0.0, %v896
        %v898 = vpop.f32.mrb[0].mxu0
        %v899 = vpop.f32.mrb[0].mxu0
        %v900 = vadd.f32 0.0, %v899
        %v901 = vpop.f32.mrb[0].mxu0
        %902 = vmatprep.mubr.bf16.mxu0 0
        %903 = vmatmul.mubr.bf16.gmra.mrb[0].mxu0 %v764
        %v904 = vpop.f32.mrb[0].mxu0
        %v905 = vadd.f32 0.0, %v904
        %v906 = vpop.f32.mrb[0].mxu0
        %v907 = vpop.f32.mrb[0].mxu0
        %v908 = vadd.f32 0.0, %v907
        %v909 = vpop.f32.mrb[0].mxu0
        %910 = vmatprep.mubr.bf16.mxu0 0
        %911 = vmatmul.mubr.bf16.gmra.mrb[0].mxu0 %v767
        %v912 = vpop.f32.mrb[0].mxu0
        %v913 = vadd.f32 0.0, %v912
        %v914 = vpop.f32.mrb[0].mxu0
        %v915 = vpop.f32.mrb[0].mxu0
        %v916 = vadd.f32 0.0, %v915
        %v917 = vpop.f32.mrb[0].mxu0
        %918 = vmatprep.mubr.bf16.mxu0 0
        %919 = vmatmul.mubr.bf16.gmra.mrb[0].mxu0 %v770
        %v920 = vpop.f32.mrb[0].mxu0
        %v921 = vadd.f32 0.0, %v920
        %v922 = vpop.f32.mrb[0].mxu0
        %v923 = vpop.f32.mrb[0].mxu0
        %v924 = vadd.f32 0.0, %v923
        %v925 = vpop.f32.mrb[0].mxu0
        %926 = vmatprep.mubr.bf16.mxu0 0
        %927 = vmatmul.mubr.bf16.gmra.mrb[0].mxu0 %v773
        %v928 = vpop.f32.mrb[0].mxu0
        %v929 = vadd.f32 0.0, %v928
        %v930 = vpop.f32.mrb[0].mxu0
        %v931 = vpop.f32.mrb[0].mxu0
        %v932 = vadd.f32 0.0, %v931
        %v933 = vpop.f32.mrb[0].mxu0
        %934 = vmatprep.mubr.bf16.mxu0 0
        %935 = vmatmul.mubr.bf16.gmra.mrb[0].mxu0 %v776
        %v936 = vpop.f32.mrb[0].mxu0
        %v937 = vadd.f32 0.0, %v936
        %v938 = vpop.f32.mrb[0].mxu0
        %v939 = vpop.f32.mrb[0].mxu0
        %v940 = vadd.f32 0.0, %v939
        %v941 = vpop.f32.mrb[0].mxu0
        %942 = vdwg.mxu0
        %v975 = vunpack.c.l.b16 %v237
        %v976 = vunpack.c.l.b16 %v238
        %v977 = vunpack.c.l.b16 %v240
        %v978 = vunpack.c.l.b16 %v241
        %v979 = vunpack.c.l.b16 %v243
        %v980 = vunpack.c.l.b16 %v244
        %v981 = vunpack.c.l.b16 %v246
        %v982 = vunpack.c.l.b16 %v247
        %v983 = vunpack.c.l.b16 %v249
        %v984 = vunpack.c.l.b16 %v250
        %v985 = vunpack.c.l.b16 %v252
        %v986 = vunpack.c.l.b16 %v253
        %v987 = vunpack.c.l.b16 %v255
        %v988 = vunpack.c.l.b16 %v256
        %v989 = vunpack.c.l.b16 %v258
        %v990 = vunpack.c.l.b16 %v259
        %v991 = vunpack.c.l.b16 %v261
        %v992 = vunpack.c.l.b16 %v262
        %v993 = vunpack.c.l.b16 %v264
        %v994 = vunpack.c.l.b16 %v265
        %v995 = vunpack.c.l.b16 %v267
        %v996 = vunpack.c.l.b16 %v268
        %v997 = vunpack.c.l.b16 %v270
        %v998 = vunpack.c.l.b16 %v271
        %v999 = vunpack.c.l.b16 %v273
        %v1000 = vunpack.c.l.b16 %v274
        %v1001 = vunpack.c.l.b16 %v276
        %v1002 = vunpack.c.l.b16 %v277
        %v1003 = vunpack.c.l.b16 %v279
        %v1004 = vunpack.c.l.b16 %v280
        %v1005 = vunpack.c.l.b16 %v282
        %v1006 = vunpack.c.l.b16 %v283
        %v1007 = vpack.c.b16 %v976, %v975
        %v1008 = vpack.c.b16 %v978, %v977
        %v1009 = vpack.c.b16 %v980, %v979
        %v1010 = vpack.c.b16 %v982, %v981
        %v1011 = vpack.c.b16 %v984, %v983
        %v1012 = vpack.c.b16 %v986, %v985
        %v1013 = vpack.c.b16 %v988, %v987
        %v1014 = vpack.c.b16 %v990, %v989
        %v1015 = vpack.c.b16 %v992, %v991
        %v1016 = vpack.c.b16 %v994, %v993
        %v1017 = vpack.c.b16 %v996, %v995
        %v1018 = vpack.c.b16 %v998, %v997
        %v1019 = vpack.c.b16 %v1000, %v999
        %v1020 = vpack.c.b16 %v1002, %v1001
        %v1021 = vpack.c.b16 %v1004, %v1003
        %v1022 = vpack.c.b16 %v1006, %v1005
        %v1024 = vsel %vm729, %v1007, 0
        %v1027 = vsel %vm729, %v1008, 0
        %v1030 = vsel %vm729, %v1009, 0
        %v1033 = vsel %vm729, %v1010, 0
        %v1036 = vsel %vm729, %v1011, 0
        %v1039 = vsel %vm729, %v1012, 0
        %v1042 = vsel %vm729, %v1013, 0
        %v1045 = vsel %vm729, %v1014, 0
        %v1048 = vsel %vm729, %v1015, 0
        %v1051 = vsel %vm729, %v1016, 0
        %v1054 = vsel %vm729, %v1017, 0
        %v1057 = vsel %vm729, %v1018, 0
        %v1060 = vsel %vm729, %v1019, 0
        %v1063 = vsel %vm729, %v1020, 0
        %v1066 = vsel %vm729, %v1021, 0
        %v1069 = vsel %vm729, %v1022, 0
        %v1072 = vsel %vm778, %v291, 0
        %1074 = vmatprep.subr.bf16.mxu0 0
        %1075 = vmatpush1.bf16.msra.mxu0 %v1072
        %1076 = vmatprep.subr.bf16.mxu0 0
        %1077 = vmatpush1.bf16.msra.mxu0 0
        %1078 = vmatprep.subr.bf16.mxu0 0
        %1079 = vmatpush1.bf16.msra.mxu0 0
        %1080 = vmatprep.subr.bf16.mxu0 0
        %1081 = vmatpush1.bf16.msra.mxu0 0
        %1082 = vmatprep.subr.bf16.mxu0 0
        %1083 = vmatpush1.bf16.msra.mxu0 0
        %1084 = vmatprep.subr.bf16.mxu0 0
        %1085 = vmatpush1.bf16.msra.mxu0 0
        %1086 = vmatprep.subr.bf16.mxu0 0
        %1087 = vmatpush1.bf16.msra.mxu0 0
        %1088 = vmatprep.subr.bf16.mxu0 0
        %1089 = vmatpush1.bf16.msra.mxu0 0
        %1090 = vmatprep.subr.bf16.mxu0 0
        %1091 = vmatpush1.bf16.msra.mxu0 0
        %1092 = vmatprep.subr.bf16.mxu0 0
        %1093 = vmatpush1.bf16.msra.mxu0 0
        %1094 = vmatprep.subr.bf16.mxu0 0
        %1095 = vmatpush1.bf16.msra.mxu0 0
        %1096 = vmatprep.subr.bf16.mxu0 0
        %1097 = vmatpush1.bf16.msra.mxu0 0
        %1098 = vmatprep.subr.bf16.mxu0 0
        %1099 = vmatpush1.bf16.msra.mxu0 0
        %1100 = vmatprep.subr.bf16.mxu0 0
        %1101 = vmatpush1.bf16.msra.mxu0 0
        %1102 = vmatprep.subr.bf16.mxu0 0
        %1103 = vmatpush1.bf16.msra.mxu0 0
        %1104 = vmatprep.subr.bf16.mxu0 0
        %1105 = vmatpush1.bf16.msra.mxu0 0
        %1106 = vmatprep.mubr.bf16.mxu0 0
        %1107 = vmatmul.mubr.bf16.gmra.mrb[0].mxu0 %v1024
        %v1108 = vpop.f32.mrb[0].mxu0
        %v1109 = vadd.f32 %v817, %v1108
        %v1110 = vpop.f32.mrb[0].mxu0
        %v1111 = vpop.f32.mrb[0].mxu0
        %v1112 = vadd.f32 %v820, %v1111
        %v1113 = vpop.f32.mrb[0].mxu0
        %1114 = vmatprep.mubr.bf16.mxu0 0
        %1115 = vmatmul.mubr.bf16.gmra.mrb[0].mxu0 %v1027
        %v1116 = vpop.f32.mrb[0].mxu0
        %v1117 = vadd.f32 %v825, %v1116
        %v1118 = vpop.f32.mrb[0].mxu0
        %v1119 = vpop.f32.mrb[0].mxu0
        %v1120 = vadd.f32 %v828, %v1119
        %v1121 = vpop.f32.mrb[0].mxu0
        %1122 = vmatprep.mubr.bf16.mxu0 0
        %1123 = vmatmul.mubr.bf16.gmra.mrb[0].mxu0 %v1030
        %v1124 = vpop.f32.mrb[0].mxu0
        %v1125 = vadd.f32 %v833, %v1124
        %v1126 = vpop.f32.mrb[0].mxu0
        %v1127 = vpop.f32.mrb[0].mxu0
        %v1128 = vadd.f32 %v836, %v1127
        %v1129 = vpop.f32.mrb[0].mxu0
        %1130 = vmatprep.mubr.bf16.mxu0 0
        %1131 = vmatmul.mubr.bf16.gmra.mrb[0].mxu0 %v1033
        %v1132 = vpop.f32.mrb[0].mxu0
        %v1133 = vadd.f32 %v841, %v1132
        %v1134 = vpop.f32.mrb[0].mxu0
        %v1135 = vpop.f32.mrb[0].mxu0
        %v1136 = vadd.f32 %v844, %v1135
        %v1137 = vpop.f32.mrb[0].mxu0
        %1138 = vmatprep.mubr.bf16.mxu0 0
        %1139 = vmatmul.mubr.bf16.gmra.mrb[0].mxu0 %v1036
        %v1140 = vpop.f32.mrb[0].mxu0
        %v1141 = vadd.f32 %v849, %v1140
        %v1142 = vpop.f32.mrb[0].mxu0
        %v1143 = vpop.f32.mrb[0].mxu0
        %v1144 = vadd.f32 %v852, %v1143
        %v1145 = vpop.f32.mrb[0].mxu0
        %1146 = vmatprep.mubr.bf16.mxu0 0
        %1147 = vmatmul.mubr.bf16.gmra.mrb[0].mxu0 %v1039
        %v1148 = vpop.f32.mrb[0].mxu0
        %v1149 = vadd.f32 %v857, %v1148
        %v1150 = vpop.f32.mrb[0].mxu0
        %v1151 = vpop.f32.mrb[0].mxu0
        %v1152 = vadd.f32 %v860, %v1151
        %v1153 = vpop.f32.mrb[0].mxu0
        %1154 = vmatprep.mubr.bf16.mxu0 0
        %1155 = vmatmul.mubr.bf16.gmra.mrb[0].mxu0 %v1042
        %v1156 = vpop.f32.mrb[0].mxu0
        %v1157 = vadd.f32 %v865, %v1156
        %v1158 = vpop.f32.mrb[0].mxu0
        %v1159 = vpop.f32.mrb[0].mxu0
        %v1160 = vadd.f32 %v868, %v1159
        %v1161 = vpop.f32.mrb[0].mxu0
        %1162 = vmatprep.mubr.bf16.mxu0 0
        %1163 = vmatmul.mubr.bf16.gmra.mrb[0].mxu0 %v1045
        %v1164 = vpop.f32.mrb[0].mxu0
        %v1165 = vadd.f32 %v873, %v1164
        %v1166 = vpop.f32.mrb[0].mxu0
        %v1167 = vpop.f32.mrb[0].mxu0
        %v1168 = vadd.f32 %v876, %v1167
        %v1169 = vpop.f32.mrb[0].mxu0
        %1170 = vmatprep.mubr.bf16.mxu0 0
        %1171 = vmatmul.mubr.bf16.gmra.mrb[0].mxu0 %v1048
        %v1172 = vpop.f32.mrb[0].mxu0
        %v1173 = vadd.f32 %v881, %v1172
        %v1174 = vpop.f32.mrb[0].mxu0
        %v1175 = vpop.f32.mrb[0].mxu0
        %v1176 = vadd.f32 %v884, %v1175
        %v1177 = vpop.f32.mrb[0].mxu0
        %1178 = vmatprep.mubr.bf16.mxu0 0
        %1179 = vmatmul.mubr.bf16.gmra.mrb[0].mxu0 %v1051
        %v1180 = vpop.f32.mrb[0].mxu0
        %v1181 = vadd.f32 %v889, %v1180
        %v1182 = vpop.f32.mrb[0].mxu0
        %v1183 = vpop.f32.mrb[0].mxu0
        %v1184 = vadd.f32 %v892, %v1183
        %v1185 = vpop.f32.mrb[0].mxu0
        %1186 = vmatprep.mubr.bf16.mxu0 0
        %1187 = vmatmul.mubr.bf16.gmra.mrb[0].mxu0 %v1054
        %v1188 = vpop.f32.mrb[0].mxu0
        %v1189 = vadd.f32 %v897, %v1188
        %v1190 = vpop.f32.mrb[0].mxu0
        %v1191 = vpop.f32.mrb[0].mxu0
        %v1192 = vadd.f32 %v900, %v1191
        %v1193 = vpop.f32.mrb[0].mxu0
        %1194 = vmatprep.mubr.bf16.mxu0 0
        %1195 = vmatmul.mubr.bf16.gmra.mrb[0].mxu0 %v1057
        %v1196 = vpop.f32.mrb[0].mxu0
        %v1197 = vadd.f32 %v905, %v1196
        %v1198 = vpop.f32.mrb[0].mxu0
        %v1199 = vpop.f32.mrb[0].mxu0
        %v1200 = vadd.f32 %v908, %v1199
        %v1201 = vpop.f32.mrb[0].mxu0
        %1202 = vmatprep.mubr.bf16.mxu0 0
        %1203 = vmatmul.mubr.bf16.gmra.mrb[0].mxu0 %v1060
        %v1204 = vpop.f32.mrb[0].mxu0
        %v1205 = vadd.f32 %v913, %v1204
        %v1206 = vpop.f32.mrb[0].mxu0
        %v1207 = vpop.f32.mrb[0].mxu0
        %v1208 = vadd.f32 %v916, %v1207
        %v1209 = vpop.f32.mrb[0].mxu0
        %1210 = vmatprep.mubr.bf16.mxu0 0
        %1211 = vmatmul.mubr.bf16.gmra.mrb[0].mxu0 %v1063
        %v1212 = vpop.f32.mrb[0].mxu0
        %v1213 = vadd.f32 %v921, %v1212
        %v1214 = vpop.f32.mrb[0].mxu0
        %v1215 = vpop.f32.mrb[0].mxu0
        %v1216 = vadd.f32 %v924, %v1215
        %v1217 = vpop.f32.mrb[0].mxu0
        %1218 = vmatprep.mubr.bf16.mxu0 0
        %1219 = vmatmul.mubr.bf16.gmra.mrb[0].mxu0 %v1066
        %v1220 = vpop.f32.mrb[0].mxu0
        %v1221 = vadd.f32 %v929, %v1220
        %v1222 = vpop.f32.mrb[0].mxu0
        %v1223 = vpop.f32.mrb[0].mxu0
        %v1224 = vadd.f32 %v932, %v1223
        %v1225 = vpop.f32.mrb[0].mxu0
        %1226 = vmatprep.mubr.bf16.mxu0 0
        %1227 = vmatmul.mubr.bf16.gmra.mrb[0].mxu0 %v1069
        %v1228 = vpop.f32.mrb[0].mxu0
        %v1229 = vadd.f32 %v937, %v1228
        %v1230 = vpop.f32.mrb[0].mxu0
        %v1231 = vpop.f32.mrb[0].mxu0
        %v1232 = vadd.f32 %v940, %v1231
        %v1233 = vpop.f32.mrb[0].mxu0
        %1234 = vdwg.mxu0
        %vm1251 = vcmask 1042432
        %vm1252 = vcmask 1046532
        %vm1253 = vmor %vm1251, %vm1252
        %v1254 = vrot.slane %v237, 5
        %v1255 = vrot.slane %v1254, 4
        %v1256 = vrot.slane %v238, 5
        %v1257 = vsel %vm1253, %v1255, %v1256
        %v1258 = vrot.slane %v1256, 4
        %v1259 = vrot.slane %v239, 5
        %v1260 = vsel %vm1253, %v1258, %v1259
        %v1261 = vrot.slane %v240, 5
        %v1262 = vrot.slane %v1261, 4
        %v1263 = vrot.slane %v241, 5
        %v1264 = vsel %vm1253, %v1262, %v1263
        %v1265 = vrot.slane %v1263, 4
        %v1266 = vrot.slane %v242, 5
        %v1267 = vsel %vm1253, %v1265, %v1266
        %v1268 = vrot.slane %v243, 5
        %v1269 = vrot.slane %v1268, 4
        %v1270 = vrot.slane %v244, 5
        %v1271 = vsel %vm1253, %v1269, %v1270
        %v1272 = vrot.slane %v1270, 4
        %v1273 = vrot.slane %v245, 5
        %v1274 = vsel %vm1253, %v1272, %v1273
        %v1275 = vrot.slane %v246, 5
        %v1276 = vrot.slane %v1275, 4
        %v1277 = vrot.slane %v247, 5
        %v1278 = vsel %vm1253, %v1276, %v1277
        %v1279 = vrot.slane %v1277, 4
        %v1280 = vrot.slane %v248, 5
        %v1281 = vsel %vm1253, %v1279, %v1280
        %v1282 = vrot.slane %v249, 5
        %v1283 = vrot.slane %v1282, 4
        %v1284 = vrot.slane %v250, 5
        %v1285 = vsel %vm1253, %v1283, %v1284
        %v1286 = vrot.slane %v1284, 4
        %v1287 = vrot.slane %v251, 5
        %v1288 = vsel %vm1253, %v1286, %v1287
        %v1289 = vrot.slane %v252, 5
        %v1290 = vrot.slane %v1289, 4
        %v1291 = vrot.slane %v253, 5
        %v1292 = vsel %vm1253, %v1290, %v1291
        %v1293 = vrot.slane %v1291, 4
        %v1294 = vrot.slane %v254, 5
        %v1295 = vsel %vm1253, %v1293, %v1294
        %v1296 = vrot.slane %v255, 5
        %v1297 = vrot.slane %v1296, 4
        %v1298 = vrot.slane %v256, 5
        %v1299 = vsel %vm1253, %v1297, %v1298
        %v1300 = vrot.slane %v1298, 4
        %v1301 = vrot.slane %v257, 5
        %v1302 = vsel %vm1253, %v1300, %v1301
        %v1303 = vrot.slane %v258, 5
        %v1304 = vrot.slane %v1303, 4
        %v1305 = vrot.slane %v259, 5
        %v1306 = vsel %vm1253, %v1304, %v1305
        %v1307 = vrot.slane %v1305, 4
        %v1308 = vrot.slane %v260, 5
        %v1309 = vsel %vm1253, %v1307, %v1308
        %v1310 = vrot.slane %v261, 5
        %v1311 = vrot.slane %v1310, 4
        %v1312 = vrot.slane %v262, 5
        %v1313 = vsel %vm1253, %v1311, %v1312
        %v1314 = vrot.slane %v1312, 4
        %v1315 = vrot.slane %v263, 5
        %v1316 = vsel %vm1253, %v1314, %v1315
        %v1317 = vrot.slane %v264, 5
        %v1318 = vrot.slane %v1317, 4
        %v1319 = vrot.slane %v265, 5
        %v1320 = vsel %vm1253, %v1318, %v1319
        %v1321 = vrot.slane %v1319, 4
        %v1322 = vrot.slane %v266, 5
        %v1323 = vsel %vm1253, %v1321, %v1322
        %v1324 = vrot.slane %v267, 5
        %v1325 = vrot.slane %v1324, 4
        %v1326 = vrot.slane %v268, 5
        %v1327 = vsel %vm1253, %v1325, %v1326
        %v1328 = vrot.slane %v1326, 4
        %v1329 = vrot.slane %v269, 5
        %v1330 = vsel %vm1253, %v1328, %v1329
        %v1331 = vrot.slane %v270, 5
        %v1332 = vrot.slane %v1331, 4
        %v1333 = vrot.slane %v271, 5
        %v1334 = vsel %vm1253, %v1332, %v1333
        %v1335 = vrot.slane %v1333, 4
        %v1336 = vrot.slane %v272, 5
        %v1337 = vsel %vm1253, %v1335, %v1336
        %v1338 = vrot.slane %v273, 5
        %v1339 = vrot.slane %v1338, 4
        %v1340 = vrot.slane %v274, 5
        %v1341 = vsel %vm1253, %v1339, %v1340
        %v1342 = vrot.slane %v1340, 4
        %v1343 = vrot.slane %v275, 5
        %v1344 = vsel %vm1253, %v1342, %v1343
        %v1345 = vrot.slane %v276, 5
        %v1346 = vrot.slane %v1345, 4
        %v1347 = vrot.slane %v277, 5
        %v1348 = vsel %vm1253, %v1346, %v1347
        %v1349 = vrot.slane %v1347, 4
        %v1350 = vrot.slane %v278, 5
        %v1351 = vsel %vm1253, %v1349, %v1350
        %v1352 = vrot.slane %v279, 5
        %v1353 = vrot.slane %v1352, 4
        %v1354 = vrot.slane %v280, 5
        %v1355 = vsel %vm1253, %v1353, %v1354
        %v1356 = vrot.slane %v1354, 4
        %v1357 = vrot.slane %v281, 5
        %v1358 = vsel %vm1253, %v1356, %v1357
        %v1359 = vrot.slane %v282, 5
        %v1360 = vrot.slane %v1359, 4
        %v1361 = vrot.slane %v283, 5
        %v1362 = vsel %vm1253, %v1360, %v1361
        %v1363 = vrot.slane %v1361, 4
        %v1364 = vrot.slane %v284, 5
        %v1365 = vsel %vm1253, %v1363, %v1364
        %s1366 = scalar_lea.vmem [#allocation5], 4
        %v1367 = vld [vmem:[%s1366] sm:$0x3]
        %v1368 = vunpack.c.l.b16 %v1257
        %v1369 = vunpack.c.l.b16 %v1260
        %v1370 = vunpack.c.l.b16 %v1264
        %v1371 = vunpack.c.l.b16 %v1267
        %v1372 = vunpack.c.l.b16 %v1271
        %v1373 = vunpack.c.l.b16 %v1274
        %v1374 = vunpack.c.l.b16 %v1278
        %v1375 = vunpack.c.l.b16 %v1281
        %v1376 = vunpack.c.l.b16 %v1285
        %v1377 = vunpack.c.l.b16 %v1288
        %v1378 = vunpack.c.l.b16 %v1292
        %v1379 = vunpack.c.l.b16 %v1295
        %v1380 = vunpack.c.l.b16 %v1299
        %v1381 = vunpack.c.l.b16 %v1302
        %v1382 = vunpack.c.l.b16 %v1306
        %v1383 = vunpack.c.l.b16 %v1309
        %v1384 = vunpack.c.l.b16 %v1313
        %v1385 = vunpack.c.l.b16 %v1316
        %v1386 = vunpack.c.l.b16 %v1320
        %v1387 = vunpack.c.l.b16 %v1323
        %v1388 = vunpack.c.l.b16 %v1327
        %v1389 = vunpack.c.l.b16 %v1330
        %v1390 = vunpack.c.l.b16 %v1334
        %v1391 = vunpack.c.l.b16 %v1337
        %v1392 = vunpack.c.l.b16 %v1341
        %v1393 = vunpack.c.l.b16 %v1344
        %v1394 = vunpack.c.l.b16 %v1348
        %v1395 = vunpack.c.l.b16 %v1351
        %v1396 = vunpack.c.l.b16 %v1355
        %v1397 = vunpack.c.l.b16 %v1358
        %v1398 = vunpack.c.l.b16 %v1362
        %v1399 = vunpack.c.l.b16 %v1365
        %v1400 = vpack.c.b16 %v1369, %v1368
        %v1401 = vpack.c.b16 %v1371, %v1370
        %v1402 = vpack.c.b16 %v1373, %v1372
        %v1403 = vpack.c.b16 %v1375, %v1374
        %v1404 = vpack.c.b16 %v1377, %v1376
        %v1405 = vpack.c.b16 %v1379, %v1378
        %v1406 = vpack.c.b16 %v1381, %v1380
        %v1407 = vpack.c.b16 %v1383, %v1382
        %v1408 = vpack.c.b16 %v1385, %v1384
        %v1409 = vpack.c.b16 %v1387, %v1386
        %v1410 = vpack.c.b16 %v1389, %v1388
        %v1411 = vpack.c.b16 %v1391, %v1390
        %v1412 = vpack.c.b16 %v1393, %v1392
        %v1413 = vpack.c.b16 %v1395, %v1394
        %v1414 = vpack.c.b16 %v1397, %v1396
        %v1415 = vpack.c.b16 %v1399, %v1398
        %v1417 = vsel %vm729, %v1400, 0
        %v1420 = vsel %vm729, %v1401, 0
        %v1423 = vsel %vm729, %v1402, 0
        %v1426 = vsel %vm729, %v1403, 0
        %v1429 = vsel %vm729, %v1404, 0
        %v1432 = vsel %vm729, %v1405, 0
        %v1435 = vsel %vm729, %v1406, 0
        %v1438 = vsel %vm729, %v1407, 0
        %v1441 = vsel %vm729, %v1408, 0
        %v1444 = vsel %vm729, %v1409, 0
        %v1447 = vsel %vm729, %v1410, 0
        %v1450 = vsel %vm729, %v1411, 0
        %v1453 = vsel %vm729, %v1412, 0
        %v1456 = vsel %vm729, %v1413, 0
        %v1459 = vsel %vm729, %v1414, 0
        %v1462 = vsel %vm729, %v1415, 0
        %v1465 = vsel %vm778, %v1367, 0
        %1467 = vmatprep.subr.bf16.mxu0 0
        %1468 = vmatpush1.bf16.msra.mxu0 %v1465
        %1469 = vmatprep.subr.bf16.mxu0 0
        %1470 = vmatpush1.bf16.msra.mxu0 0
        %1471 = vmatprep.subr.bf16.mxu0 0
        %1472 = vmatpush1.bf16.msra.mxu0 0
        %1473 = vmatprep.subr.bf16.mxu0 0
        %1474 = vmatpush1.bf16.msra.mxu0 0
        %1475 = vmatprep.subr.bf16.mxu0 0
        %1476 = vmatpush1.bf16.msra.mxu0 0
        %1477 = vmatprep.subr.bf16.mxu0 0
        %1478 = vmatpush1.bf16.msra.mxu0 0
        %1479 = vmatprep.subr.bf16.mxu0 0
        %1480 = vmatpush1.bf16.msra.mxu0 0
        %1481 = vmatprep.subr.bf16.mxu0 0
        %1482 = vmatpush1.bf16.msra.mxu0 0
        %1483 = vmatprep.subr.bf16.mxu0 0
        %1484 = vmatpush1.bf16.msra.mxu0 0
        %1485 = vmatprep.subr.bf16.mxu0 0
        %1486 = vmatpush1.bf16.msra.mxu0 0
        %1487 = vmatprep.subr.bf16.mxu0 0
        %1488 = vmatpush1.bf16.msra.mxu0 0
        %1489 = vmatprep.subr.bf16.mxu0 0
        %1490 = vmatpush1.bf16.msra.mxu0 0
        %1491 = vmatprep.subr.bf16.mxu0 0
        %1492 = vmatpush1.bf16.msra.mxu0 0
        %1493 = vmatprep.subr.bf16.mxu0 0
        %1494 = vmatpush1.bf16.msra.mxu0 0
        %1495 = vmatprep.subr.bf16.mxu0 0
        %1496 = vmatpush1.bf16.msra.mxu0 0
        %1497 = vmatprep.subr.bf16.mxu0 0
        %1498 = vmatpush1.bf16.msra.mxu0 0
        %1499 = vmatprep.mubr.bf16.mxu0 0
        %1500 = vmatmul.mubr.bf16.gmra.mrb[0].mxu0 %v1417
        %v1501 = vpop.f32.mrb[0].mxu0
        %v1502 = vadd.f32 0.0, %v1501
        %v1503 = vpop.f32.mrb[0].mxu0
        %v1504 = vpop.f32.mrb[0].mxu0
        %v1505 = vadd.f32 0.0, %v1504
        %v1506 = vpop.f32.mrb[0].mxu0
        %1507 = vmatprep.mubr.bf16.mxu0 0
        %1508 = vmatmul.mubr.bf16.gmra.mrb[0].mxu0 %v1420
        %v1509 = vpop.f32.mrb[0].mxu0
        %v1510 = vadd.f32 0.0, %v1509
        %v1511 = vpop.f32.mrb[0].mxu0
        %v1512 = vpop.f32.mrb[0].mxu0
        %v1513 = vadd.f32 0.0, %v1512
        %v1514 = vpop.f32.mrb[0].mxu0
        %1515 = vmatprep.mubr.bf16.mxu0 0
        %1516 = vmatmul.mubr.bf16.gmra.mrb[0].mxu0 %v1423
        %v1517 = vpop.f32.mrb[0].mxu0
        %v1518 = vadd.f32 0.0, %v1517
        %v1519 = vpop.f32.mrb[0].mxu0
        %v1520 = vpop.f32.mrb[0].mxu0
        %v1521 = vadd.f32 0.0, %v1520
        %v1522 = vpop.f32.mrb[0].mxu0
        %1523 = vmatprep.mubr.bf16.mxu0 0
        %1524 = vmatmul.mubr.bf16.gmra.mrb[0].mxu0 %v1426
        %v1525 = vpop.f32.mrb[0].mxu0
        %v1526 = vadd.f32 0.0, %v1525
        %v1527 = vpop.f32.mrb[0].mxu0
        %v1528 = vpop.f32.mrb[0].mxu0
        %v1529 = vadd.f32 0.0, %v1528
        %v1530 = vpop.f32.mrb[0].mxu0
        %1531 = vmatprep.mubr.bf16.mxu0 0
        %1532 = vmatmul.mubr.bf16.gmra.mrb[0].mxu0 %v1429
        %v1533 = vpop.f32.mrb[0].mxu0
        %v1534 = vadd.f32 0.0, %v1533
        %v1535 = vpop.f32.mrb[0].mxu0
        %v1536 = vpop.f32.mrb[0].mxu0
        %v1537 = vadd.f32 0.0, %v1536
        %v1538 = vpop.f32.mrb[0].mxu0
        %1539 = vmatprep.mubr.bf16.mxu0 0
        %1540 = vmatmul.mubr.bf16.gmra.mrb[0].mxu0 %v1432
        %v1541 = vpop.f32.mrb[0].mxu0
        %v1542 = vadd.f32 0.0, %v1541
        %v1543 = vpop.f32.mrb[0].mxu0
        %v1544 = vpop.f32.mrb[0].mxu0
        %v1545 = vadd.f32 0.0, %v1544
        %v1546 = vpop.f32.mrb[0].mxu0
        %1547 = vmatprep.mubr.bf16.mxu0 0
        %1548 = vmatmul.mubr.bf16.gmra.mrb[0].mxu0 %v1435
        %v1549 = vpop.f32.mrb[0].mxu0
        %v1550 = vadd.f32 0.0, %v1549
        %v1551 = vpop.f32.mrb[0].mxu0
        %v1552 = vpop.f32.mrb[0].mxu0
        %v1553 = vadd.f32 0.0, %v1552
        %v1554 = vpop.f32.mrb[0].mxu0
        %1555 = vmatprep.mubr.bf16.mxu0 0
        %1556 = vmatmul.mubr.bf16.gmra.mrb[0].mxu0 %v1438
        %v1557 = vpop.f32.mrb[0].mxu0
        %v1558 = vadd.f32 0.0, %v1557
        %v1559 = vpop.f32.mrb[0].mxu0
        %v1560 = vpop.f32.mrb[0].mxu0
        %v1561 = vadd.f32 0.0, %v1560
        %v1562 = vpop.f32.mrb[0].mxu0
        %1563 = vmatprep.mubr.bf16.mxu0 0
        %1564 = vmatmul.mubr.bf16.gmra.mrb[0].mxu0 %v1441
        %v1565 = vpop.f32.mrb[0].mxu0
        %v1566 = vadd.f32 0.0, %v1565
        %v1567 = vpop.f32.mrb[0].mxu0
        %v1568 = vpop.f32.mrb[0].mxu0
        %v1569 = vadd.f32 0.0, %v1568
        %v1570 = vpop.f32.mrb[0].mxu0
        %1571 = vmatprep.mubr.bf16.mxu0 0
        %1572 = vmatmul.mubr.bf16.gmra.mrb[0].mxu0 %v1444
        %v1573 = vpop.f32.mrb[0].mxu0
        %v1574 = vadd.f32 0.0, %v1573
        %v1575 = vpop.f32.mrb[0].mxu0
        %v1576 = vpop.f32.mrb[0].mxu0
        %v1577 = vadd.f32 0.0, %v1576
        %v1578 = vpop.f32.mrb[0].mxu0
        %1579 = vmatprep.mubr.bf16.mxu0 0
        %1580 = vmatmul.mubr.bf16.gmra.mrb[0].mxu0 %v1447
        %v1581 = vpop.f32.mrb[0].mxu0
        %v1582 = vadd.f32 0.0, %v1581
        %v1583 = vpop.f32.mrb[0].mxu0
        %v1584 = vpop.f32.mrb[0].mxu0
        %v1585 = vadd.f32 0.0, %v1584
        %v1586 = vpop.f32.mrb[0].mxu0
        %1587 = vmatprep.mubr.bf16.mxu0 0
        %1588 = vmatmul.mubr.bf16.gmra.mrb[0].mxu0 %v1450
        %v1589 = vpop.f32.mrb[0].mxu0
        %v1590 = vadd.f32 0.0, %v1589
        %v1591 = vpop.f32.mrb[0].mxu0
        %v1592 = vpop.f32.mrb[0].mxu0
        %v1593 = vadd.f32 0.0, %v1592
        %v1594 = vpop.f32.mrb[0].mxu0
        %1595 = vmatprep.mubr.bf16.mxu0 0
        %1596 = vmatmul.mubr.bf16.gmra.mrb[0].mxu0 %v1453
        %v1597 = vpop.f32.mrb[0].mxu0
        %v1598 = vadd.f32 0.0, %v1597
        %v1599 = vpop.f32.mrb[0].mxu0
        %v1600 = vpop.f32.mrb[0].mxu0
        %v1601 = vadd.f32 0.0, %v1600
        %v1602 = vpop.f32.mrb[0].mxu0
        %1603 = vmatprep.mubr.bf16.mxu0 0
        %1604 = vmatmul.mubr.bf16.gmra.mrb[0].mxu0 %v1456
        %v1605 = vpop.f32.mrb[0].mxu0
        %v1606 = vadd.f32 0.0, %v1605
        %v1607 = vpop.f32.mrb[0].mxu0
        %v1608 = vpop.f32.mrb[0].mxu0
        %v1609 = vadd.f32 0.0, %v1608
        %v1610 = vpop.f32.mrb[0].mxu0
        %1611 = vmatprep.mubr.bf16.mxu0 0
        %1612 = vmatmul.mubr.bf16.gmra.mrb[0].mxu0 %v1459
        %v1613 = vpop.f32.mrb[0].mxu0
        %v1614 = vadd.f32 0.0, %v1613
        %v1615 = vpop.f32.mrb[0].mxu0
        %v1616 = vpop.f32.mrb[0].mxu0
        %v1617 = vadd.f32 0.0, %v1616
        %v1618 = vpop.f32.mrb[0].mxu0
        %1619 = vmatprep.mubr.bf16.mxu0 0
        %1620 = vmatmul.mubr.bf16.gmra.mrb[0].mxu0 %v1462
        %v1621 = vpop.f32.mrb[0].mxu0
        %v1622 = vadd.f32 0.0, %v1621
        %v1623 = vpop.f32.mrb[0].mxu0
        %v1624 = vpop.f32.mrb[0].mxu0
        %v1625 = vadd.f32 0.0, %v1624
        %v1626 = vpop.f32.mrb[0].mxu0
        %1627 = vdwg.mxu0
        %v1628 = vadd.f32 %v1109, %v1502
        %v1629 = vadd.f32 %v1112, %v1505
        %v1630 = vadd.f32 %v1117, %v1510
        %v1631 = vadd.f32 %v1120, %v1513
        %v1632 = vadd.f32 %v1125, %v1518
        %v1633 = vadd.f32 %v1128, %v1521
        %v1634 = vadd.f32 %v1133, %v1526
        %v1635 = vadd.f32 %v1136, %v1529
        %v1636 = vadd.f32 %v1141, %v1534
        %v1637 = vadd.f32 %v1144, %v1537
        %v1638 = vadd.f32 %v1149, %v1542
        %v1639 = vadd.f32 %v1152, %v1545
        %v1640 = vadd.f32 %v1157, %v1550
        %v1641 = vadd.f32 %v1160, %v1553
        %v1642 = vadd.f32 %v1165, %v1558
        %v1643 = vadd.f32 %v1168, %v1561
        %v1644 = vadd.f32 %v1173, %v1566
        %v1645 = vadd.f32 %v1176, %v1569
        %v1646 = vadd.f32 %v1181, %v1574
        %v1647 = vadd.f32 %v1184, %v1577
        %v1648 = vadd.f32 %v1189, %v1582
        %v1649 = vadd.f32 %v1192, %v1585
        %v1650 = vadd.f32 %v1197, %v1590
        %v1651 = vadd.f32 %v1200, %v1593
        %v1652 = vadd.f32 %v1205, %v1598
        %v1653 = vadd.f32 %v1208, %v1601
        %v1654 = vadd.f32 %v1213, %v1606
        %v1655 = vadd.f32 %v1216, %v1609
        %v1656 = vadd.f32 %v1221, %v1614
        %v1657 = vadd.f32 %v1224, %v1617
        %v1658 = vadd.f32 %v1229, %v1622
        %v1659 = vadd.f32 %v1232, %v1625
        %s1660 = scalar_lea.vmem [#allocation5], 6
        %v1661 = vld [vmem:[%s1660] sm:$0x3]
        %v1664 = vunpack.c.l.b16 %v285
        %v1665 = vunpack.c.l.b16 %v286
        %v1666 = vpack.c.b16 %v1665, %v1664
        %v1668 = vsel %vm729, %v1666, 0
        %v1671 = vsel %vm778, %v1661, 0
        %1673 = vmatprep.subr.bf16.mxu0 0
        %1674 = vmatpush1.bf16.msra.mxu0 %v1671
        %1675 = vmatprep.subr.bf16.mxu0 0
        %1676 = vmatpush1.bf16.msra.mxu0 0
        %1677 = vmatprep.subr.bf16.mxu0 0
        %1678 = vmatpush1.bf16.msra.mxu0 0
        %1679 = vmatprep.subr.bf16.mxu0 0
        %1680 = vmatpush1.bf16.msra.mxu0 0
        %1681 = vmatprep.subr.bf16.mxu0 0
        %1682 = vmatpush1.bf16.msra.mxu0 0
        %1683 = vmatprep.subr.bf16.mxu0 0
        %1684 = vmatpush1.bf16.msra.mxu0 0
        %1685 = vmatprep.subr.bf16.mxu0 0
        %1686 = vmatpush1.bf16.msra.mxu0 0
        %1687 = vmatprep.subr.bf16.mxu0 0
        %1688 = vmatpush1.bf16.msra.mxu0 0
        %1689 = vmatprep.subr.bf16.mxu0 0
        %1690 = vmatpush1.bf16.msra.mxu0 0
        %1691 = vmatprep.subr.bf16.mxu0 0
        %1692 = vmatpush1.bf16.msra.mxu0 0
        %1693 = vmatprep.subr.bf16.mxu0 0
        %1694 = vmatpush1.bf16.msra.mxu0 0
        %1695 = vmatprep.subr.bf16.mxu0 0
        %1696 = vmatpush1.bf16.msra.mxu0 0
        %1697 = vmatprep.subr.bf16.mxu0 0
        %1698 = vmatpush1.bf16.msra.mxu0 0
        %1699 = vmatprep.subr.bf16.mxu0 0
        %1700 = vmatpush1.bf16.msra.mxu0 0
        %1701 = vmatprep.subr.bf16.mxu0 0
        %1702 = vmatpush1.bf16.msra.mxu0 0
        %1703 = vmatprep.subr.bf16.mxu0 0
        %1704 = vmatpush1.bf16.msra.mxu0 0
        %1705 = vmatprep.mubr.bf16.mxu0 0
        %1706 = vmatmul.mubr.bf16.gmra.mrb[0].mxu0 %v1027
        %v1707 = vpop.f32.mrb[0].mxu0
        %v1708 = vadd.f32 0.0, %v1707
        %v1709 = vpop.f32.mrb[0].mxu0
        %v1710 = vpop.f32.mrb[0].mxu0
        %v1711 = vadd.f32 0.0, %v1710
        %v1712 = vpop.f32.mrb[0].mxu0
        %1713 = vmatprep.mubr.bf16.mxu0 0
        %1714 = vmatmul.mubr.bf16.gmra.mrb[0].mxu0 %v1030
        %v1715 = vpop.f32.mrb[0].mxu0
        %v1716 = vadd.f32 0.0, %v1715
        %v1717 = vpop.f32.mrb[0].mxu0
        %v1718 = vpop.f32.mrb[0].mxu0
        %v1719 = vadd.f32 0.0, %v1718
        %v1720 = vpop.f32.mrb[0].mxu0
        %1721 = vmatprep.mubr.bf16.mxu0 0
        %1722 = vmatmul.mubr.bf16.gmra.mrb[0].mxu0 %v1033
        %v1723 = vpop.f32.mrb[0].mxu0
        %v1724 = vadd.f32 0.0, %v1723
        %v1725 = vpop.f32.mrb[0].mxu0
        %v1726 = vpop.f32.mrb[0].mxu0
        %v1727 = vadd.f32 0.0, %v1726
        %v1728 = vpop.f32.mrb[0].mxu0
        %1729 = vmatprep.mubr.bf16.mxu0 0
        %1730 = vmatmul.mubr.bf16.gmra.mrb[0].mxu0 %v1036
        %v1731 = vpop.f32.mrb[0].mxu0
        %v1732 = vadd.f32 0.0, %v1731
        %v1733 = vpop.f32.mrb[0].mxu0
        %v1734 = vpop.f32.mrb[0].mxu0
        %v1735 = vadd.f32 0.0, %v1734
        %v1736 = vpop.f32.mrb[0].mxu0
        %1737 = vmatprep.mubr.bf16.mxu0 0
        %1738 = vmatmul.mubr.bf16.gmra.mrb[0].mxu0 %v1039
        %v1739 = vpop.f32.mrb[0].mxu0
        %v1740 = vadd.f32 0.0, %v1739
        %v1741 = vpop.f32.mrb[0].mxu0
        %v1742 = vpop.f32.mrb[0].mxu0
        %v1743 = vadd.f32 0.0, %v1742
        %v1744 = vpop.f32.mrb[0].mxu0
        %1745 = vmatprep.mubr.bf16.mxu0 0
        %1746 = vmatmul.mubr.bf16.gmra.mrb[0].mxu0 %v1042
        %v1747 = vpop.f32.mrb[0].mxu0
        %v1748 = vadd.f32 0.0, %v1747
        %v1749 = vpop.f32.mrb[0].mxu0
        %v1750 = vpop.f32.mrb[0].mxu0
        %v1751 = vadd.f32 0.0, %v1750
        %v1752 = vpop.f32.mrb[0].mxu0
        %1753 = vmatprep.mubr.bf16.mxu0 0
        %1754 = vmatmul.mubr.bf16.gmra.mrb[0].mxu0 %v1045
        %v1755 = vpop.f32.mrb[0].mxu0
        %v1756 = vadd.f32 0.0, %v1755
        %v1757 = vpop.f32.mrb[0].mxu0
        %v1758 = vpop.f32.mrb[0].mxu0
        %v1759 = vadd.f32 0.0, %v1758
        %v1760 = vpop.f32.mrb[0].mxu0
        %1761 = vmatprep.mubr.bf16.mxu0 0
        %1762 = vmatmul.mubr.bf16.gmra.mrb[0].mxu0 %v1048
        %v1763 = vpop.f32.mrb[0].mxu0
        %v1764 = vadd.f32 0.0, %v1763
        %v1765 = vpop.f32.mrb[0].mxu0
        %v1766 = vpop.f32.mrb[0].mxu0
        %v1767 = vadd.f32 0.0, %v1766
        %v1768 = vpop.f32.mrb[0].mxu0
        %1769 = vmatprep.mubr.bf16.mxu0 0
        %1770 = vmatmul.mubr.bf16.gmra.mrb[0].mxu0 %v1051
        %v1771 = vpop.f32.mrb[0].mxu0
        %v1772 = vadd.f32 0.0, %v1771
        %v1773 = vpop.f32.mrb[0].mxu0
        %v1774 = vpop.f32.mrb[0].mxu0
        %v1775 = vadd.f32 0.0, %v1774
        %v1776 = vpop.f32.mrb[0].mxu0
        %1777 = vmatprep.mubr.bf16.mxu0 0
        %1778 = vmatmul.mubr.bf16.gmra.mrb[0].mxu0 %v1054
        %v1779 = vpop.f32.mrb[0].mxu0
        %v1780 = vadd.f32 0.0, %v1779
        %v1781 = vpop.f32.mrb[0].mxu0
        %v1782 = vpop.f32.mrb[0].mxu0
        %v1783 = vadd.f32 0.0, %v1782
        %v1784 = vpop.f32.mrb[0].mxu0
        %1785 = vmatprep.mubr.bf16.mxu0 0
        %1786 = vmatmul.mubr.bf16.gmra.mrb[0].mxu0 %v1057
        %v1787 = vpop.f32.mrb[0].mxu0
        %v1788 = vadd.f32 0.0, %v1787
        %v1789 = vpop.f32.mrb[0].mxu0
        %v1790 = vpop.f32.mrb[0].mxu0
        %v1791 = vadd.f32 0.0, %v1790
        %v1792 = vpop.f32.mrb[0].mxu0
        %1793 = vmatprep.mubr.bf16.mxu0 0
        %1794 = vmatmul.mubr.bf16.gmra.mrb[0].mxu0 %v1060
        %v1795 = vpop.f32.mrb[0].mxu0
        %v1796 = vadd.f32 0.0, %v1795
        %v1797 = vpop.f32.mrb[0].mxu0
        %v1798 = vpop.f32.mrb[0].mxu0
        %v1799 = vadd.f32 0.0, %v1798
        %v1800 = vpop.f32.mrb[0].mxu0
        %1801 = vmatprep.mubr.bf16.mxu0 0
        %1802 = vmatmul.mubr.bf16.gmra.mrb[0].mxu0 %v1063
        %v1803 = vpop.f32.mrb[0].mxu0
        %v1804 = vadd.f32 0.0, %v1803
        %v1805 = vpop.f32.mrb[0].mxu0
        %v1806 = vpop.f32.mrb[0].mxu0
        %v1807 = vadd.f32 0.0, %v1806
        %v1808 = vpop.f32.mrb[0].mxu0
        %1809 = vmatprep.mubr.bf16.mxu0 0
        %1810 = vmatmul.mubr.bf16.gmra.mrb[0].mxu0 %v1066
        %v1811 = vpop.f32.mrb[0].mxu0
        %v1812 = vadd.f32 0.0, %v1811
        %v1813 = vpop.f32.mrb[0].mxu0
        %v1814 = vpop.f32.mrb[0].mxu0
        %v1815 = vadd.f32 0.0, %v1814
        %v1816 = vpop.f32.mrb[0].mxu0
        %1817 = vmatprep.mubr.bf16.mxu0 0
        %1818 = vmatmul.mubr.bf16.gmra.mrb[0].mxu0 %v1069
        %v1819 = vpop.f32.mrb[0].mxu0
        %v1820 = vadd.f32 0.0, %v1819
        %v1821 = vpop.f32.mrb[0].mxu0
        %v1822 = vpop.f32.mrb[0].mxu0
        %v1823 = vadd.f32 0.0, %v1822
        %v1824 = vpop.f32.mrb[0].mxu0
        %1825 = vmatprep.mubr.bf16.mxu0 0
        %1826 = vmatmul.mubr.bf16.gmra.mrb[0].mxu0 %v1668
        %v1827 = vpop.f32.mrb[0].mxu0
        %v1828 = vadd.f32 0.0, %v1827
        %v1829 = vpop.f32.mrb[0].mxu0
        %v1830 = vpop.f32.mrb[0].mxu0
        %v1831 = vadd.f32 0.0, %v1830
        %v1832 = vpop.f32.mrb[0].mxu0
        %1833 = vdwg.mxu0
        %v1834 = vadd.f32 %v1628, %v1708
        %v1835 = vadd.f32 %v1629, %v1711
        %v1836 = vadd.f32 %v1630, %v1716
        %v1837 = vadd.f32 %v1631, %v1719
        %v1838 = vadd.f32 %v1632, %v1724
        %v1839 = vadd.f32 %v1633, %v1727
        %v1840 = vadd.f32 %v1634, %v1732
        %v1841 = vadd.f32 %v1635, %v1735
        %v1842 = vadd.f32 %v1636, %v1740
        %v1843 = vadd.f32 %v1637, %v1743
        %v1844 = vadd.f32 %v1638, %v1748
        %v1845 = vadd.f32 %v1639, %v1751
        %v1846 = vadd.f32 %v1640, %v1756
        %v1847 = vadd.f32 %v1641, %v1759
        %v1848 = vadd.f32 %v1642, %v1764
        %v1849 = vadd.f32 %v1643, %v1767
        %v1850 = vadd.f32 %v1644, %v1772
        %v1851 = vadd.f32 %v1645, %v1775
        %v1852 = vadd.f32 %v1646, %v1780
        %v1853 = vadd.f32 %v1647, %v1783
        %v1854 = vadd.f32 %v1648, %v1788
        %v1855 = vadd.f32 %v1649, %v1791
        %v1856 = vadd.f32 %v1650, %v1796
        %v1857 = vadd.f32 %v1651, %v1799
        %v1858 = vadd.f32 %v1652, %v1804
        %v1859 = vadd.f32 %v1653, %v1807
        %v1860 = vadd.f32 %v1654, %v1812
        %v1861 = vadd.f32 %v1655, %v1815
        %v1862 = vadd.f32 %v1656, %v1820
        %v1863 = vadd.f32 %v1657, %v1823
        %v1864 = vadd.f32 %v1658, %v1828
        %v1865 = vadd.f32 %v1659, %v1831
        %v1867 = vshrl.u32 %v285, 16
        %v1869 = vrot.slane %v1867, 4
        %v1870 = vshll.u32 %v285, 16
        %v1872 = vrot.slane %v1870, 5
        %v1873 = vor.u32 %v1869, %v1872
        %v1874 = vrot.slane %v1873, 4
        %v1876 = vshll.u32 %v286, 16
        %v1878 = vrot.slane %v1876, 5
        %v1879 = vsel %vm294, %v1874, %v1878
        %v1880 = vshrl.u32 %v286, 16
        %v1882 = vrot.slane %v1880, 4
        %v1883 = vor.u32 %v1882, %v1878
        %v1884 = vrot.slane %v1883, 4
        %v1886 = vshll.u32 %v287, 16
        %v1888 = vrot.slane %v1886, 5
        %v1889 = vsel %vm294, %v1884, %v1888
        %s1890 = scalar_lea.vmem [#allocation5], 8
        %v1891 = vld [vmem:[%s1890] sm:$0x3]
        %v1892 = vunpack.c.l.b16 %v1879
        %v1893 = vunpack.c.l.b16 %v1889
        %v1894 = vpack.c.b16 %v1893, %v1892
        %v1896 = vsel %vm729, %v1894, 0
        %v1899 = vsel %vm778, %v1891, 0
        %1901 = vmatprep.subr.bf16.mxu0 0
        %1902 = vmatpush1.bf16.msra.mxu0 %v1899
        %1903 = vmatprep.subr.bf16.mxu0 0
        %1904 = vmatpush1.bf16.msra.mxu0 0
        %1905 = vmatprep.subr.bf16.mxu0 0
        %1906 = vmatpush1.bf16.msra.mxu0 0
        %1907 = vmatprep.subr.bf16.mxu0 0
        %1908 = vmatpush1.bf16.msra.mxu0 0
        %1909 = vmatprep.subr.bf16.mxu0 0
        %1910 = vmatpush1.bf16.msra.mxu0 0
        %1911 = vmatprep.subr.bf16.mxu0 0
        %1912 = vmatpush1.bf16.msra.mxu0 0
        %1913 = vmatprep.subr.bf16.mxu0 0
        %1914 = vmatpush1.bf16.msra.mxu0 0
        %1915 = vmatprep.subr.bf16.mxu0 0
        %1916 = vmatpush1.bf16.msra.mxu0 0
        %1917 = vmatprep.subr.bf16.mxu0 0
        %1918 = vmatpush1.bf16.msra.mxu0 0
        %1919 = vmatprep.subr.bf16.mxu0 0
        %1920 = vmatpush1.bf16.msra.mxu0 0
        %1921 = vmatprep.subr.bf16.mxu0 0
        %1922 = vmatpush1.bf16.msra.mxu0 0
        %1923 = vmatprep.subr.bf16.mxu0 0
        %1924 = vmatpush1.bf16.msra.mxu0 0
        %1925 = vmatprep.subr.bf16.mxu0 0
        %1926 = vmatpush1.bf16.msra.mxu0 0
        %1927 = vmatprep.subr.bf16.mxu0 0
        %1928 = vmatpush1.bf16.msra.mxu0 0
        %1929 = vmatprep.subr.bf16.mxu0 0
        %1930 = vmatpush1.bf16.msra.mxu0 0
        %1931 = vmatprep.subr.bf16.mxu0 0
        %1932 = vmatpush1.bf16.msra.mxu0 0
        %1933 = vmatprep.mubr.bf16.mxu0 0
        %1934 = vmatmul.mubr.bf16.gmra.mrb[0].mxu0 %v734
        %v1935 = vpop.f32.mrb[0].mxu0
        %v1936 = vadd.f32 0.0, %v1935
        %v1937 = vpop.f32.mrb[0].mxu0
        %v1938 = vpop.f32.mrb[0].mxu0
        %v1939 = vadd.f32 0.0, %v1938
        %v1940 = vpop.f32.mrb[0].mxu0
        %1941 = vmatprep.mubr.bf16.mxu0 0
        %1942 = vmatmul.mubr.bf16.gmra.mrb[0].mxu0 %v737
        %v1943 = vpop.f32.mrb[0].mxu0
        %v1944 = vadd.f32 0.0, %v1943
        %v1945 = vpop.f32.mrb[0].mxu0
        %v1946 = vpop.f32.mrb[0].mxu0
        %v1947 = vadd.f32 0.0, %v1946
        %v1948 = vpop.f32.mrb[0].mxu0
        %1949 = vmatprep.mubr.bf16.mxu0 0
        %1950 = vmatmul.mubr.bf16.gmra.mrb[0].mxu0 %v740
        %v1951 = vpop.f32.mrb[0].mxu0
        %v1952 = vadd.f32 0.0, %v1951
        %v1953 = vpop.f32.mrb[0].mxu0
        %v1954 = vpop.f32.mrb[0].mxu0
        %v1955 = vadd.f32 0.0, %v1954
        %v1956 = vpop.f32.mrb[0].mxu0
        %1957 = vmatprep.mubr.bf16.mxu0 0
        %1958 = vmatmul.mubr.bf16.gmra.mrb[0].mxu0 %v743
        %v1959 = vpop.f32.mrb[0].mxu0
        %v1960 = vadd.f32 0.0, %v1959
        %v1961 = vpop.f32.mrb[0].mxu0
        %v1962 = vpop.f32.mrb[0].mxu0
        %v1963 = vadd.f32 0.0, %v1962
        %v1964 = vpop.f32.mrb[0].mxu0
        %1965 = vmatprep.mubr.bf16.mxu0 0
        %1966 = vmatmul.mubr.bf16.gmra.mrb[0].mxu0 %v746
        %v1967 = vpop.f32.mrb[0].mxu0
        %v1968 = vadd.f32 0.0, %v1967
        %v1969 = vpop.f32.mrb[0].mxu0
        %v1970 = vpop.f32.mrb[0].mxu0
        %v1971 = vadd.f32 0.0, %v1970
        %v1972 = vpop.f32.mrb[0].mxu0
        %1973 = vmatprep.mubr.bf16.mxu0 0
        %1974 = vmatmul.mubr.bf16.gmra.mrb[0].mxu0 %v749
        %v1975 = vpop.f32.mrb[0].mxu0
        %v1976 = vadd.f32 0.0, %v1975
        %v1977 = vpop.f32.mrb[0].mxu0
        %v1978 = vpop.f32.mrb[0].mxu0
        %v1979 = vadd.f32 0.0, %v1978
        %v1980 = vpop.f32.mrb[0].mxu0
        %1981 = vmatprep.mubr.bf16.mxu0 0
        %1982 = vmatmul.mubr.bf16.gmra.mrb[0].mxu0 %v752
        %v1983 = vpop.f32.mrb[0].mxu0
        %v1984 = vadd.f32 0.0, %v1983
        %v1985 = vpop.f32.mrb[0].mxu0
        %v1986 = vpop.f32.mrb[0].mxu0
        %v1987 = vadd.f32 0.0, %v1986
        %v1988 = vpop.f32.mrb[0].mxu0
        %1989 = vmatprep.mubr.bf16.mxu0 0
        %1990 = vmatmul.mubr.bf16.gmra.mrb[0].mxu0 %v755
        %v1991 = vpop.f32.mrb[0].mxu0
        %v1992 = vadd.f32 0.0, %v1991
        %v1993 = vpop.f32.mrb[0].mxu0
        %v1994 = vpop.f32.mrb[0].mxu0
        %v1995 = vadd.f32 0.0, %v1994
        %v1996 = vpop.f32.mrb[0].mxu0
        %1997 = vmatprep.mubr.bf16.mxu0 0
        %1998 = vmatmul.mubr.bf16.gmra.mrb[0].mxu0 %v758
        %v1999 = vpop.f32.mrb[0].mxu0
        %v2000 = vadd.f32 0.0, %v1999
        %v2001 = vpop.f32.mrb[0].mxu0
        %v2002 = vpop.f32.mrb[0].mxu0
        %v2003 = vadd.f32 0.0, %v2002
        %v2004 = vpop.f32.mrb[0].mxu0
        %2005 = vmatprep.mubr.bf16.mxu0 0
        %2006 = vmatmul.mubr.bf16.gmra.mrb[0].mxu0 %v761
        %v2007 = vpop.f32.mrb[0].mxu0
        %v2008 = vadd.f32 0.0, %v2007
        %v2009 = vpop.f32.mrb[0].mxu0
        %v2010 = vpop.f32.mrb[0].mxu0
        %v2011 = vadd.f32 0.0, %v2010
        %v2012 = vpop.f32.mrb[0].mxu0
        %2013 = vmatprep.mubr.bf16.mxu0 0
        %2014 = vmatmul.mubr.bf16.gmra.mrb[0].mxu0 %v764
        %v2015 = vpop.f32.mrb[0].mxu0
        %v2016 = vadd.f32 0.0, %v2015
        %v2017 = vpop.f32.mrb[0].mxu0
        %v2018 = vpop.f32.mrb[0].mxu0
        %v2019 = vadd.f32 0.0, %v2018
        %v2020 = vpop.f32.mrb[0].mxu0
        %2021 = vmatprep.mubr.bf16.mxu0 0
        %2022 = vmatmul.mubr.bf16.gmra.mrb[0].mxu0 %v767
        %v2023 = vpop.f32.mrb[0].mxu0
        %v2024 = vadd.f32 0.0, %v2023
        %v2025 = vpop.f32.mrb[0].mxu0
        %v2026 = vpop.f32.mrb[0].mxu0
        %v2027 = vadd.f32 0.0, %v2026
        %v2028 = vpop.f32.mrb[0].mxu0
        %2029 = vmatprep.mubr.bf16.mxu0 0
        %2030 = vmatmul.mubr.bf16.gmra.mrb[0].mxu0 %v770
        %v2031 = vpop.f32.mrb[0].mxu0
        %v2032 = vadd.f32 0.0, %v2031
        %v2033 = vpop.f32.mrb[0].mxu0
        %v2034 = vpop.f32.mrb[0].mxu0
        %v2035 = vadd.f32 0.0, %v2034
        %v2036 = vpop.f32.mrb[0].mxu0
        %2037 = vmatprep.mubr.bf16.mxu0 0
        %2038 = vmatmul.mubr.bf16.gmra.mrb[0].mxu0 %v773
        %v2039 = vpop.f32.mrb[0].mxu0
        %v2040 = vadd.f32 0.0, %v2039
        %v2041 = vpop.f32.mrb[0].mxu0
        %v2042 = vpop.f32.mrb[0].mxu0
        %v2043 = vadd.f32 0.0, %v2042
        %v2044 = vpop.f32.mrb[0].mxu0
        %2045 = vmatprep.mubr.bf16.mxu0 0
        %2046 = vmatmul.mubr.bf16.gmra.mrb[0].mxu0 %v776
        %v2047 = vpop.f32.mrb[0].mxu0
        %v2048 = vadd.f32 0.0, %v2047
        %v2049 = vpop.f32.mrb[0].mxu0
        %v2050 = vpop.f32.mrb[0].mxu0
        %v2051 = vadd.f32 0.0, %v2050
        %v2052 = vpop.f32.mrb[0].mxu0
        %2053 = vmatprep.mubr.bf16.mxu0 0
        %2054 = vmatmul.mubr.bf16.gmra.mrb[0].mxu0 %v1896
        %v2055 = vpop.f32.mrb[0].mxu0
        %v2056 = vadd.f32 0.0, %v2055
        %v2057 = vpop.f32.mrb[0].mxu0
        %v2058 = vpop.f32.mrb[0].mxu0
        %v2059 = vadd.f32 0.0, %v2058
        %v2060 = vpop.f32.mrb[0].mxu0
        %2061 = vdwg.mxu0
        %v2062 = vadd.f32 %v1834, %v1936
        %v2063 = vadd.f32 %v1835, %v1939
        %v2064 = vadd.f32 %v1836, %v1944
        %v2065 = vadd.f32 %v1837, %v1947
        %v2066 = vadd.f32 %v1838, %v1952
        %v2067 = vadd.f32 %v1839, %v1955
        %v2068 = vadd.f32 %v1840, %v1960
        %v2069 = vadd.f32 %v1841, %v1963
        %v2070 = vadd.f32 %v1842, %v1968
        %v2071 = vadd.f32 %v1843, %v1971
        %v2072 = vadd.f32 %v1844, %v1976
        %v2073 = vadd.f32 %v1845, %v1979
        %v2074 = vadd.f32 %v1846, %v1984
        %v2075 = vadd.f32 %v1847, %v1987
        %v2076 = vadd.f32 %v1848, %v1992
        %v2077 = vadd.f32 %v1849, %v1995
        %v2078 = vadd.f32 %v1850, %v2000
        %v2079 = vadd.f32 %v1851, %v2003
        %v2080 = vadd.f32 %v1852, %v2008
        %v2081 = vadd.f32 %v1853, %v2011
        %v2082 = vadd.f32 %v1854, %v2016
        %v2083 = vadd.f32 %v1855, %v2019
        %v2084 = vadd.f32 %v1856, %v2024
        %v2085 = vadd.f32 %v1857, %v2027
        %v2086 = vadd.f32 %v1858, %v2032
        %v2087 = vadd.f32 %v1859, %v2035
        %v2088 = vadd.f32 %v1860, %v2040
        %v2089 = vadd.f32 %v1861, %v2043
        %v2090 = vadd.f32 %v1862, %v2048
        %v2091 = vadd.f32 %v1863, %v2051
        %v2092 = vadd.f32 %v1864, %v2056
        %v2093 = vadd.f32 %v1865, %v2059
        %v2095 = vrot.slane %v285, 5
        %v2096 = vrot.slane %v2095, 4
        %v2097 = vrot.slane %v286, 5
        %v2098 = vsel %vm1253, %v2096, %v2097
        %v2099 = vrot.slane %v2097, 4
        %v2100 = vrot.slane %v287, 5
        %v2101 = vsel %vm1253, %v2099, %v2100
        %s2102 = scalar_lea.vmem [#allocation5], 10
        %v2103 = vld [vmem:[%s2102] sm:$0x3]
        %v2104 = vunpack.c.l.b16 %v2098
        %v2105 = vunpack.c.l.b16 %v2101
        %v2106 = vpack.c.b16 %v2105, %v2104
        %v2108 = vsel %vm729, %v2106, 0
        %v2111 = vsel %vm778, %v2103, 0
        %2113 = vmatprep.subr.bf16.mxu0 0
        %2114 = vmatpush1.bf16.msra.mxu0 %v2111
        %2115 = vmatprep.subr.bf16.mxu0 0
        %2116 = vmatpush1.bf16.msra.mxu0 0
        %2117 = vmatprep.subr.bf16.mxu0 0
        %2118 = vmatpush1.bf16.msra.mxu0 0
        %2119 = vmatprep.subr.bf16.mxu0 0
        %2120 = vmatpush1.bf16.msra.mxu0 0
        %2121 = vmatprep.subr.bf16.mxu0 0
        %2122 = vmatpush1.bf16.msra.mxu0 0
        %2123 = vmatprep.subr.bf16.mxu0 0
        %2124 = vmatpush1.bf16.msra.mxu0 0
        %2125 = vmatprep.subr.bf16.mxu0 0
        %2126 = vmatpush1.bf16.msra.mxu0 0
        %2127 = vmatprep.subr.bf16.mxu0 0
        %2128 = vmatpush1.bf16.msra.mxu0 0
        %2129 = vmatprep.subr.bf16.mxu0 0
        %2130 = vmatpush1.bf16.msra.mxu0 0
        %2131 = vmatprep.subr.bf16.mxu0 0
        %2132 = vmatpush1.bf16.msra.mxu0 0
        %2133 = vmatprep.subr.bf16.mxu0 0
        %2134 = vmatpush1.bf16.msra.mxu0 0
        %2135 = vmatprep.subr.bf16.mxu0 0
        %2136 = vmatpush1.bf16.msra.mxu0 0
        %2137 = vmatprep.subr.bf16.mxu0 0
        %2138 = vmatpush1.bf16.msra.mxu0 0
        %2139 = vmatprep.subr.bf16.mxu0 0
        %2140 = vmatpush1.bf16.msra.mxu0 0
        %2141 = vmatprep.subr.bf16.mxu0 0
        %2142 = vmatpush1.bf16.msra.mxu0 0
        %2143 = vmatprep.subr.bf16.mxu0 0
        %2144 = vmatpush1.bf16.msra.mxu0 0
        %2145 = vmatprep.mubr.bf16.mxu0 0
        %2146 = vmatmul.mubr.bf16.gmra.mrb[0].mxu0 %v1420
        %v2147 = vpop.f32.mrb[0].mxu0
        %v2148 = vadd.f32 0.0, %v2147
        %v2149 = vpop.f32.mrb[0].mxu0
        %v2150 = vpop.f32.mrb[0].mxu0
        %v2151 = vadd.f32 0.0, %v2150
        %v2152 = vpop.f32.mrb[0].mxu0
        %2153 = vmatprep.mubr.bf16.mxu0 0
        %2154 = vmatmul.mubr.bf16.gmra.mrb[0].mxu0 %v1423
        %v2155 = vpop.f32.mrb[0].mxu0
        %v2156 = vadd.f32 0.0, %v2155
        %v2157 = vpop.f32.mrb[0].mxu0
        %v2158 = vpop.f32.mrb[0].mxu0
        %v2159 = vadd.f32 0.0, %v2158
        %v2160 = vpop.f32.mrb[0].mxu0
        %2161 = vmatprep.mubr.bf16.mxu0 0
        %2162 = vmatmul.mubr.bf16.gmra.mrb[0].mxu0 %v1426
        %v2163 = vpop.f32.mrb[0].mxu0
        %v2164 = vadd.f32 0.0, %v2163
        %v2165 = vpop.f32.mrb[0].mxu0
        %v2166 = vpop.f32.mrb[0].mxu0
        %v2167 = vadd.f32 0.0, %v2166
        %v2168 = vpop.f32.mrb[0].mxu0
        %2169 = vmatprep.mubr.bf16.mxu0 0
        %2170 = vmatmul.mubr.bf16.gmra.mrb[0].mxu0 %v1429
        %v2171 = vpop.f32.mrb[0].mxu0
        %v2172 = vadd.f32 0.0, %v2171
        %v2173 = vpop.f32.mrb[0].mxu0
        %v2174 = vpop.f32.mrb[0].mxu0
        %v2175 = vadd.f32 0.0, %v2174
        %v2176 = vpop.f32.mrb[0].mxu0
        %2177 = vmatprep.mubr.bf16.mxu0 0
        %2178 = vmatmul.mubr.bf16.gmra.mrb[0].mxu0 %v1432
        %v2179 = vpop.f32.mrb[0].mxu0
        %v2180 = vadd.f32 0.0, %v2179
        %v2181 = vpop.f32.mrb[0].mxu0
        %v2182 = vpop.f32.mrb[0].mxu0
        %v2183 = vadd.f32 0.0, %v2182
        %v2184 = vpop.f32.mrb[0].mxu0
        %2185 = vmatprep.mubr.bf16.mxu0 0
        %2186 = vmatmul.mubr.bf16.gmra.mrb[0].mxu0 %v1435
        %v2187 = vpop.f32.mrb[0].mxu0
        %v2188 = vadd.f32 0.0, %v2187
        %v2189 = vpop.f32.mrb[0].mxu0
        %v2190 = vpop.f32.mrb[0].mxu0
        %v2191 = vadd.f32 0.0, %v2190
        %v2192 = vpop.f32.mrb[0].mxu0
        %2193 = vmatprep.mubr.bf16.mxu0 0
        %2194 = vmatmul.mubr.bf16.gmra.mrb[0].mxu0 %v1438
        %v2195 = vpop.f32.mrb[0].mxu0
        %v2196 = vadd.f32 0.0, %v2195
        %v2197 = vpop.f32.mrb[0].mxu0
        %v2198 = vpop.f32.mrb[0].mxu0
        %v2199 = vadd.f32 0.0, %v2198
        %v2200 = vpop.f32.mrb[0].mxu0
        %2201 = vmatprep.mubr.bf16.mxu0 0
        %2202 = vmatmul.mubr.bf16.gmra.mrb[0].mxu0 %v1441
        %v2203 = vpop.f32.mrb[0].mxu0
        %v2204 = vadd.f32 0.0, %v2203
        %v2205 = vpop.f32.mrb[0].mxu0
        %v2206 = vpop.f32.mrb[0].mxu0
        %v2207 = vadd.f32 0.0, %v2206
        %v2208 = vpop.f32.mrb[0].mxu0
        %2209 = vmatprep.mubr.bf16.mxu0 0
        %2210 = vmatmul.mubr.bf16.gmra.mrb[0].mxu0 %v1444
        %v2211 = vpop.f32.mrb[0].mxu0
        %v2212 = vadd.f32 0.0, %v2211
        %v2213 = vpop.f32.mrb[0].mxu0
        %v2214 = vpop.f32.mrb[0].mxu0
        %v2215 = vadd.f32 0.0, %v2214
        %v2216 = vpop.f32.mrb[0].mxu0
        %2217 = vmatprep.mubr.bf16.mxu0 0
        %2218 = vmatmul.mubr.bf16.gmra.mrb[0].mxu0 %v1447
        %v2219 = vpop.f32.mrb[0].mxu0
        %v2220 = vadd.f32 0.0, %v2219
        %v2221 = vpop.f32.mrb[0].mxu0
        %v2222 = vpop.f32.mrb[0].mxu0
        %v2223 = vadd.f32 0.0, %v2222
        %v2224 = vpop.f32.mrb[0].mxu0
        %2225 = vmatprep.mubr.bf16.mxu0 0
        %2226 = vmatmul.mubr.bf16.gmra.mrb[0].mxu0 %v1450
        %v2227 = vpop.f32.mrb[0].mxu0
        %v2228 = vadd.f32 0.0, %v2227
        %v2229 = vpop.f32.mrb[0].mxu0
        %v2230 = vpop.f32.mrb[0].mxu0
        %v2231 = vadd.f32 0.0, %v2230
        %v2232 = vpop.f32.mrb[0].mxu0
        %2233 = vmatprep.mubr.bf16.mxu0 0
        %2234 = vmatmul.mubr.bf16.gmra.mrb[0].mxu0 %v1453
        %v2235 = vpop.f32.mrb[0].mxu0
        %v2236 = vadd.f32 0.0, %v2235
        %v2237 = vpop.f32.mrb[0].mxu0
        %v2238 = vpop.f32.mrb[0].mxu0
        %v2239 = vadd.f32 0.0, %v2238
        %v2240 = vpop.f32.mrb[0].mxu0
        %2241 = vmatprep.mubr.bf16.mxu0 0
        %2242 = vmatmul.mubr.bf16.gmra.mrb[0].mxu0 %v1456
        %v2243 = vpop.f32.mrb[0].mxu0
        %v2244 = vadd.f32 0.0, %v2243
        %v2245 = vpop.f32.mrb[0].mxu0
        %v2246 = vpop.f32.mrb[0].mxu0
        %v2247 = vadd.f32 0.0, %v2246
        %v2248 = vpop.f32.mrb[0].mxu0
        %2249 = vmatprep.mubr.bf16.mxu0 0
        %2250 = vmatmul.mubr.bf16.gmra.mrb[0].mxu0 %v1459
        %v2251 = vpop.f32.mrb[0].mxu0
        %v2252 = vadd.f32 0.0, %v2251
        %v2253 = vpop.f32.mrb[0].mxu0
        %v2254 = vpop.f32.mrb[0].mxu0
        %v2255 = vadd.f32 0.0, %v2254
        %v2256 = vpop.f32.mrb[0].mxu0
        %2257 = vmatprep.mubr.bf16.mxu0 0
        %2258 = vmatmul.mubr.bf16.gmra.mrb[0].mxu0 %v1462
        %v2259 = vpop.f32.mrb[0].mxu0
        %v2260 = vadd.f32 0.0, %v2259
        %v2261 = vpop.f32.mrb[0].mxu0
        %v2262 = vpop.f32.mrb[0].mxu0
        %v2263 = vadd.f32 0.0, %v2262
        %v2264 = vpop.f32.mrb[0].mxu0
        %2265 = vmatprep.mubr.bf16.mxu0 0
        %2266 = vmatmul.mubr.bf16.gmra.mrb[0].mxu0 %v2108
        %v2267 = vpop.f32.mrb[0].mxu0
        %v2268 = vadd.f32 0.0, %v2267
        %v2269 = vpop.f32.mrb[0].mxu0
        %v2270 = vpop.f32.mrb[0].mxu0
        %v2271 = vadd.f32 0.0, %v2270
        %v2272 = vpop.f32.mrb[0].mxu0
        %2273 = vdwg.mxu0
        %v2274 = vadd.f32 %v2062, %v2148
        %v2275 = vadd.f32 %v2063, %v2151
        %v2276 = vadd.f32 %v2064, %v2156
        %v2277 = vadd.f32 %v2065, %v2159
        %v2278 = vadd.f32 %v2066, %v2164
        %v2279 = vadd.f32 %v2067, %v2167
        %v2280 = vadd.f32 %v2068, %v2172
        %v2281 = vadd.f32 %v2069, %v2175
        %v2282 = vadd.f32 %v2070, %v2180
        %v2283 = vadd.f32 %v2071, %v2183
        %v2284 = vadd.f32 %v2072, %v2188
        %v2285 = vadd.f32 %v2073, %v2191
        %v2286 = vadd.f32 %v2074, %v2196
        %v2287 = vadd.f32 %v2075, %v2199
        %v2288 = vadd.f32 %v2076, %v2204
        %v2289 = vadd.f32 %v2077, %v2207
        %v2290 = vadd.f32 %v2078, %v2212
        %v2291 = vadd.f32 %v2079, %v2215
        %v2292 = vadd.f32 %v2080, %v2220
        %v2293 = vadd.f32 %v2081, %v2223
        %v2294 = vadd.f32 %v2082, %v2228
        %v2295 = vadd.f32 %v2083, %v2231
        %v2296 = vadd.f32 %v2084, %v2236
        %v2297 = vadd.f32 %v2085, %v2239
        %v2298 = vadd.f32 %v2086, %v2244
        %v2299 = vadd.f32 %v2087, %v2247
        %v2300 = vadd.f32 %v2088, %v2252
        %v2301 = vadd.f32 %v2089, %v2255
        %v2302 = vadd.f32 %v2090, %v2260
        %v2303 = vadd.f32 %v2091, %v2263
        %v2304 = vadd.f32 %v2092, %v2268
        %v2305 = vadd.f32 %v2093, %v2271
        %s2306 = scalar_lea.vmem [#allocation5], 12
        %v2307 = vld [vmem:[%s2306] sm:$0x3]
        %v2310 = vunpack.c.l.b16 %v288
        %v2311 = vunpack.c.l.b16 %v289
        %v2312 = vpack.c.b16 %v2311, %v2310
        %v2314 = vsel %vm729, %v2312, 0
        %v2317 = vsel %vm778, %v2307, 0
        %2319 = vmatprep.subr.bf16.mxu0 0
        %2320 = vmatpush1.bf16.msra.mxu0 %v2317
        %2321 = vmatprep.subr.bf16.mxu0 0
        %2322 = vmatpush1.bf16.msra.mxu0 0
        %2323 = vmatprep.subr.bf16.mxu0 0
        %2324 = vmatpush1.bf16.msra.mxu0 0
        %2325 = vmatprep.subr.bf16.mxu0 0
        %2326 = vmatpush1.bf16.msra.mxu0 0
        %2327 = vmatprep.subr.bf16.mxu0 0
        %2328 = vmatpush1.bf16.msra.mxu0 0
        %2329 = vmatprep.subr.bf16.mxu0 0
        %2330 = vmatpush1.bf16.msra.mxu0 0
        %2331 = vmatprep.subr.bf16.mxu0 0
        %2332 = vmatpush1.bf16.msra.mxu0 0
        %2333 = vmatprep.subr.bf16.mxu0 0
        %2334 = vmatpush1.bf16.msra.mxu0 0
        %2335 = vmatprep.subr.bf16.mxu0 0
        %2336 = vmatpush1.bf16.msra.mxu0 0
        %2337 = vmatprep.subr.bf16.mxu0 0
        %2338 = vmatpush1.bf16.msra.mxu0 0
        %2339 = vmatprep.subr.bf16.mxu0 0
        %2340 = vmatpush1.bf16.msra.mxu0 0
        %2341 = vmatprep.subr.bf16.mxu0 0
        %2342 = vmatpush1.bf16.msra.mxu0 0
        %2343 = vmatprep.subr.bf16.mxu0 0
        %2344 = vmatpush1.bf16.msra.mxu0 0
        %2345 = vmatprep.subr.bf16.mxu0 0
        %2346 = vmatpush1.bf16.msra.mxu0 0
        %2347 = vmatprep.subr.bf16.mxu0 0
        %2348 = vmatpush1.bf16.msra.mxu0 0
        %2349 = vmatprep.subr.bf16.mxu0 0
        %2350 = vmatpush1.bf16.msra.mxu0 0
        %2351 = vmatprep.mubr.bf16.mxu0 0
        %2352 = vmatmul.mubr.bf16.gmra.mrb[0].mxu0 %v1030
        %v2353 = vpop.f32.mrb[0].mxu0
        %v2354 = vadd.f32 0.0, %v2353
        %v2355 = vpop.f32.mrb[0].mxu0
        %v2356 = vpop.f32.mrb[0].mxu0
        %v2357 = vadd.f32 0.0, %v2356
        %v2358 = vpop.f32.mrb[0].mxu0
        %2359 = vmatprep.mubr.bf16.mxu0 0
        %2360 = vmatmul.mubr.bf16.gmra.mrb[0].mxu0 %v1033
        %v2361 = vpop.f32.mrb[0].mxu0
        %v2362 = vadd.f32 0.0, %v2361
        %v2363 = vpop.f32.mrb[0].mxu0
        %v2364 = vpop.f32.mrb[0].mxu0
        %v2365 = vadd.f32 0.0, %v2364
        %v2366 = vpop.f32.mrb[0].mxu0
        %2367 = vmatprep.mubr.bf16.mxu0 0
        %2368 = vmatmul.mubr.bf16.gmra.mrb[0].mxu0 %v1036
        %v2369 = vpop.f32.mrb[0].mxu0
        %v2370 = vadd.f32 0.0, %v2369
        %v2371 = vpop.f32.mrb[0].mxu0
        %v2372 = vpop.f32.mrb[0].mxu0
        %v2373 = vadd.f32 0.0, %v2372
        %v2374 = vpop.f32.mrb[0].mxu0
        %2375 = vmatprep.mubr.bf16.mxu0 0
        %2376 = vmatmul.mubr.bf16.gmra.mrb[0].mxu0 %v1039
        %v2377 = vpop.f32.mrb[0].mxu0
        %v2378 = vadd.f32 0.0, %v2377
        %v2379 = vpop.f32.mrb[0].mxu0
        %v2380 = vpop.f32.mrb[0].mxu0
        %v2381 = vadd.f32 0.0, %v2380
        %v2382 = vpop.f32.mrb[0].mxu0
        %2383 = vmatprep.mubr.bf16.mxu0 0
        %2384 = vmatmul.mubr.bf16.gmra.mrb[0].mxu0 %v1042
        %v2385 = vpop.f32.mrb[0].mxu0
        %v2386 = vadd.f32 0.0, %v2385
        %v2387 = vpop.f32.mrb[0].mxu0
        %v2388 = vpop.f32.mrb[0].mxu0
        %v2389 = vadd.f32 0.0, %v2388
        %v2390 = vpop.f32.mrb[0].mxu0
        %2391 = vmatprep.mubr.bf16.mxu0 0
        %2392 = vmatmul.mubr.bf16.gmra.mrb[0].mxu0 %v1045
        %v2393 = vpop.f32.mrb[0].mxu0
        %v2394 = vadd.f32 0.0, %v2393
        %v2395 = vpop.f32.mrb[0].mxu0
        %v2396 = vpop.f32.mrb[0].mxu0
        %v2397 = vadd.f32 0.0, %v2396
        %v2398 = vpop.f32.mrb[0].mxu0
        %2399 = vmatprep.mubr.bf16.mxu0 0
        %2400 = vmatmul.mubr.bf16.gmra.mrb[0].mxu0 %v1048
        %v2401 = vpop.f32.mrb[0].mxu0
        %v2402 = vadd.f32 0.0, %v2401
        %v2403 = vpop.f32.mrb[0].mxu0
        %v2404 = vpop.f32.mrb[0].mxu0
        %v2405 = vadd.f32 0.0, %v2404
        %v2406 = vpop.f32.mrb[0].mxu0
        %2407 = vmatprep.mubr.bf16.mxu0 0
        %2408 = vmatmul.mubr.bf16.gmra.mrb[0].mxu0 %v1051
        %v2409 = vpop.f32.mrb[0].mxu0
        %v2410 = vadd.f32 0.0, %v2409
        %v2411 = vpop.f32.mrb[0].mxu0
        %v2412 = vpop.f32.mrb[0].mxu0
        %v2413 = vadd.f32 0.0, %v2412
        %v2414 = vpop.f32.mrb[0].mxu0
        %2415 = vmatprep.mubr.bf16.mxu0 0
        %2416 = vmatmul.mubr.bf16.gmra.mrb[0].mxu0 %v1054
        %v2417 = vpop.f32.mrb[0].mxu0
        %v2418 = vadd.f32 0.0, %v2417
        %v2419 = vpop.f32.mrb[0].mxu0
        %v2420 = vpop.f32.mrb[0].mxu0
        %v2421 = vadd.f32 0.0, %v2420
        %v2422 = vpop.f32.mrb[0].mxu0
        %2423 = vmatprep.mubr.bf16.mxu0 0
        %2424 = vmatmul.mubr.bf16.gmra.mrb[0].mxu0 %v1057
        %v2425 = vpop.f32.mrb[0].mxu0
        %v2426 = vadd.f32 0.0, %v2425
        %v2427 = vpop.f32.mrb[0].mxu0
        %v2428 = vpop.f32.mrb[0].mxu0
        %v2429 = vadd.f32 0.0, %v2428
        %v2430 = vpop.f32.mrb[0].mxu0
        %2431 = vmatprep.mubr.bf16.mxu0 0
        %2432 = vmatmul.mubr.bf16.gmra.mrb[0].mxu0 %v1060
        %v2433 = vpop.f32.mrb[0].mxu0
        %v2434 = vadd.f32 0.0, %v2433
        %v2435 = vpop.f32.mrb[0].mxu0
        %v2436 = vpop.f32.mrb[0].mxu0
        %v2437 = vadd.f32 0.0, %v2436
        %v2438 = vpop.f32.mrb[0].mxu0
        %2439 = vmatprep.mubr.bf16.mxu0 0
        %2440 = vmatmul.mubr.bf16.gmra.mrb[0].mxu0 %v1063
        %v2441 = vpop.f32.mrb[0].mxu0
        %v2442 = vadd.f32 0.0, %v2441
        %v2443 = vpop.f32.mrb[0].mxu0
        %v2444 = vpop.f32.mrb[0].mxu0
        %v2445 = vadd.f32 0.0, %v2444
        %v2446 = vpop.f32.mrb[0].mxu0
        %2447 = vmatprep.mubr.bf16.mxu0 0
        %2448 = vmatmul.mubr.bf16.gmra.mrb[0].mxu0 %v1066
        %v2449 = vpop.f32.mrb[0].mxu0
        %v2450 = vadd.f32 0.0, %v2449
        %v2451 = vpop.f32.mrb[0].mxu0
        %v2452 = vpop.f32.mrb[0].mxu0
        %v2453 = vadd.f32 0.0, %v2452
        %v2454 = vpop.f32.mrb[0].mxu0
        %2455 = vmatprep.mubr.bf16.mxu0 0
        %2456 = vmatmul.mubr.bf16.gmra.mrb[0].mxu0 %v1069
        %v2457 = vpop.f32.mrb[0].mxu0
        %v2458 = vadd.f32 0.0, %v2457
        %v2459 = vpop.f32.mrb[0].mxu0
        %v2460 = vpop.f32.mrb[0].mxu0
        %v2461 = vadd.f32 0.0, %v2460
        %v2462 = vpop.f32.mrb[0].mxu0
        %2463 = vmatprep.mubr.bf16.mxu0 0
        %2464 = vmatmul.mubr.bf16.gmra.mrb[0].mxu0 %v1668
        %v2465 = vpop.f32.mrb[0].mxu0
        %v2466 = vadd.f32 0.0, %v2465
        %v2467 = vpop.f32.mrb[0].mxu0
        %v2468 = vpop.f32.mrb[0].mxu0
        %v2469 = vadd.f32 0.0, %v2468
        %v2470 = vpop.f32.mrb[0].mxu0
        %2471 = vmatprep.mubr.bf16.mxu0 0
        %2472 = vmatmul.mubr.bf16.gmra.mrb[0].mxu0 %v2314
        %v2473 = vpop.f32.mrb[0].mxu0
        %v2474 = vadd.f32 0.0, %v2473
        %v2475 = vpop.f32.mrb[0].mxu0
        %v2476 = vpop.f32.mrb[0].mxu0
        %v2477 = vadd.f32 0.0, %v2476
        %v2478 = vpop.f32.mrb[0].mxu0
        %2479 = vdwg.mxu0
        %v2480 = vadd.f32 %v2274, %v2354
        %v2481 = vadd.f32 %v2275, %v2357
        %v2482 = vadd.f32 %v2276, %v2362
        %v2483 = vadd.f32 %v2277, %v2365
        %v2484 = vadd.f32 %v2278, %v2370
        %v2485 = vadd.f32 %v2279, %v2373
        %v2486 = vadd.f32 %v2280, %v2378
        %v2487 = vadd.f32 %v2281, %v2381
        %v2488 = vadd.f32 %v2282, %v2386
        %v2489 = vadd.f32 %v2283, %v2389
        %v2490 = vadd.f32 %v2284, %v2394
        %v2491 = vadd.f32 %v2285, %v2397
        %v2492 = vadd.f32 %v2286, %v2402
        %v2493 = vadd.f32 %v2287, %v2405
        %v2494 = vadd.f32 %v2288, %v2410
        %v2495 = vadd.f32 %v2289, %v2413
        %v2496 = vadd.f32 %v2290, %v2418
        %v2497 = vadd.f32 %v2291, %v2421
        %v2498 = vadd.f32 %v2292, %v2426
        %v2499 = vadd.f32 %v2293, %v2429
        %v2500 = vadd.f32 %v2294, %v2434
        %v2501 = vadd.f32 %v2295, %v2437
        %v2502 = vadd.f32 %v2296, %v2442
        %v2503 = vadd.f32 %v2297, %v2445
        %v2504 = vadd.f32 %v2298, %v2450
        %v2505 = vadd.f32 %v2299, %v2453
        %v2506 = vadd.f32 %v2300, %v2458
        %v2507 = vadd.f32 %v2301, %v2461
        %v2508 = vadd.f32 %v2302, %v2466
        %v2509 = vadd.f32 %v2303, %v2469
        %v2510 = vadd.f32 %v2304, %v2474
        %v2511 = vadd.f32 %v2305, %v2477
        %v2513 = vshrl.u32 %v288, 16
        %v2515 = vrot.slane %v2513, 4
        %v2516 = vshll.u32 %v288, 16
        %v2518 = vrot.slane %v2516, 5
        %v2519 = vor.u32 %v2515, %v2518
        %v2520 = vrot.slane %v2519, 4
        %v2522 = vshll.u32 %v289, 16
        %v2524 = vrot.slane %v2522, 5
        %v2525 = vsel %vm294, %v2520, %v2524
        %v2526 = vshrl.u32 %v289, 16
        %v2528 = vrot.slane %v2526, 4
        %v2529 = vor.u32 %v2528, %v2524
        %v2530 = vrot.slane %v2529, 4
        %v2532 = vshll.u32 %v290, 16
        %v2534 = vrot.slane %v2532, 5
        %v2535 = vsel %vm294, %v2530, %v2534
        %s2536 = scalar_lea.vmem [#allocation5], 14
        %v2537 = vld [vmem:[%s2536] sm:$0x3]
        %v2538 = vunpack.c.l.b16 %v2525
        %v2539 = vunpack.c.l.b16 %v2535
        %v2540 = vpack.c.b16 %v2539, %v2538
        %v2542 = vsel %vm729, %v2540, 0
        %v2545 = vsel %vm778, %v2537, 0
        %2547 = vmatprep.subr.bf16.mxu0 0
        %2548 = vmatpush1.bf16.msra.mxu0 %v2545
        %2549 = vmatprep.subr.bf16.mxu0 0
        %2550 = vmatpush1.bf16.msra.mxu0 0
        %2551 = vmatprep.subr.bf16.mxu0 0
        %2552 = vmatpush1.bf16.msra.mxu0 0
        %2553 = vmatprep.subr.bf16.mxu0 0
        %2554 = vmatpush1.bf16.msra.mxu0 0
        %2555 = vmatprep.subr.bf16.mxu0 0
        %2556 = vmatpush1.bf16.msra.mxu0 0
        %2557 = vmatprep.subr.bf16.mxu0 0
        %2558 = vmatpush1.bf16.msra.mxu0 0
        %2559 = vmatprep.subr.bf16.mxu0 0
        %2560 = vmatpush1.bf16.msra.mxu0 0
        %2561 = vmatprep.subr.bf16.mxu0 0
        %2562 = vmatpush1.bf16.msra.mxu0 0
        %2563 = vmatprep.subr.bf16.mxu0 0
        %2564 = vmatpush1.bf16.msra.mxu0 0
        %2565 = vmatprep.subr.bf16.mxu0 0
        %2566 = vmatpush1.bf16.msra.mxu0 0
        %2567 = vmatprep.subr.bf16.mxu0 0
        %2568 = vmatpush1.bf16.msra.mxu0 0
        %2569 = vmatprep.subr.bf16.mxu0 0
        %2570 = vmatpush1.bf16.msra.mxu0 0
        %2571 = vmatprep.subr.bf16.mxu0 0
        %2572 = vmatpush1.bf16.msra.mxu0 0
        %2573 = vmatprep.subr.bf16.mxu0 0
        %2574 = vmatpush1.bf16.msra.mxu0 0
        %2575 = vmatprep.subr.bf16.mxu0 0
        %2576 = vmatpush1.bf16.msra.mxu0 0
        %2577 = vmatprep.subr.bf16.mxu0 0
        %2578 = vmatpush1.bf16.msra.mxu0 0
        %2579 = vmatprep.mubr.bf16.mxu0 0
        %2580 = vmatmul.mubr.bf16.gmra.mrb[0].mxu0 %v737
        %v2581 = vpop.f32.mrb[0].mxu0
        %v2582 = vadd.f32 0.0, %v2581
        %v2583 = vpop.f32.mrb[0].mxu0
        %v2584 = vpop.f32.mrb[0].mxu0
        %v2585 = vadd.f32 0.0, %v2584
        %v2586 = vpop.f32.mrb[0].mxu0
        %2587 = vmatprep.mubr.bf16.mxu0 0
        %2588 = vmatmul.mubr.bf16.gmra.mrb[0].mxu0 %v740
        %v2589 = vpop.f32.mrb[0].mxu0
        %v2590 = vadd.f32 0.0, %v2589
        %v2591 = vpop.f32.mrb[0].mxu0
        %v2592 = vpop.f32.mrb[0].mxu0
        %v2593 = vadd.f32 0.0, %v2592
        %v2594 = vpop.f32.mrb[0].mxu0
        %2595 = vmatprep.mubr.bf16.mxu0 0
        %2596 = vmatmul.mubr.bf16.gmra.mrb[0].mxu0 %v743
        %v2597 = vpop.f32.mrb[0].mxu0
        %v2598 = vadd.f32 0.0, %v2597
        %v2599 = vpop.f32.mrb[0].mxu0
        %v2600 = vpop.f32.mrb[0].mxu0
        %v2601 = vadd.f32 0.0, %v2600
        %v2602 = vpop.f32.mrb[0].mxu0
        %2603 = vmatprep.mubr.bf16.mxu0 0
        %2604 = vmatmul.mubr.bf16.gmra.mrb[0].mxu0 %v746
        %v2605 = vpop.f32.mrb[0].mxu0
        %v2606 = vadd.f32 0.0, %v2605
        %v2607 = vpop.f32.mrb[0].mxu0
        %v2608 = vpop.f32.mrb[0].mxu0
        %v2609 = vadd.f32 0.0, %v2608
        %v2610 = vpop.f32.mrb[0].mxu0
        %2611 = vmatprep.mubr.bf16.mxu0 0
        %2612 = vmatmul.mubr.bf16.gmra.mrb[0].mxu0 %v749
        %v2613 = vpop.f32.mrb[0].mxu0
        %v2614 = vadd.f32 0.0, %v2613
        %v2615 = vpop.f32.mrb[0].mxu0
        %v2616 = vpop.f32.mrb[0].mxu0
        %v2617 = vadd.f32 0.0, %v2616
        %v2618 = vpop.f32.mrb[0].mxu0
        %2619 = vmatprep.mubr.bf16.mxu0 0
        %2620 = vmatmul.mubr.bf16.gmra.mrb[0].mxu0 %v752
        %v2621 = vpop.f32.mrb[0].mxu0
        %v2622 = vadd.f32 0.0, %v2621
        %v2623 = vpop.f32.mrb[0].mxu0
        %v2624 = vpop.f32.mrb[0].mxu0
        %v2625 = vadd.f32 0.0, %v2624
        %v2626 = vpop.f32.mrb[0].mxu0
        %2627 = vmatprep.mubr.bf16.mxu0 0
        %2628 = vmatmul.mubr.bf16.gmra.mrb[0].mxu0 %v755
        %v2629 = vpop.f32.mrb[0].mxu0
        %v2630 = vadd.f32 0.0, %v2629
        %v2631 = vpop.f32.mrb[0].mxu0
        %v2632 = vpop.f32.mrb[0].mxu0
        %v2633 = vadd.f32 0.0, %v2632
        %v2634 = vpop.f32.mrb[0].mxu0
        %2635 = vmatprep.mubr.bf16.mxu0 0
        %2636 = vmatmul.mubr.bf16.gmra.mrb[0].mxu0 %v758
        %v2637 = vpop.f32.mrb[0].mxu0
        %v2638 = vadd.f32 0.0, %v2637
        %v2639 = vpop.f32.mrb[0].mxu0
        %v2640 = vpop.f32.mrb[0].mxu0
        %v2641 = vadd.f32 0.0, %v2640
        %v2642 = vpop.f32.mrb[0].mxu0
        %2643 = vmatprep.mubr.bf16.mxu0 0
        %2644 = vmatmul.mubr.bf16.gmra.mrb[0].mxu0 %v761
        %v2645 = vpop.f32.mrb[0].mxu0
        %v2646 = vadd.f32 0.0, %v2645
        %v2647 = vpop.f32.mrb[0].mxu0
        %v2648 = vpop.f32.mrb[0].mxu0
        %v2649 = vadd.f32 0.0, %v2648
        %v2650 = vpop.f32.mrb[0].mxu0
        %2651 = vmatprep.mubr.bf16.mxu0 0
        %2652 = vmatmul.mubr.bf16.gmra.mrb[0].mxu0 %v764
        %v2653 = vpop.f32.mrb[0].mxu0
        %v2654 = vadd.f32 0.0, %v2653
        %v2655 = vpop.f32.mrb[0].mxu0
        %v2656 = vpop.f32.mrb[0].mxu0
        %v2657 = vadd.f32 0.0, %v2656
        %v2658 = vpop.f32.mrb[0].mxu0
        %2659 = vmatprep.mubr.bf16.mxu0 0
        %2660 = vmatmul.mubr.bf16.gmra.mrb[0].mxu0 %v767
        %v2661 = vpop.f32.mrb[0].mxu0
        %v2662 = vadd.f32 0.0, %v2661
        %v2663 = vpop.f32.mrb[0].mxu0
        %v2664 = vpop.f32.mrb[0].mxu0
        %v2665 = vadd.f32 0.0, %v2664
        %v2666 = vpop.f32.mrb[0].mxu0
        %2667 = vmatprep.mubr.bf16.mxu0 0
        %2668 = vmatmul.mubr.bf16.gmra.mrb[0].mxu0 %v770
        %v2669 = vpop.f32.mrb[0].mxu0
        %v2670 = vadd.f32 0.0, %v2669
        %v2671 = vpop.f32.mrb[0].mxu0
        %v2672 = vpop.f32.mrb[0].mxu0
        %v2673 = vadd.f32 0.0, %v2672
        %v2674 = vpop.f32.mrb[0].mxu0
        %2675 = vmatprep.mubr.bf16.mxu0 0
        %2676 = vmatmul.mubr.bf16.gmra.mrb[0].mxu0 %v773
        %v2677 = vpop.f32.mrb[0].mxu0
        %v2678 = vadd.f32 0.0, %v2677
        %v2679 = vpop.f32.mrb[0].mxu0
        %v2680 = vpop.f32.mrb[0].mxu0
        %v2681 = vadd.f32 0.0, %v2680
        %v2682 = vpop.f32.mrb[0].mxu0
        %2683 = vmatprep.mubr.bf16.mxu0 0
        %2684 = vmatmul.mubr.bf16.gmra.mrb[0].mxu0 %v776
        %v2685 = vpop.f32.mrb[0].mxu0
        %v2686 = vadd.f32 0.0, %v2685
        %v2687 = vpop.f32.mrb[0].mxu0
        %v2688 = vpop.f32.mrb[0].mxu0
        %v2689 = vadd.f32 0.0, %v2688
        %v2690 = vpop.f32.mrb[0].mxu0
        %2691 = vmatprep.mubr.bf16.mxu0 0
        %2692 = vmatmul.mubr.bf16.gmra.mrb[0].mxu0 %v1896
        %v2693 = vpop.f32.mrb[0].mxu0
        %v2694 = vadd.f32 0.0, %v2693
        %v2695 = vpop.f32.mrb[0].mxu0
        %v2696 = vpop.f32.mrb[0].mxu0
        %v2697 = vadd.f32 0.0, %v2696
        %v2698 = vpop.f32.mrb[0].mxu0
        %2699 = vmatprep.mubr.bf16.mxu0 0
        %2700 = vmatmul.mubr.bf16.gmra.mrb[0].mxu0 %v2542
        %v2701 = vpop.f32.mrb[0].mxu0
        %v2702 = vadd.f32 0.0, %v2701
        %v2703 = vpop.f32.mrb[0].mxu0
        %v2704 = vpop.f32.mrb[0].mxu0
        %v2705 = vadd.f32 0.0, %v2704
        %v2706 = vpop.f32.mrb[0].mxu0
        %2707 = vdwg.mxu0
        %v2708 = vadd.f32 %v2480, %v2582
        %v2709 = vadd.f32 %v2481, %v2585
        %v2710 = vadd.f32 %v2482, %v2590
        %v2711 = vadd.f32 %v2483, %v2593
        %v2712 = vadd.f32 %v2484, %v2598
        %v2713 = vadd.f32 %v2485, %v2601
        %v2714 = vadd.f32 %v2486, %v2606
        %v2715 = vadd.f32 %v2487, %v2609
        %v2716 = vadd.f32 %v2488, %v2614
        %v2717 = vadd.f32 %v2489, %v2617
        %v2718 = vadd.f32 %v2490, %v2622
        %v2719 = vadd.f32 %v2491, %v2625
        %v2720 = vadd.f32 %v2492, %v2630
        %v2721 = vadd.f32 %v2493, %v2633
        %v2722 = vadd.f32 %v2494, %v2638
        %v2723 = vadd.f32 %v2495, %v2641
        %v2724 = vadd.f32 %v2496, %v2646
        %v2725 = vadd.f32 %v2497, %v2649
        %v2726 = vadd.f32 %v2498, %v2654
        %v2727 = vadd.f32 %v2499, %v2657
        %v2728 = vadd.f32 %v2500, %v2662
        %v2729 = vadd.f32 %v2501, %v2665
        %v2730 = vadd.f32 %v2502, %v2670
        %v2731 = vadd.f32 %v2503, %v2673
        %v2732 = vadd.f32 %v2504, %v2678
        %v2733 = vadd.f32 %v2505, %v2681
        %v2734 = vadd.f32 %v2506, %v2686
        %v2735 = vadd.f32 %v2507, %v2689
        %v2736 = vadd.f32 %v2508, %v2694
        %v2737 = vadd.f32 %v2509, %v2697
        %v2738 = vadd.f32 %v2510, %v2702
        %v2739 = vadd.f32 %v2511, %v2705
        %v2741 = vrot.slane %v288, 5
        %v2742 = vrot.slane %v2741, 4
        %v2743 = vrot.slane %v289, 5
        %v2744 = vsel %vm1253, %v2742, %v2743
        %v2745 = vrot.slane %v2743, 4
        %v2746 = vrot.slane %v290, 5
        %v2747 = vsel %vm1253, %v2745, %v2746
        %s2748 = scalar_lea.vmem [#allocation5], 16
        %v2749 = vld [vmem:[%s2748] sm:$0x3]
        %v2750 = vunpack.c.l.b16 %v2744
        %v2751 = vunpack.c.l.b16 %v2747
        %v2752 = vpack.c.b16 %v2751, %v2750
        %v2754 = vsel %vm729, %v2752, 0
        %v2757 = vsel %vm778, %v2749, 0
        %2759 = vmatprep.subr.bf16.mxu0 0
        %2760 = vmatpush1.bf16.msra.mxu0 %v2757
        %2761 = vmatprep.subr.bf16.mxu0 0
        %2762 = vmatpush1.bf16.msra.mxu0 0
        %2763 = vmatprep.subr.bf16.mxu0 0
        %2764 = vmatpush1.bf16.msra.mxu0 0
        %2765 = vmatprep.subr.bf16.mxu0 0
        %2766 = vmatpush1.bf16.msra.mxu0 0
        %2767 = vmatprep.subr.bf16.mxu0 0
        %2768 = vmatpush1.bf16.msra.mxu0 0
        %2769 = vmatprep.subr.bf16.mxu0 0
        %2770 = vmatpush1.bf16.msra.mxu0 0
        %2771 = vmatprep.subr.bf16.mxu0 0
        %2772 = vmatpush1.bf16.msra.mxu0 0
        %2773 = vmatprep.subr.bf16.mxu0 0
        %2774 = vmatpush1.bf16.msra.mxu0 0
        %2775 = vmatprep.subr.bf16.mxu0 0
        %2776 = vmatpush1.bf16.msra.mxu0 0
        %2777 = vmatprep.subr.bf16.mxu0 0
        %2778 = vmatpush1.bf16.msra.mxu0 0
        %2779 = vmatprep.subr.bf16.mxu0 0
        %2780 = vmatpush1.bf16.msra.mxu0 0
        %2781 = vmatprep.subr.bf16.mxu0 0
        %2782 = vmatpush1.bf16.msra.mxu0 0
        %2783 = vmatprep.subr.bf16.mxu0 0
        %2784 = vmatpush1.bf16.msra.mxu0 0
        %2785 = vmatprep.subr.bf16.mxu0 0
        %2786 = vmatpush1.bf16.msra.mxu0 0
        %2787 = vmatprep.subr.bf16.mxu0 0
        %2788 = vmatpush1.bf16.msra.mxu0 0
        %2789 = vmatprep.subr.bf16.mxu0 0
        %2790 = vmatpush1.bf16.msra.mxu0 0
        %2791 = vmatprep.mubr.bf16.mxu0 0
        %2792 = vmatmul.mubr.bf16.gmra.mrb[0].mxu0 %v1423
        %v2793 = vpop.f32.mrb[0].mxu0
        %v2794 = vadd.f32 0.0, %v2793
        %v2795 = vpop.f32.mrb[0].mxu0
        %v2796 = vpop.f32.mrb[0].mxu0
        %v2797 = vadd.f32 0.0, %v2796
        %v2798 = vpop.f32.mrb[0].mxu0
        %2799 = vmatprep.mubr.bf16.mxu0 0
        %2800 = vmatmul.mubr.bf16.gmra.mrb[0].mxu0 %v1426
        %v2801 = vpop.f32.mrb[0].mxu0
        %v2802 = vadd.f32 0.0, %v2801
        %v2803 = vpop.f32.mrb[0].mxu0
        %v2804 = vpop.f32.mrb[0].mxu0
        %v2805 = vadd.f32 0.0, %v2804
        %v2806 = vpop.f32.mrb[0].mxu0
        %2807 = vmatprep.mubr.bf16.mxu0 0
        %2808 = vmatmul.mubr.bf16.gmra.mrb[0].mxu0 %v1429
        %v2809 = vpop.f32.mrb[0].mxu0
        %v2810 = vadd.f32 0.0, %v2809
        %v2811 = vpop.f32.mrb[0].mxu0
        %v2812 = vpop.f32.mrb[0].mxu0
        %v2813 = vadd.f32 0.0, %v2812
        %v2814 = vpop.f32.mrb[0].mxu0
        %2815 = vmatprep.mubr.bf16.mxu0 0
        %2816 = vmatmul.mubr.bf16.gmra.mrb[0].mxu0 %v1432
        %v2817 = vpop.f32.mrb[0].mxu0
        %v2818 = vadd.f32 0.0, %v2817
        %v2819 = vpop.f32.mrb[0].mxu0
        %v2820 = vpop.f32.mrb[0].mxu0
        %v2821 = vadd.f32 0.0, %v2820
        %v2822 = vpop.f32.mrb[0].mxu0
        %2823 = vmatprep.mubr.bf16.mxu0 0
        %2824 = vmatmul.mubr.bf16.gmra.mrb[0].mxu0 %v1435
        %v2825 = vpop.f32.mrb[0].mxu0
        %v2826 = vadd.f32 0.0, %v2825
        %v2827 = vpop.f32.mrb[0].mxu0
        %v2828 = vpop.f32.mrb[0].mxu0
        %v2829 = vadd.f32 0.0, %v2828
        %v2830 = vpop.f32.mrb[0].mxu0
        %2831 = vmatprep.mubr.bf16.mxu0 0
        %2832 = vmatmul.mubr.bf16.gmra.mrb[0].mxu0 %v1438
        %v2833 = vpop.f32.mrb[0].mxu0
        %v2834 = vadd.f32 0.0, %v2833
        %v2835 = vpop.f32.mrb[0].mxu0
        %v2836 = vpop.f32.mrb[0].mxu0
        %v2837 = vadd.f32 0.0, %v2836
        %v2838 = vpop.f32.mrb[0].mxu0
        %2839 = vmatprep.mubr.bf16.mxu0 0
        %2840 = vmatmul.mubr.bf16.gmra.mrb[0].mxu0 %v1441
        %v2841 = vpop.f32.mrb[0].mxu0
        %v2842 = vadd.f32 0.0, %v2841
        %v2843 = vpop.f32.mrb[0].mxu0
        %v2844 = vpop.f32.mrb[0].mxu0
        %v2845 = vadd.f32 0.0, %v2844
        %v2846 = vpop.f32.mrb[0].mxu0
        %2847 = vmatprep.mubr.bf16.mxu0 0
        %2848 = vmatmul.mubr.bf16.gmra.mrb[0].mxu0 %v1444
        %v2849 = vpop.f32.mrb[0].mxu0
        %v2850 = vadd.f32 0.0, %v2849
        %v2851 = vpop.f32.mrb[0].mxu0
        %v2852 = vpop.f32.mrb[0].mxu0
        %v2853 = vadd.f32 0.0, %v2852
        %v2854 = vpop.f32.mrb[0].mxu0
        %2855 = vmatprep.mubr.bf16.mxu0 0
        %2856 = vmatmul.mubr.bf16.gmra.mrb[0].mxu0 %v1447
        %v2857 = vpop.f32.mrb[0].mxu0
        %v2858 = vadd.f32 0.0, %v2857
        %v2859 = vpop.f32.mrb[0].mxu0
        %v2860 = vpop.f32.mrb[0].mxu0
        %v2861 = vadd.f32 0.0, %v2860
        %v2862 = vpop.f32.mrb[0].mxu0
        %2863 = vmatprep.mubr.bf16.mxu0 0
        %2864 = vmatmul.mubr.bf16.gmra.mrb[0].mxu0 %v1450
        %v2865 = vpop.f32.mrb[0].mxu0
        %v2866 = vadd.f32 0.0, %v2865
        %v2867 = vpop.f32.mrb[0].mxu0
        %v2868 = vpop.f32.mrb[0].mxu0
        %v2869 = vadd.f32 0.0, %v2868
        %v2870 = vpop.f32.mrb[0].mxu0
        %2871 = vmatprep.mubr.bf16.mxu0 0
        %2872 = vmatmul.mubr.bf16.gmra.mrb[0].mxu0 %v1453
        %v2873 = vpop.f32.mrb[0].mxu0
        %v2874 = vadd.f32 0.0, %v2873
        %v2875 = vpop.f32.mrb[0].mxu0
        %v2876 = vpop.f32.mrb[0].mxu0
        %v2877 = vadd.f32 0.0, %v2876
        %v2878 = vpop.f32.mrb[0].mxu0
        %2879 = vmatprep.mubr.bf16.mxu0 0
        %2880 = vmatmul.mubr.bf16.gmra.mrb[0].mxu0 %v1456
        %v2881 = vpop.f32.mrb[0].mxu0
        %v2882 = vadd.f32 0.0, %v2881
        %v2883 = vpop.f32.mrb[0].mxu0
        %v2884 = vpop.f32.mrb[0].mxu0
        %v2885 = vadd.f32 0.0, %v2884
        %v2886 = vpop.f32.mrb[0].mxu0
        %2887 = vmatprep.mubr.bf16.mxu0 0
        %2888 = vmatmul.mubr.bf16.gmra.mrb[0].mxu0 %v1459
        %v2889 = vpop.f32.mrb[0].mxu0
        %v2890 = vadd.f32 0.0, %v2889
        %v2891 = vpop.f32.mrb[0].mxu0
        %v2892 = vpop.f32.mrb[0].mxu0
        %v2893 = vadd.f32 0.0, %v2892
        %v2894 = vpop.f32.mrb[0].mxu0
        %2895 = vmatprep.mubr.bf16.mxu0 0
        %2896 = vmatmul.mubr.bf16.gmra.mrb[0].mxu0 %v1462
        %v2897 = vpop.f32.mrb[0].mxu0
        %v2898 = vadd.f32 0.0, %v2897
        %v2899 = vpop.f32.mrb[0].mxu0
        %v2900 = vpop.f32.mrb[0].mxu0
        %v2901 = vadd.f32 0.0, %v2900
        %v2902 = vpop.f32.mrb[0].mxu0
        %2903 = vmatprep.mubr.bf16.mxu0 0
        %2904 = vmatmul.mubr.bf16.gmra.mrb[0].mxu0 %v2108
        %v2905 = vpop.f32.mrb[0].mxu0
        %v2906 = vadd.f32 0.0, %v2905
        %v2907 = vpop.f32.mrb[0].mxu0
        %v2908 = vpop.f32.mrb[0].mxu0
        %v2909 = vadd.f32 0.0, %v2908
        %v2910 = vpop.f32.mrb[0].mxu0
        %2911 = vmatprep.mubr.bf16.mxu0 0
        %2912 = vmatmul.mubr.bf16.gmra.mrb[0].mxu0 %v2754
        %v2913 = vpop.f32.mrb[0].mxu0
        %v2914 = vadd.f32 0.0, %v2913
        %v2915 = vpop.f32.mrb[0].mxu0
        %v2916 = vpop.f32.mrb[0].mxu0
        %v2917 = vadd.f32 0.0, %v2916
        %v2918 = vpop.f32.mrb[0].mxu0
        %2919 = vdwg.mxu0
        %v2920 = vadd.f32 %v2708, %v2794
        %v2921 = vadd.f32 %v2709, %v2797
        %v2922 = vadd.f32 %v2710, %v2802
        %v2923 = vadd.f32 %v2711, %v2805
        %v2924 = vadd.f32 %v2712, %v2810
        %v2925 = vadd.f32 %v2713, %v2813
        %v2926 = vadd.f32 %v2714, %v2818
        %v2927 = vadd.f32 %v2715, %v2821
        %v2928 = vadd.f32 %v2716, %v2826
        %v2929 = vadd.f32 %v2717, %v2829
        %v2930 = vadd.f32 %v2718, %v2834
        %v2931 = vadd.f32 %v2719, %v2837
        %v2932 = vadd.f32 %v2720, %v2842
        %v2933 = vadd.f32 %v2721, %v2845
        %v2934 = vadd.f32 %v2722, %v2850
        %v2935 = vadd.f32 %v2723, %v2853
        %v2936 = vadd.f32 %v2724, %v2858
        %v2937 = vadd.f32 %v2725, %v2861
        %v2938 = vadd.f32 %v2726, %v2866
        %v2939 = vadd.f32 %v2727, %v2869
        %v2940 = vadd.f32 %v2728, %v2874
        %v2941 = vadd.f32 %v2729, %v2877
        %v2942 = vadd.f32 %v2730, %v2882
        %v2943 = vadd.f32 %v2731, %v2885
        %v2944 = vadd.f32 %v2732, %v2890
        %v2945 = vadd.f32 %v2733, %v2893
        %v2946 = vadd.f32 %v2734, %v2898
        %v2947 = vadd.f32 %v2735, %v2901
        %v2948 = vadd.f32 %v2736, %v2906
        %v2949 = vadd.f32 %v2737, %v2909
        %v2950 = vadd.f32 %v2738, %v2914
        %v2951 = vadd.f32 %v2739, %v2917
        %v2953 = vlaneseq
        %v2954 = vshrl.u32 %v2953, 7
        %v2955 = vsub.s32 0, %v2954
        %v2956 = vrot.slane %v233, %v2955
        %v2958 = vadd.f32 %v2920, %v2956
        %v2959 = vadd.f32 %v2921, %v2956
        %v2960 = vadd.f32 %v2922, %v2956
        %v2961 = vadd.f32 %v2923, %v2956
        %v2962 = vadd.f32 %v2924, %v2956
        %v2963 = vadd.f32 %v2925, %v2956
        %v2964 = vadd.f32 %v2926, %v2956
        %v2965 = vadd.f32 %v2927, %v2956
        %v2966 = vadd.f32 %v2928, %v2956
        %v2967 = vadd.f32 %v2929, %v2956
        %v2968 = vadd.f32 %v2930, %v2956
        %v2969 = vadd.f32 %v2931, %v2956
        %v2970 = vadd.f32 %v2932, %v2956
        %v2971 = vadd.f32 %v2933, %v2956
        %v2972 = vadd.f32 %v2934, %v2956
        %v2973 = vadd.f32 %v2935, %v2956
        %v2974 = vadd.f32 %v2936, %v2956
        %v2975 = vadd.f32 %v2937, %v2956
        %v2976 = vadd.f32 %v2938, %v2956
        %v2977 = vadd.f32 %v2939, %v2956
        %v2978 = vadd.f32 %v2940, %v2956
        %v2979 = vadd.f32 %v2941, %v2956
        %v2980 = vadd.f32 %v2942, %v2956
        %v2981 = vadd.f32 %v2943, %v2956
        %v2982 = vadd.f32 %v2944, %v2956
        %v2983 = vadd.f32 %v2945, %v2956
        %v2984 = vadd.f32 %v2946, %v2956
        %v2985 = vadd.f32 %v2947, %v2956
        %v2986 = vadd.f32 %v2948, %v2956
        %v2987 = vadd.f32 %v2949, %v2956
        %v2988 = vadd.f32 %v2950, %v2956
        %v2989 = vadd.f32 %v2951, %v2956
        %v2990 = vxor.u32 %v2958, 2147483648
        %v2991 = vxor.u32 %v2959, 2147483648
        %v2992 = vxor.u32 %v2960, 2147483648
        %v2993 = vxor.u32 %v2961, 2147483648
        %v2994 = vxor.u32 %v2962, 2147483648
        %v2995 = vxor.u32 %v2963, 2147483648
        %v2996 = vxor.u32 %v2964, 2147483648
        %v2997 = vxor.u32 %v2965, 2147483648
        %v2998 = vxor.u32 %v2966, 2147483648
        %v2999 = vxor.u32 %v2967, 2147483648
        %v3000 = vxor.u32 %v2968, 2147483648
        %v3001 = vxor.u32 %v2969, 2147483648
        %v3002 = vxor.u32 %v2970, 2147483648
        %v3003 = vxor.u32 %v2971, 2147483648
        %v3004 = vxor.u32 %v2972, 2147483648
        %v3005 = vxor.u32 %v2973, 2147483648
        %v3006 = vxor.u32 %v2974, 2147483648
        %v3007 = vxor.u32 %v2975, 2147483648
        %v3008 = vxor.u32 %v2976, 2147483648
        %v3009 = vxor.u32 %v2977, 2147483648
        %v3010 = vxor.u32 %v2978, 2147483648
        %v3011 = vxor.u32 %v2979, 2147483648
        %v3012 = vxor.u32 %v2980, 2147483648
        %v3013 = vxor.u32 %v2981, 2147483648
        %v3014 = vxor.u32 %v2982, 2147483648
        %v3015 = vxor.u32 %v2983, 2147483648
        %v3016 = vxor.u32 %v2984, 2147483648
        %v3017 = vxor.u32 %v2985, 2147483648
        %v3018 = vxor.u32 %v2986, 2147483648
        %v3019 = vxor.u32 %v2987, 2147483648
        %v3020 = vxor.u32 %v2988, 2147483648
        %v3021 = vxor.u32 %v2989, 2147483648
        %v3022 = vmul.f32 %v2990, 1.442695
        %v3023 = vpow.pop %v3022
        %v3024 = vmul.f32 %v2991, 1.442695
        %v3025 = vpow.pop %v3024
        %v3026 = vmul.f32 %v2992, 1.442695
        %v3027 = vpow.pop %v3026
        %v3028 = vmul.f32 %v2993, 1.442695
        %v3029 = vpow.pop %v3028
        %v3030 = vmul.f32 %v2994, 1.442695
        %v3031 = vpow.pop %v3030
        %v3032 = vmul.f32 %v2995, 1.442695
        %v3033 = vpow.pop %v3032
        %v3034 = vmul.f32 %v2996, 1.442695
        %v3035 = vpow.pop %v3034
        %v3036 = vmul.f32 %v2997, 1.442695
        %v3037 = vpow.pop %v3036
        %v3038 = vmul.f32 %v2998, 1.442695
        %v3039 = vpow.pop %v3038
        %v3040 = vmul.f32 %v2999, 1.442695
        %v3041 = vpow.pop %v3040
        %v3042 = vmul.f32 %v3000, 1.442695
        %v3043 = vpow.pop %v3042
        %v3044 = vmul.f32 %v3001, 1.442695
        %v3045 = vpow.pop %v3044
        %v3046 = vmul.f32 %v3002, 1.442695
        %v3047 = vpow.pop %v3046
        %v3048 = vmul.f32 %v3003, 1.442695
        %v3049 = vpow.pop %v3048
        %v3050 = vmul.f32 %v3004, 1.442695
        %v3051 = vpow.pop %v3050
        %v3052 = vmul.f32 %v3005, 1.442695
        %v3053 = vpow.pop %v3052
        %v3054 = vmul.f32 %v3006, 1.442695
        %v3055 = vpow.pop %v3054
        %v3056 = vmul.f32 %v3007, 1.442695
        %v3057 = vpow.pop %v3056
        %v3058 = vmul.f32 %v3008, 1.442695
        %v3059 = vpow.pop %v3058
        %v3060 = vmul.f32 %v3009, 1.442695
        %v3061 = vpow.pop %v3060
        %v3062 = vmul.f32 %v3010, 1.442695
        %v3063 = vpow.pop %v3062
        %v3064 = vmul.f32 %v3011, 1.442695
        %v3065 = vpow.pop %v3064
        %v3066 = vmul.f32 %v3012, 1.442695
        %v3067 = vpow.pop %v3066
        %v3068 = vmul.f32 %v3013, 1.442695
        %v3069 = vpow.pop %v3068
        %v3070 = vmul.f32 %v3014, 1.442695
        %v3071 = vpow.pop %v3070
        %v3072 = vmul.f32 %v3015, 1.442695
        %v3073 = vpow.pop %v3072
        %v3074 = vmul.f32 %v3016, 1.442695
        %v3075 = vpow.pop %v3074
        %v3076 = vmul.f32 %v3017, 1.442695
        %v3077 = vpow.pop %v3076
        %v3078 = vmul.f32 %v3018, 1.442695
        %v3079 = vpow.pop %v3078
        %v3080 = vmul.f32 %v3019, 1.442695
        %v3081 = vpow.pop %v3080
        %v3082 = vmul.f32 %v3020, 1.442695
        %v3083 = vpow.pop %v3082
        %v3084 = vmul.f32 %v3021, 1.442695
        %v3085 = vpow.pop %v3084
        %v3086 = vadd.f32 %v3023, 1.0
        %v3087 = vadd.f32 %v3025, 1.0
        %v3088 = vadd.f32 %v3027, 1.0
        %v3089 = vadd.f32 %v3029, 1.0
        %v3090 = vadd.f32 %v3031, 1.0
        %v3091 = vadd.f32 %v3033, 1.0
        %v3092 = vadd.f32 %v3035, 1.0
        %v3093 = vadd.f32 %v3037, 1.0
        %v3094 = vadd.f32 %v3039, 1.0
        %v3095 = vadd.f32 %v3041, 1.0
        %v3096 = vadd.f32 %v3043, 1.0
        %v3097 = vadd.f32 %v3045, 1.0
        %v3098 = vadd.f32 %v3047, 1.0
        %v3099 = vadd.f32 %v3049, 1.0
        %v3100 = vadd.f32 %v3051, 1.0
        %v3101 = vadd.f32 %v3053, 1.0
        %v3102 = vadd.f32 %v3055, 1.0
        %v3103 = vadd.f32 %v3057, 1.0
        %v3104 = vadd.f32 %v3059, 1.0
        %v3105 = vadd.f32 %v3061, 1.0
        %v3106 = vadd.f32 %v3063, 1.0
        %v3107 = vadd.f32 %v3065, 1.0
        %v3108 = vadd.f32 %v3067, 1.0
        %v3109 = vadd.f32 %v3069, 1.0
        %v3110 = vadd.f32 %v3071, 1.0
        %v3111 = vadd.f32 %v3073, 1.0
        %v3112 = vadd.f32 %v3075, 1.0
        %v3113 = vadd.f32 %v3077, 1.0
        %v3114 = vadd.f32 %v3079, 1.0
        %v3115 = vadd.f32 %v3081, 1.0
        %v3116 = vadd.f32 %v3083, 1.0
        %v3117 = vadd.f32 %v3085, 1.0
        %v3118 = vrcp.pop %v3086
        %v3119 = vmul.f32 1.0, %v3118
        %v3120 = vrcp.pop %v3087
        %v3121 = vmul.f32 1.0, %v3120
        %v3122 = vrcp.pop %v3088
        %v3123 = vmul.f32 1.0, %v3122
        %v3124 = vrcp.pop %v3089
        %v3125 = vmul.f32 1.0, %v3124
        %v3126 = vrcp.pop %v3090
        %v3127 = vmul.f32 1.0, %v3126
        %v3128 = vrcp.pop %v3091
        %v3129 = vmul.f32 1.0, %v3128
        %v3130 = vrcp.pop %v3092
        %v3131 = vmul.f32 1.0, %v3130
        %v3132 = vrcp.pop %v3093
        %v3133 = vmul.f32 1.0, %v3132
        %v3134 = vrcp.pop %v3094
        %v3135 = vmul.f32 1.0, %v3134
        %v3136 = vrcp.pop %v3095
        %v3137 = vmul.f32 1.0, %v3136
        %v3138 = vrcp.pop %v3096
        %v3139 = vmul.f32 1.0, %v3138
        %v3140 = vrcp.pop %v3097
        %v3141 = vmul.f32 1.0, %v3140
        %v3142 = vrcp.pop %v3098
        %v3143 = vmul.f32 1.0, %v3142
        %v3144 = vrcp.pop %v3099
        %v3145 = vmul.f32 1.0, %v3144
        %v3146 = vrcp.pop %v3100
        %v3147 = vmul.f32 1.0, %v3146
        %v3148 = vrcp.pop %v3101
        %v3149 = vmul.f32 1.0, %v3148
        %v3150 = vrcp.pop %v3102
        %v3151 = vmul.f32 1.0, %v3150
        %v3152 = vrcp.pop %v3103
        %v3153 = vmul.f32 1.0, %v3152
        %v3154 = vrcp.pop %v3104
        %v3155 = vmul.f32 1.0, %v3154
        %v3156 = vrcp.pop %v3105
        %v3157 = vmul.f32 1.0, %v3156
        %v3158 = vrcp.pop %v3106
        %v3159 = vmul.f32 1.0, %v3158
        %v3160 = vrcp.pop %v3107
        %v3161 = vmul.f32 1.0, %v3160
        %v3162 = vrcp.pop %v3108
        %v3163 = vmul.f32 1.0, %v3162
        %v3164 = vrcp.pop %v3109
        %v3165 = vmul.f32 1.0, %v3164
        %v3166 = vrcp.pop %v3110
        %v3167 = vmul.f32 1.0, %v3166
        %v3168 = vrcp.pop %v3111
        %v3169 = vmul.f32 1.0, %v3168
        %v3170 = vrcp.pop %v3112
        %v3171 = vmul.f32 1.0, %v3170
        %v3172 = vrcp.pop %v3113
        %v3173 = vmul.f32 1.0, %v3172
        %v3174 = vrcp.pop %v3114
        %v3175 = vmul.f32 1.0, %v3174
        %v3176 = vrcp.pop %v3115
        %v3177 = vmul.f32 1.0, %v3176
        %v3178 = vrcp.pop %v3116
        %v3179 = vmul.f32 1.0, %v3178
        %v3180 = vrcp.pop %v3117
        %v3181 = vmul.f32 1.0, %v3180
        %v3182 = vmul.f32 %v2958, %v3119
        %v3183 = vmul.f32 %v2959, %v3121
        %v3184 = vmul.f32 %v2960, %v3123
        %v3185 = vmul.f32 %v2961, %v3125
        %v3186 = vmul.f32 %v2962, %v3127
        %v3187 = vmul.f32 %v2963, %v3129
        %v3188 = vmul.f32 %v2964, %v3131
        %v3189 = vmul.f32 %v2965, %v3133
        %v3190 = vmul.f32 %v2966, %v3135
        %v3191 = vmul.f32 %v2967, %v3137
        %v3192 = vmul.f32 %v2968, %v3139
        %v3193 = vmul.f32 %v2969, %v3141
        %v3194 = vmul.f32 %v2970, %v3143
        %v3195 = vmul.f32 %v2971, %v3145
        %v3196 = vmul.f32 %v2972, %v3147
        %v3197 = vmul.f32 %v2973, %v3149
        %v3198 = vmul.f32 %v2974, %v3151
        %v3199 = vmul.f32 %v2975, %v3153
        %v3200 = vmul.f32 %v2976, %v3155
        %v3201 = vmul.f32 %v2977, %v3157
        %v3202 = vmul.f32 %v2978, %v3159
        %v3203 = vmul.f32 %v2979, %v3161
        %v3204 = vmul.f32 %v2980, %v3163
        %v3205 = vmul.f32 %v2981, %v3165
        %v3206 = vmul.f32 %v2982, %v3167
        %v3207 = vmul.f32 %v2983, %v3169
        %v3208 = vmul.f32 %v2984, %v3171
        %v3209 = vmul.f32 %v2985, %v3173
        %v3210 = vmul.f32 %v2986, %v3175
        %v3211 = vmul.f32 %v2987, %v3177
        %v3212 = vmul.f32 %v2988, %v3179
        %v3213 = vmul.f32 %v2989, %v3181
        %vm3214 = vcmask 64512
        %3215 = vst.msk [vmem:[%s229] sm:$0xff] %vm3214, %v3182
        %3216 = vst.msk [vmem:[%s229 + $0x8] sm:$0xff] %vm3214, %v3183
        %3217 = vst.msk [vmem:[%s229 + $0x10] sm:$0xff] %vm3214, %v3184
        %3218 = vst.msk [vmem:[%s229 + $0x18] sm:$0xff] %vm3214, %v3185
        %3219 = vst.msk [vmem:[%s229 + $0x20] sm:$0xff] %vm3214, %v3186
        %3220 = vst.msk [vmem:[%s229 + $0x28] sm:$0xff] %vm3214, %v3187
        %3221 = vst.msk [vmem:[%s229 + $0x30] sm:$0xff] %vm3214, %v3188
        %3222 = vst.msk [vmem:[%s229 + $0x38] sm:$0xff] %vm3214, %v3189
        %3223 = vst.msk [vmem:[%s229 + $0x40] sm:$0xff] %vm3214, %v3190
        %3224 = vst.msk [vmem:[%s229 + $0x48] sm:$0xff] %vm3214, %v3191
        %3225 = vst.msk [vmem:[%s229 + $0x50] sm:$0xff] %vm3214, %v3192
        %3226 = vst.msk [vmem:[%s229 + $0x58] sm:$0xff] %vm3214, %v3193
        %3227 = vst.msk [vmem:[%s229 + $0x60] sm:$0xff] %vm3214, %v3194
        %3228 = vst.msk [vmem:[%s229 + $0x68] sm:$0xff] %vm3214, %v3195
        %3229 = vst.msk [vmem:[%s229 + $0x70] sm:$0xff] %vm3214, %v3196
        %3230 = vst.msk [vmem:[%s229 + $0x78] sm:$0xff] %vm3214, %v3197
        %3231 = vst.msk [vmem:[%s229 + $0x80] sm:$0xff] %vm3214, %v3198
        %3232 = vst.msk [vmem:[%s229 + $0x88] sm:$0xff] %vm3214, %v3199
        %3233 = vst.msk [vmem:[%s229 + $0x90] sm:$0xff] %vm3214, %v3200
        %3234 = vst.msk [vmem:[%s229 + $0x98] sm:$0xff] %vm3214, %v3201
        %3235 = vst.msk [vmem:[%s229 + $0xa0] sm:$0xff] %vm3214, %v3202
        %3236 = vst.msk [vmem:[%s229 + $0xa8] sm:$0xff] %vm3214, %v3203
        %3237 = vst.msk [vmem:[%s229 + $0xb0] sm:$0xff] %vm3214, %v3204
        %3238 = vst.msk [vmem:[%s229 + $0xb8] sm:$0xff] %vm3214, %v3205
        %3239 = vst.msk [vmem:[%s229 + $0xc0] sm:$0xff] %vm3214, %v3206
        %3240 = vst.msk [vmem:[%s229 + $0xc8] sm:$0xff] %vm3214, %v3207
        %3241 = vst.msk [vmem:[%s229 + $0xd0] sm:$0xff] %vm3214, %v3208
        %3242 = vst.msk [vmem:[%s229 + $0xd8] sm:$0xff] %vm3214, %v3209
        %3243 = vst.msk [vmem:[%s229 + $0xe0] sm:$0xff] %vm3214, %v3210
        %3244 = vst.msk [vmem:[%s229 + $0xe8] sm:$0xff] %vm3214, %v3211
        %3245 = vst.msk [vmem:[%s229 + $0xf0] sm:$0xff] %vm3214, %v3212
        %3246 = vst.msk [vmem:[%s229 + $0xf8] sm:$0xff] %vm3214, %v3213
        %s3247 = sand.u32 %s111, 1
        %s3248 = scalar_lea.sflag [#allocation4], %s3247
        %s3249 = sand.u32 %s111, 1
        %s3250 = smul.addr %s3249, 256
        %s3251 = scalar_lea.vmem [#allocation8], %s3250
        // Predicated region
        $region45: #{tpu_custom_call.1} parent=31 // pred_check
          %p3252 = pneg %p121
        $region46: #{tpu_custom_call.1} parent=31 // pred_check_branch
          %3254 = sbr.rel (%p3252) target = $region48
        $region47: #{tpu_custom_call.1} parent=31 // pred_region
          %s3255 = smul.u32 32, %s26
          %s3257 = ssub.s32 4096, 4096
          %3258 = vsyncadd %s3248, %s3257
          %s3259 = smul.addr %s25, 32
          %s3260 = sadd.s32 %s3255, %s3259
          %s3261 = smul.addr %s3260, 128
          %s3262 = scalar_lea.hbm %s3, %s3261
          %s3263 = sshll.u32 %s3251, 4
          %s3264 = int_to_ptr.vmem [resolvable:$true] %s3263
          %3269 = dma.vmem_to_hbm [thread:$0]  %s3264, 4096, %s3262, %s3248, 128, 128, 8
        $region48: #{tpu_custom_call.1} parent=31 // pred_fallthru
          _
      $region32: #{tpu_custom_call.1} parent=5 // pred_fallthru
        _
      %p3270 = scmp.le.s32.totalorder 2, %s16
      // Predicated region
      $region49: #{tpu_custom_call.1} parent=5 // pred_check
        %p3271 = pneg %p3270
      $region50: #{tpu_custom_call.1} parent=5 // pred_check_branch
        %3273 = sbr.rel (%p3271) target = $region52
      $region51: #{tpu_custom_call.1} parent=5 // pred_region
        %s3274 = ssub.s32 %s16, 2
        // Predicated region
        $region53: #{tpu_custom_call.1} parent=51 // pred_check
          %p3275 = pneg %p127
        $region54: #{tpu_custom_call.1} parent=51 // pred_check_branch
          %3277 = sbr.rel (%p3275) target = $region56
        $region55: #{tpu_custom_call.1} parent=51 // pred_region
          %s3278 = sand.u32 %s112, 1
          %s3279 = scalar_lea.sflag [#allocation4], %s3278
          %s3280 = sand.u32 %s112, 1
          %s3281 = smul.addr %s3280, 256
          %s3282 = scalar_lea.vmem [#allocation8], %s3281
          %3283 = dma.done %s3279, 4096
        $region56: #{tpu_custom_call.1} parent=51 // pred_fallthru
          _
      $region52: #{tpu_custom_call.1} parent=5 // pred_fallthru
        _
    $region6: #{tpu_custom_call.1} parent=1 // loop_footer
      %s20 = sadd.s32 1, %s16
    $region7: #{tpu_custom_call.1} parent=1 // loop_footer_branch
      %15 = sbr.rel target = $region3
    $region8: #{tpu_custom_call.1} parent=1 // loop_exit
      _
    %3284 = vsyncpa [#allocation3], 1
    %s3285 = scalar_lea.sflag [#allocation3], 1
    %3286 = vsyncpa %s3285, 1
    %3287 = vsyncpa [#allocation6], 1
    %3288 = vsyncpa [#allocation4], 1
    %s3289 = scalar_lea.sflag [#allocation4], 1
    %3290 = vsyncpa %s3289, 1

</llo_original>
